<compile_context>
chip_gen: v7x
topology: tpu7x:2x2x1
jax: 0.10.0
libtpu: 0.0.40
codegen_flags: <defaults>
</compile_context>

<pallas_src>
import functools

import jax
import jax.numpy as jnp
from jax.experimental import pallas as pl
from jax.experimental.pallas import tpu as pltpu


# ----------------------------------------------------------------------------- static dims
def _branch_static(T, k1, s1, p1, mp1, k2, p2):
    """Python-int shape bookkeeping for one feature_extractor branch."""
    L1 = (T + 2 * p1 - k1) // s1 + 1          # conv1 output length
    Lp = L1 // mp1                            # MaxPool1d(kernel=stride=mp1), floor mode
    L21 = Lp + 2 * p2 - k2 + 1                # conv2_1
    L22 = L21 + 2 * p2 - k2 + 1               # conv2_2
    L23 = L22 + 2 * p2 - k2 + 1               # conv2_3
    taps1 = -(-k1 // s1)                      # ceil(K1 / stride1) stride-frame taps
    Kp = taps1 * s1                           # conv1 window length padded to whole frames
    need = (L1 - 1) * s1 + Kp                 # last padded-input index conv1 touches
    total = -(-max(need, T + 2 * p1) // s1) * s1   # whole number of stride-frames
    return dict(k1=k1, s1=s1, p1=p1, mp1=mp1, k2=k2, p2=p2,
                L1=L1, Lp=Lp, L21=L21, L22=L22, L23=L23,
                taps1=taps1, Kp=Kp, total=total, nF=total // s1)


# ----------------------------------------------------------------------------- kernel
def _make_kernel(db, ds):
    """Build the fused two-branch kernel (all dims are static Python ints)."""

    def _branch(col_ref, w1, w2a, w2b, w2c, sh_ref, sh0, o_ref,
                h1, q1, q2, q3, im, d):
        L1, Lp, mp = d["L1"], d["Lp"], d["mp1"]
        k2, p2 = d["k2"], d["p2"]
        C1, C21, C22, C23 = d["C1"], d["C21"], d["C22"], d["C23"]
        L21, L22, L23 = d["L21"], d["L22"], d["L23"]

        # ---- conv1 (+ folded-BN scale) = ONE MXU matmul over the wrapper-built im2col ----
        # Accumulate in vregs, add BN shift, ReLU, single scratch write (needed for pooling).
        a1 = jnp.dot(col_ref[0], w1[...], preferred_element_type=jnp.float32)
        h1[...] = jnp.maximum(a1 + sh_ref[sh0:sh0 + 1, 0:C1], 0.0)

        # ---- MaxPool1d(kernel=stride=mp, floor) via strided sublane reads ----
        pool = h1[pl.ds(0, Lp, stride=mp), :]
        for r in range(1, mp):
            pool = jnp.maximum(pool, h1[pl.ds(r, Lp, stride=mp), :])

        # zero only the halo rows (interior is fully overwritten every step)
        q1[0:p2, :] = jnp.zeros((p2, C1), jnp.float32)
        q1[p2 + Lp:p2 + Lp + p2, :] = jnp.zeros((p2, C1), jnp.float32)
        q1[p2:p2 + Lp, :] = pool
        # TODO(synk): nn.Dropout(p=0.5) is train-time only; eval-mode forward == identity.

        # ---- stride-1 conv + BN shift + ReLU, all k2 taps packed into ONE matmul ----
        def conv_block(q_ref, lout, cin, cout, w_ref, sh_i):
            # build (lout, k2*cin) im2col operand in VMEM scratch with k2 shifted stores
            for k in range(k2):
                im[0:lout, k * cin:(k + 1) * cin] = q_ref[k:k + lout, 0:cin]
            acc = jnp.dot(im[0:lout, 0:k2 * cin], w_ref[...],
                          preferred_element_type=jnp.float32)
            return jnp.maximum(acc + sh_ref[sh_i:sh_i + 1, 0:cout], 0.0)

        a = conv_block(q1, L21, C1, C21, w2a, sh0 + 1)
        q2[0:p2, :] = jnp.zeros((p2, C21), jnp.float32)
        q2[p2 + L21:p2 + L21 + p2, :] = jnp.zeros((p2, C21), jnp.float32)
        q2[p2:p2 + L21, :] = a

        a = conv_block(q2, L22, C21, C22, w2b, sh0 + 2)
        q3[0:p2, :] = jnp.zeros((p2, C22), jnp.float32)
        q3[p2 + L22:p2 + L22 + p2, :] = jnp.zeros((p2, C22), jnp.float32)
        q3[p2:p2 + L22, :] = a

        o_ref[0] = conv_block(q3, L23, C22, C23, w2c, sh0 + 3)

    def kernel(cb_ref, cs_ref,
               w1b, w21b, w22b, w23b,
               w1s, w21s, w22s, w23s,
               sh_ref,
               ob_ref, os_ref,
               hb1, qb1, qb2, qb3, imb,
               hs1, qs1, qs2, qs3, ims):
        _branch(cb_ref, w1b, w21b, w22b, w23b, sh_ref, 0, ob_ref,
                hb1, qb1, qb2, qb3, imb, db)
        _branch(cs_ref, w1s, w21s, w22s, w23s, sh_ref, 4, os_ref,
                hs1, qs1, qs2, qs3, ims, ds)

    return kernel


# ----------------------------------------------------------------------------- wrapper
def _fold_bn(w, bn, eps=1e-5):
    s = bn["g"] / jnp.sqrt(bn["v"] + eps)
    return w * s[:, None, None], bn["be"] - bn["m"] * s


def _prep_branch(p, d):
    w1f, t1 = _fold_bn(p["w1"], p["bn1"])
    w21f, t21 = _fold_bn(p["w21"], p["bn21"])
    w22f, t22 = _fold_bn(p["w22"], p["bn22"])
    w23f, t23 = _fold_bn(p["w23"], p["bn23"])
    C1 = w1f.shape[0]
    # conv1: (C1, 1, k1) -> zero-pad taps to Kp -> (Kp, C1)   (matches im2col column order)
    w1t = jnp.pad(w1f[:, 0, :], ((0, 0), (0, d["Kp"] - w1f.shape[2]))).T

    # stride-1 convs: (Cout, Cin, k2) -> (k2, Cin, Cout) -> (k2*Cin, Cout)
    def pack(w):
        k2, cin, cout = w.shape[2], w.shape[1], w.shape[0]
        return jnp.transpose(w, (2, 1, 0)).reshape(k2 * cin, cout)

    d = dict(d, C1=C1, C21=w21f.shape[0], C22=w22f.shape[0], C23=w23f.shape[0])
    return d, (w1t, pack(w21f), pack(w22f), pack(w23f)), (t1, t21, t22, t23)


@functools.partial(jax.jit, static_argnames=("sample_rate",))
def deepsleepnet_feature_extractor(x, params, sample_rate=100):
    """x: (B, 1, T) float32 (NCL). Inference forward of DeepSleepNet_featureExtractor."""
    B, Cin, T = x.shape
    assert Cin == 1, "DeepSleepNet feature extractor expects a single input channel"
    sr = sample_rate

    db = _branch_static(T, k1=sr * 4, s1=sr // 2, p1=(sr * 4 - 1) // 2,
                        mp1=4, k2=6, p2=2)
    ds = _branch_static(T, k1=sr // 2, s1=sr // 16, p1=(sr // 2 - 1) // 2,
                        mp1=8, k2=8, p2=3)

    db, wb, tb = _prep_branch(params["big"], db)
    ds, ws, ts = _prep_branch(params["small"], ds)

    # pack all 8 per-layer BN shift vectors into one small (8, 32) operand
    shw = max(db["C1"], db["C21"], db["C22"], db["C23"],
              ds["C1"], ds["C21"], ds["C22"], ds["C23"])
    sh = jnp.zeros((8, shw), jnp.float32)
    for i, t in enumerate(tb + ts):
        sh = sh.at[i, :t.shape[0]].set(t)

    def conv1_cols(d):
        # im2col for the strided first conv: (B, L1, taps1*s1); window i starts at frame i.
        xp = jnp.pad(x[:, 0, :], ((0, 0), (d["p1"], d["total"] - T - d["p1"])))
        fr = xp.reshape(B, d["nF"], d["s1"])              # non-overlapping stride frames
        return jnp.concatenate(
            [fr[:, j:j + d["L1"], :] for j in range(d["taps1"])], axis=2)

    cb, cs = conv1_cols(db), conv1_cols(ds)

    kernel = _make_kernel(db, ds)

    full = lambda a: pl.BlockSpec(a.shape, lambda b, _n=a.ndim: (0,) * _n)
    perb = lambda shape: pl.BlockSpec((1,) + shape,
                                      lambda b, _n=len(shape): (b,) + (0,) * _n)

    grid_spec = pltpu.PrefetchScalarGridSpec(
        num_scalar_prefetch=0,
        grid=(B,),
        in_specs=[
            perb((db["L1"], db["Kp"])),                  # big-branch conv1 im2col
            perb((ds["L1"], ds["Kp"])),                  # small-branch conv1 im2col
            full(wb[0]), full(wb[1]), full(wb[2]), full(wb[3]),
            full(ws[0]), full(ws[1]), full(ws[2]), full(ws[3]),
            full(sh),
        ],
        out_specs=[
            perb((db["L23"], db["C23"])),
            perb((ds["L23"], ds["C23"])),
        ],
        scratch_shapes=[
            # big branch
            pltpu.VMEM((db["L1"], db["C1"]), jnp.float32),                       # conv1 out
            pltpu.VMEM((db["Lp"] + 2 * db["p2"], db["C1"]), jnp.float32),        # padded pooled
            pltpu.VMEM((db["L21"] + 2 * db["p2"], db["C21"]), jnp.float32),      # padded conv2_1
            pltpu.VMEM((db["L22"] + 2 * db["p2"], db["C22"]), jnp.float32),      # padded conv2_2
            pltpu.VMEM((db["L21"], db["k2"] * db["C21"]), jnp.float32),          # packed im2col
            # small branch
            pltpu.VMEM((ds["L1"], ds["C1"]), jnp.float32),
            pltpu.VMEM((ds["Lp"] + 2 * ds["p2"], ds["C1"]), jnp.float32),
            pltpu.VMEM((ds["L21"] + 2 * ds["p2"], ds["C21"]), jnp.float32),
            pltpu.VMEM((ds["L22"] + 2 * ds["p2"], ds["C22"]), jnp.float32),
            pltpu.VMEM((ds["L21"], ds["k2"] * ds["C21"]), jnp.float32),
        ],
    )

    big_out, small_out = pl.pallas_call(
        kernel,
        out_shape=(jax.ShapeDtypeStruct((B, db["L23"], db["C23"]), jnp.float32),
                   jax.ShapeDtypeStruct((B, ds["L23"], ds["C23"]), jnp.float32)),
        grid_spec=grid_spec,
        compiler_params=pltpu.CompilerParams(dimension_semantics=("parallel",)),
    )(cb, cs, *wb, *ws, sh)

    # torch.flatten(feature, 1) on NCL layout -> (B, C*L) with C major; outputs are tiny and
    # XLA fuses the transpose/reshape into the concatenate (single small op).
    big_flat = jnp.transpose(big_out, (0, 2, 1)).reshape(B, -1)
    small_flat = jnp.transpose(small_out, (0, 2, 1)).reshape(B, -1)
    return jnp.concatenate([big_flat, small_flat], axis=1)


# ----------------------------------------------------------------------------- reference
def _reference(x, params, sample_rate=100):
    """Pure-JAX (lax.conv) forward of the same module (inference BN, eval dropout)."""
    eps = 1e-5

    def conv_bn_relu(y, w, bn, stride, pad):
        out = jax.lax.conv_general_dilated(
            y, w, window_strides=(stride,), padding=[(pad, pad)],
            dimension_numbers=("NCH", "OIH", "NCH"),
            precision=jax.lax.Precision.HIGHEST)
        s = bn["g"] / jnp.sqrt(bn["v"] + eps)
        t = bn["be"] - bn["m"] * s
        return jnp.maximum(out * s[None, :, None] + t[None, :, None], 0.0)

    def maxpool(y, k):
        B, C, L = y.shape
        Lo = L // k
        return jnp.max(y[:, :, :Lo * k].reshape(B, C, Lo, k), axis=-1)

    def branch(y, p, stride1, pad1, mp1, pad2):
        y = conv_bn_relu(y, p["w1"], p["bn1"], stride1, pad1)
        y = maxpool(y, mp1)
        y = conv_bn_relu(y, p["w21"], p["bn21"], 1, pad2)
        y = conv_bn_relu(y, p["w22"], p["bn22"], 1, pad2)
        y = conv_bn_relu(y, p["w23"], p["bn23"], 1, pad2)
        return y

    sr = sample_rate
    big = branch(x, params["big"], sr // 2, (sr * 4 - 1) // 2, 4, 2)
    small = branch(x, params["small"], sr // 16, (sr // 2 - 1) // 2, 8, 3)
    B = x.shape[0]
    return jnp.concatenate([big.reshape(B, -1), small.reshape(B, -1)], axis=1)


# ----------------------------------------------------------------------------- main
if __name__ == "__main__":
    B, T = 2, 3000                 # one 30 s single-channel EEG epoch at 100 Hz
    sample_rate = 100
    layer = [16, 32, 32, 32]
    f32 = jnp.float32

    root = jax.random.PRNGKey(0)
    kb, ksm, kx = jax.random.split(root, 3)

    def make_bn(key, c):
        k1, k2, k3, k4 = jax.random.split(key, 4)
        return dict(g=1.0 + 0.1 * jax.random.normal(k1, (c,), f32),
                    be=0.1 * jax.random.normal(k2, (c,), f32),
                    m=0.1 * jax.random.normal(k3, (c,), f32),
                    v=1.0 + 0.1 * jnp.abs(jax.random.normal(k4, (c,), f32)))

    def make_branch(key, k1, k2):
        ks = jax.random.split(key, 8)

        def conv_w(k, cout, cin, ksz):          # kaiming-ish fan-in init
            return ((2.0 / (cin * ksz)) ** 0.5
                    * jax.random.normal(k, (cout, cin, ksz), f32))

        return dict(
            w1=conv_w(ks[0], layer[0], 1, k1), bn1=make_bn(ks[1], layer[0]),
            w21=conv_w(ks[2], layer[1], layer[0], k2), bn21=make_bn(ks[3], layer[1]),
            w22=conv_w(ks[4], layer[2], layer[1], k2), bn22=make_bn(ks[5], layer[2]),
            w23=conv_w(ks[6], layer[3], layer[2], k2), bn23=make_bn(ks[7], layer[3]),
        )

    params = dict(big=make_branch(kb, sample_rate * 4, 6),
                  small=make_branch(ksm, sample_rate // 2, 8))
    x = jax.random.normal(kx, (B, 1, T), f32)

    out = deepsleepnet_feature_extractor(x, params, sample_rate=sample_rate)
    out = jax.block_until_ready(out)

    ref = _reference(x, params, sample_rate=sample_rate)
    assert out.shape == ref.shape, (out.shape, ref.shape)
    err = float(jnp.max(jnp.abs(out - ref)))
    assert jnp.allclose(out, ref, atol=5e-4, rtol=5e-4), \
        f"mismatch vs pure-JAX reference, max abs err {err}"

    print("KERNEL_OK")
</pallas_src>

<mosaic_0001>
module attributes {stable_mosaic.version = 11 : i64} {
  func.func @kernel(%arg0: i32, %arg1: memref<1x60x400xf32, #tpu.memory_space<vmem>>, %arg2: memref<1x500x54xf32, #tpu.memory_space<vmem>>, %arg3: memref<400x16xf32, #tpu.memory_space<vmem>>, %arg4: memref<96x32xf32, #tpu.memory_space<vmem>>, %arg5: memref<192x32xf32, #tpu.memory_space<vmem>>, %arg6: memref<192x32xf32, #tpu.memory_space<vmem>>, %arg7: memref<54x16xf32, #tpu.memory_space<vmem>>, %arg8: memref<128x32xf32, #tpu.memory_space<vmem>>, %arg9: memref<256x32xf32, #tpu.memory_space<vmem>>, %arg10: memref<256x32xf32, #tpu.memory_space<vmem>>, %arg11: memref<8x32xf32, #tpu.memory_space<vmem>>, %arg12: memref<1x12x32xf32, #tpu.memory_space<vmem>>, %arg13: memref<1x59x32xf32, #tpu.memory_space<vmem>>, %arg14: memref<60x16xf32, #tpu.memory_space<vmem>>, %arg15: memref<19x16xf32, #tpu.memory_space<vmem>>, %arg16: memref<18x32xf32, #tpu.memory_space<vmem>>, %arg17: memref<17x32xf32, #tpu.memory_space<vmem>>, %arg18: memref<14x192xf32, #tpu.memory_space<vmem>>, %arg19: memref<500x16xf32, #tpu.memory_space<vmem>>, %arg20: memref<68x16xf32, #tpu.memory_space<vmem>>, %arg21: memref<67x32xf32, #tpu.memory_space<vmem>>, %arg22: memref<66x32xf32, #tpu.memory_space<vmem>>, %arg23: memref<61x256xf32, #tpu.memory_space<vmem>>) attributes {dimension_semantics = [#tpu.dimension_semantics<parallel>], iteration_bounds = array<i64: 2>, scalar_prefetch = 0 : i64, scratch_operands = 10 : i64, tpu.core_type = #tpu.core_type<tc>, window_params = [{transform_indices = @transform_0, window_bounds = array<i64: 1, 60, 400>}, {transform_indices = @transform_1, window_bounds = array<i64: 1, 500, 54>}, {pipeline_mode = #tpu.pipeline_mode<synchronous>, transform_indices = @transform_2, window_bounds = array<i64: 400, 16>}, {pipeline_mode = #tpu.pipeline_mode<synchronous>, transform_indices = @transform_3, window_bounds = array<i64: 96, 32>}, {pipeline_mode = #tpu.pipeline_mode<synchronous>, transform_indices = @transform_4, window_bounds = array<i64: 192, 32>}, {pipeline_mode = #tpu.pipeline_mode<synchronous>, transform_indices = @transform_5, window_bounds = array<i64: 192, 32>}, {pipeline_mode = #tpu.pipeline_mode<synchronous>, transform_indices = @transform_6, window_bounds = array<i64: 54, 16>}, {pipeline_mode = #tpu.pipeline_mode<synchronous>, transform_indices = @transform_7, window_bounds = array<i64: 128, 32>}, {pipeline_mode = #tpu.pipeline_mode<synchronous>, transform_indices = @transform_8, window_bounds = array<i64: 256, 32>}, {pipeline_mode = #tpu.pipeline_mode<synchronous>, transform_indices = @transform_9, window_bounds = array<i64: 256, 32>}, {pipeline_mode = #tpu.pipeline_mode<synchronous>, transform_indices = @transform_10, window_bounds = array<i64: 8, 32>}, {transform_indices = @transform_11, window_bounds = array<i64: 1, 12, 32>}, {transform_indices = @transform_12, window_bounds = array<i64: 1, 59, 32>}]} {
    %c0 = arith.constant 0 : index
    %c0_0 = arith.constant 0 : index
    %c0_1 = arith.constant 0 : index
    %0 = vector.load %arg1[%c0, %c0_0, %c0_1] : memref<1x60x400xf32, #tpu.memory_space<vmem>>, vector<1x60x400xf32>
    %1 = vector.shape_cast %0 : vector<1x60x400xf32> to vector<60x400xf32>
    %c0_2 = arith.constant 0 : index
    %c0_3 = arith.constant 0 : index
    %2 = vector.load %arg3[%c0_2, %c0_3] : memref<400x16xf32, #tpu.memory_space<vmem>>, vector<400x16xf32>
    %cst = arith.constant dense<0.000000e+00> : vector<60x16xf32>
    %3 = tpu.matmul %1, %2, %cst {dimension_numbers = #tpu.dot_dimension_numbers<[1], [0], [0], [1], [0, 0, 1, 1], [], []>} : vector<60x400xf32>, vector<400x16xf32>, vector<60x16xf32> -> vector<60x16xf32>
    %c0_4 = arith.constant 0 : index
    %c0_5 = arith.constant 0 : index
    %4 = vector.load %arg11[%c0_4, %c0_5] : memref<8x32xf32, #tpu.memory_space<vmem>>, vector<1x16xf32>
    %5 = vector.broadcast %4 : vector<1x16xf32> to vector<60x16xf32>
    %6 = arith.addf %3, %5 : vector<60x16xf32>
    %cst_6 = arith.constant 0.000000e+00 : f32
    %7 = vector.broadcast %cst_6 : f32 to vector<60x16xf32>
    %8 = arith.maximumf %6, %7 : vector<60x16xf32>
    %c0_7 = arith.constant 0 : index
    %c0_8 = arith.constant 0 : index
    %9 = vector.load %arg14[%c0_7, %c0_8] : memref<60x16xf32, #tpu.memory_space<vmem>>, vector<60x16xf32>
    tpu.vector_store %arg14[%c0_7, %c0_8], %8 {strides = array<i32>} : memref<60x16xf32, #tpu.memory_space<vmem>>, vector<60x16xf32>,
    %c0_9 = arith.constant 0 : index
    %c0_10 = arith.constant 0 : index
    %10 = tpu.strided_load %arg14[%c0_9, %c0_10] {strides = array<i32: 4, 1>} : memref<60x16xf32, #tpu.memory_space<vmem>>, vector<15x16xf32>
    %c1 = arith.constant 1 : index
    %c0_11 = arith.constant 0 : index
    %11 = tpu.strided_load %arg14[%c1, %c0_11] {strides = array<i32: 4, 1>} : memref<60x16xf32, #tpu.memory_space<vmem>>, vector<15x16xf32>
    %12 = arith.maximumf %10, %11 : vector<15x16xf32>
    %c2 = arith.constant 2 : index
    %c0_12 = arith.constant 0 : index
    %13 = tpu.strided_load %arg14[%c2, %c0_12] {strides = array<i32: 4, 1>} : memref<60x16xf32, #tpu.memory_space<vmem>>, vector<15x16xf32>
    %14 = arith.maximumf %12, %13 : vector<15x16xf32>
    %c3 = arith.constant 3 : index
    %c0_13 = arith.constant 0 : index
    %15 = tpu.strided_load %arg14[%c3, %c0_13] {strides = array<i32: 4, 1>} : memref<60x16xf32, #tpu.memory_space<vmem>>, vector<15x16xf32>
    %16 = arith.maximumf %14, %15 : vector<15x16xf32>
    %cst_14 = arith.constant 0.000000e+00 : f32
    %17 = vector.broadcast %cst_14 : f32 to vector<2x16xf32>
    %c0_15 = arith.constant 0 : index
    %c0_16 = arith.constant 0 : index
    %18 = vector.load %arg15[%c0_15, %c0_16] : memref<19x16xf32, #tpu.memory_space<vmem>>, vector<2x16xf32>
    tpu.vector_store %arg15[%c0_15, %c0_16], %17 {strides = array<i32>} : memref<19x16xf32, #tpu.memory_space<vmem>>, vector<2x16xf32>,
    %cst_17 = arith.constant 0.000000e+00 : f32
    %19 = vector.broadcast %cst_17 : f32 to vector<2x16xf32>
    %c17 = arith.constant 17 : index
    %c0_18 = arith.constant 0 : index
    %20 = vector.load %arg15[%c17, %c0_18] : memref<19x16xf32, #tpu.memory_space<vmem>>, vector<2x16xf32>
    tpu.vector_store %arg15[%c17, %c0_18], %19 {strides = array<i32>} : memref<19x16xf32, #tpu.memory_space<vmem>>, vector<2x16xf32>,
    %c2_19 = arith.constant 2 : index
    %c0_20 = arith.constant 0 : index
    %21 = vector.load %arg15[%c2_19, %c0_20] : memref<19x16xf32, #tpu.memory_space<vmem>>, vector<15x16xf32>
    tpu.vector_store %arg15[%c2_19, %c0_20], %16 {strides = array<i32>} : memref<19x16xf32, #tpu.memory_space<vmem>>, vector<15x16xf32>,
    %c0_21 = arith.constant 0 : index
    %c0_22 = arith.constant 0 : index
    %22 = vector.load %arg15[%c0_21, %c0_22] : memref<19x16xf32, #tpu.memory_space<vmem>>, vector<14x16xf32>
    %c0_23 = arith.constant 0 : index
    %c0_24 = arith.constant 0 : index
    %23 = vector.load %arg18[%c0_23, %c0_24] : memref<14x192xf32, #tpu.memory_space<vmem>>, vector<14x16xf32>
    tpu.vector_store %arg18[%c0_23, %c0_24], %22 {strides = array<i32>} : memref<14x192xf32, #tpu.memory_space<vmem>>, vector<14x16xf32>,
    %c1_25 = arith.constant 1 : index
    %c0_26 = arith.constant 0 : index
    %24 = vector.load %arg15[%c1_25, %c0_26] : memref<19x16xf32, #tpu.memory_space<vmem>>, vector<14x16xf32>
    %c0_27 = arith.constant 0 : index
    %c16 = arith.constant 16 : index
    %25 = vector.load %arg18[%c0_27, %c16] : memref<14x192xf32, #tpu.memory_space<vmem>>, vector<14x16xf32>
    tpu.vector_store %arg18[%c0_27, %c16], %24 {strides = array<i32>} : memref<14x192xf32, #tpu.memory_space<vmem>>, vector<14x16xf32>,
    %c2_28 = arith.constant 2 : index
    %c0_29 = arith.constant 0 : index
    %26 = vector.load %arg15[%c2_28, %c0_29] : memref<19x16xf32, #tpu.memory_space<vmem>>, vector<14x16xf32>
    %c0_30 = arith.constant 0 : index
    %c32 = arith.constant 32 : index
    %27 = vector.load %arg18[%c0_30, %c32] : memref<14x192xf32, #tpu.memory_space<vmem>>, vector<14x16xf32>
    tpu.vector_store %arg18[%c0_30, %c32], %26 {strides = array<i32>} : memref<14x192xf32, #tpu.memory_space<vmem>>, vector<14x16xf32>,
    %c3_31 = arith.constant 3 : index
    %c0_32 = arith.constant 0 : index
    %28 = vector.load %arg15[%c3_31, %c0_32] : memref<19x16xf32, #tpu.memory_space<vmem>>, vector<14x16xf32>
    %c0_33 = arith.constant 0 : index
    %c48 = arith.constant 48 : index
    %29 = vector.load %arg18[%c0_33, %c48] : memref<14x192xf32, #tpu.memory_space<vmem>>, vector<14x16xf32>
    tpu.vector_store %arg18[%c0_33, %c48], %28 {strides = array<i32>} : memref<14x192xf32, #tpu.memory_space<vmem>>, vector<14x16xf32>,
    %c4 = arith.constant 4 : index
    %c0_34 = arith.constant 0 : index
    %30 = vector.load %arg15[%c4, %c0_34] : memref<19x16xf32, #tpu.memory_space<vmem>>, vector<14x16xf32>
    %c0_35 = arith.constant 0 : index
    %c64 = arith.constant 64 : index
    %31 = vector.load %arg18[%c0_35, %c64] : memref<14x192xf32, #tpu.memory_space<vmem>>, vector<14x16xf32>
    tpu.vector_store %arg18[%c0_35, %c64], %30 {strides = array<i32>} : memref<14x192xf32, #tpu.memory_space<vmem>>, vector<14x16xf32>,
    %c5 = arith.constant 5 : index
    %c0_36 = arith.constant 0 : index
    %32 = vector.load %arg15[%c5, %c0_36] : memref<19x16xf32, #tpu.memory_space<vmem>>, vector<14x16xf32>
    %c0_37 = arith.constant 0 : index
    %c80 = arith.constant 80 : index
    %33 = vector.load %arg18[%c0_37, %c80] : memref<14x192xf32, #tpu.memory_space<vmem>>, vector<14x16xf32>
    tpu.vector_store %arg18[%c0_37, %c80], %32 {strides = array<i32>} : memref<14x192xf32, #tpu.memory_space<vmem>>, vector<14x16xf32>,
    %c0_38 = arith.constant 0 : index
    %c0_39 = arith.constant 0 : index
    %34 = vector.load %arg18[%c0_38, %c0_39] : memref<14x192xf32, #tpu.memory_space<vmem>>, vector<14x96xf32>
    %c0_40 = arith.constant 0 : index
    %c0_41 = arith.constant 0 : index
    %35 = vector.load %arg4[%c0_40, %c0_41] : memref<96x32xf32, #tpu.memory_space<vmem>>, vector<96x32xf32>
    %cst_42 = arith.constant dense<0.000000e+00> : vector<14x32xf32>
    %36 = tpu.matmul %34, %35, %cst_42 {dimension_numbers = #tpu.dot_dimension_numbers<[1], [0], [0], [1], [0, 0, 1, 1], [], []>} : vector<14x96xf32>, vector<96x32xf32>, vector<14x32xf32> -> vector<14x32xf32>
    %c1_43 = arith.constant 1 : index
    %c0_44 = arith.constant 0 : index
    %37 = vector.load %arg11[%c1_43, %c0_44] : memref<8x32xf32, #tpu.memory_space<vmem>>, vector<1x32xf32>
    %38 = vector.broadcast %37 : vector<1x32xf32> to vector<14x32xf32>
    %39 = arith.addf %36, %38 : vector<14x32xf32>
    %cst_45 = arith.constant 0.000000e+00 : f32
    %40 = vector.broadcast %cst_45 : f32 to vector<14x32xf32>
    %41 = arith.maximumf %39, %40 : vector<14x32xf32>
    %cst_46 = arith.constant 0.000000e+00 : f32
    %42 = vector.broadcast %cst_46 : f32 to vector<2x32xf32>
    %c0_47 = arith.constant 0 : index
    %c0_48 = arith.constant 0 : index
    %43 = vector.load %arg16[%c0_47, %c0_48] : memref<18x32xf32, #tpu.memory_space<vmem>>, vector<2x32xf32>
    tpu.vector_store %arg16[%c0_47, %c0_48], %42 {strides = array<i32>} : memref<18x32xf32, #tpu.memory_space<vmem>>, vector<2x32xf32>,
    %cst_49 = arith.constant 0.000000e+00 : f32
    %44 = vector.broadcast %cst_49 : f32 to vector<2x32xf32>
    %c16_50 = arith.constant 16 : index
    %c0_51 = arith.constant 0 : index
    %45 = vector.load %arg16[%c16_50, %c0_51] : memref<18x32xf32, #tpu.memory_space<vmem>>, vector<2x32xf32>
    tpu.vector_store %arg16[%c16_50, %c0_51], %44 {strides = array<i32>} : memref<18x32xf32, #tpu.memory_space<vmem>>, vector<2x32xf32>,
    %c2_52 = arith.constant 2 : index
    %c0_53 = arith.constant 0 : index
    %46 = vector.load %arg16[%c2_52, %c0_53] : memref<18x32xf32, #tpu.memory_space<vmem>>, vector<14x32xf32>
    tpu.vector_store %arg16[%c2_52, %c0_53], %41 {strides = array<i32>} : memref<18x32xf32, #tpu.memory_space<vmem>>, vector<14x32xf32>,
    %c0_54 = arith.constant 0 : index
    %c0_55 = arith.constant 0 : index
    %47 = vector.load %arg16[%c0_54, %c0_55] : memref<18x32xf32, #tpu.memory_space<vmem>>, vector<13x32xf32>
    %c0_56 = arith.constant 0 : index
    %c0_57 = arith.constant 0 : index
    %48 = vector.load %arg18[%c0_56, %c0_57] : memref<14x192xf32, #tpu.memory_space<vmem>>, vector<13x32xf32>
    tpu.vector_store %arg18[%c0_56, %c0_57], %47 {strides = array<i32>} : memref<14x192xf32, #tpu.memory_space<vmem>>, vector<13x32xf32>,
    %c1_58 = arith.constant 1 : index
    %c0_59 = arith.constant 0 : index
    %49 = vector.load %arg16[%c1_58, %c0_59] : memref<18x32xf32, #tpu.memory_space<vmem>>, vector<13x32xf32>
    %c0_60 = arith.constant 0 : index
    %c32_61 = arith.constant 32 : index
    %50 = vector.load %arg18[%c0_60, %c32_61] : memref<14x192xf32, #tpu.memory_space<vmem>>, vector<13x32xf32>
    tpu.vector_store %arg18[%c0_60, %c32_61], %49 {strides = array<i32>} : memref<14x192xf32, #tpu.memory_space<vmem>>, vector<13x32xf32>,
    %c2_62 = arith.constant 2 : index
    %c0_63 = arith.constant 0 : index
    %51 = vector.load %arg16[%c2_62, %c0_63] : memref<18x32xf32, #tpu.memory_space<vmem>>, vector<13x32xf32>
    %c0_64 = arith.constant 0 : index
    %c64_65 = arith.constant 64 : index
    %52 = vector.load %arg18[%c0_64, %c64_65] : memref<14x192xf32, #tpu.memory_space<vmem>>, vector<13x32xf32>
    tpu.vector_store %arg18[%c0_64, %c64_65], %51 {strides = array<i32>} : memref<14x192xf32, #tpu.memory_space<vmem>>, vector<13x32xf32>,
    %c3_66 = arith.constant 3 : index
    %c0_67 = arith.constant 0 : index
    %53 = vector.load %arg16[%c3_66, %c0_67] : memref<18x32xf32, #tpu.memory_space<vmem>>, vector<13x32xf32>
    %c0_68 = arith.constant 0 : index
    %c96 = arith.constant 96 : index
    %54 = vector.load %arg18[%c0_68, %c96] : memref<14x192xf32, #tpu.memory_space<vmem>>, vector<13x32xf32>
    tpu.vector_store %arg18[%c0_68, %c96], %53 {strides = array<i32>} : memref<14x192xf32, #tpu.memory_space<vmem>>, vector<13x32xf32>,
    %c4_69 = arith.constant 4 : index
    %c0_70 = arith.constant 0 : index
    %55 = vector.load %arg16[%c4_69, %c0_70] : memref<18x32xf32, #tpu.memory_space<vmem>>, vector<13x32xf32>
    %c0_71 = arith.constant 0 : index
    %c128 = arith.constant 128 : index
    %56 = vector.load %arg18[%c0_71, %c128] : memref<14x192xf32, #tpu.memory_space<vmem>>, vector<13x32xf32>
    tpu.vector_store %arg18[%c0_71, %c128], %55 {strides = array<i32>} : memref<14x192xf32, #tpu.memory_space<vmem>>, vector<13x32xf32>,
    %c5_72 = arith.constant 5 : index
    %c0_73 = arith.constant 0 : index
    %57 = vector.load %arg16[%c5_72, %c0_73] : memref<18x32xf32, #tpu.memory_space<vmem>>, vector<13x32xf32>
    %c0_74 = arith.constant 0 : index
    %c160 = arith.constant 160 : index
    %58 = vector.load %arg18[%c0_74, %c160] : memref<14x192xf32, #tpu.memory_space<vmem>>, vector<13x32xf32>
    tpu.vector_store %arg18[%c0_74, %c160], %57 {strides = array<i32>} : memref<14x192xf32, #tpu.memory_space<vmem>>, vector<13x32xf32>,
    %c0_75 = arith.constant 0 : index
    %c0_76 = arith.constant 0 : index
    %59 = vector.load %arg18[%c0_75, %c0_76] : memref<14x192xf32, #tpu.memory_space<vmem>>, vector<13x192xf32>
    %c0_77 = arith.constant 0 : index
    %c0_78 = arith.constant 0 : index
    %60 = vector.load %arg5[%c0_77, %c0_78] : memref<192x32xf32, #tpu.memory_space<vmem>>, vector<192x32xf32>
    %cst_79 = arith.constant dense<0.000000e+00> : vector<13x32xf32>
    %61 = tpu.matmul %59, %60, %cst_79 {dimension_numbers = #tpu.dot_dimension_numbers<[1], [0], [0], [1], [0, 0, 1, 1], [], []>} : vector<13x192xf32>, vector<192x32xf32>, vector<13x32xf32> -> vector<13x32xf32>
    %c2_80 = arith.constant 2 : index
    %c0_81 = arith.constant 0 : index
    %62 = vector.load %arg11[%c2_80, %c0_81] : memref<8x32xf32, #tpu.memory_space<vmem>>, vector<1x32xf32>
    %63 = vector.broadcast %62 : vector<1x32xf32> to vector<13x32xf32>
    %64 = arith.addf %61, %63 : vector<13x32xf32>
    %cst_82 = arith.constant 0.000000e+00 : f32
    %65 = vector.broadcast %cst_82 : f32 to vector<13x32xf32>
    %66 = arith.maximumf %64, %65 : vector<13x32xf32>
    %cst_83 = arith.constant 0.000000e+00 : f32
    %67 = vector.broadcast %cst_83 : f32 to vector<2x32xf32>
    %c0_84 = arith.constant 0 : index
    %c0_85 = arith.constant 0 : index
    %68 = vector.load %arg17[%c0_84, %c0_85] : memref<17x32xf32, #tpu.memory_space<vmem>>, vector<2x32xf32>
    tpu.vector_store %arg17[%c0_84, %c0_85], %67 {strides = array<i32>} : memref<17x32xf32, #tpu.memory_space<vmem>>, vector<2x32xf32>,
    %cst_86 = arith.constant 0.000000e+00 : f32
    %69 = vector.broadcast %cst_86 : f32 to vector<2x32xf32>
    %c15 = arith.constant 15 : index
    %c0_87 = arith.constant 0 : index
    %70 = vector.load %arg17[%c15, %c0_87] : memref<17x32xf32, #tpu.memory_space<vmem>>, vector<2x32xf32>
    tpu.vector_store %arg17[%c15, %c0_87], %69 {strides = array<i32>} : memref<17x32xf32, #tpu.memory_space<vmem>>, vector<2x32xf32>,
    %c2_88 = arith.constant 2 : index
    %c0_89 = arith.constant 0 : index
    %71 = vector.load %arg17[%c2_88, %c0_89] : memref<17x32xf32, #tpu.memory_space<vmem>>, vector<13x32xf32>
    tpu.vector_store %arg17[%c2_88, %c0_89], %66 {strides = array<i32>} : memref<17x32xf32, #tpu.memory_space<vmem>>, vector<13x32xf32>,
    %c0_90 = arith.constant 0 : index
    %c0_91 = arith.constant 0 : index
    %72 = vector.load %arg17[%c0_90, %c0_91] : memref<17x32xf32, #tpu.memory_space<vmem>>, vector<12x32xf32>
    %c0_92 = arith.constant 0 : index
    %c0_93 = arith.constant 0 : index
    %73 = vector.load %arg18[%c0_92, %c0_93] : memref<14x192xf32, #tpu.memory_space<vmem>>, vector<12x32xf32>
    tpu.vector_store %arg18[%c0_92, %c0_93], %72 {strides = array<i32>} : memref<14x192xf32, #tpu.memory_space<vmem>>, vector<12x32xf32>,
    %c1_94 = arith.constant 1 : index
    %c0_95 = arith.constant 0 : index
    %74 = vector.load %arg17[%c1_94, %c0_95] : memref<17x32xf32, #tpu.memory_space<vmem>>, vector<12x32xf32>
    %c0_96 = arith.constant 0 : index
    %c32_97 = arith.constant 32 : index
    %75 = vector.load %arg18[%c0_96, %c32_97] : memref<14x192xf32, #tpu.memory_space<vmem>>, vector<12x32xf32>
    tpu.vector_store %arg18[%c0_96, %c32_97], %74 {strides = array<i32>} : memref<14x192xf32, #tpu.memory_space<vmem>>, vector<12x32xf32>,
    %c2_98 = arith.constant 2 : index
    %c0_99 = arith.constant 0 : index
    %76 = vector.load %arg17[%c2_98, %c0_99] : memref<17x32xf32, #tpu.memory_space<vmem>>, vector<12x32xf32>
    %c0_100 = arith.constant 0 : index
    %c64_101 = arith.constant 64 : index
    %77 = vector.load %arg18[%c0_100, %c64_101] : memref<14x192xf32, #tpu.memory_space<vmem>>, vector<12x32xf32>
    tpu.vector_store %arg18[%c0_100, %c64_101], %76 {strides = array<i32>} : memref<14x192xf32, #tpu.memory_space<vmem>>, vector<12x32xf32>,
    %c3_102 = arith.constant 3 : index
    %c0_103 = arith.constant 0 : index
    %78 = vector.load %arg17[%c3_102, %c0_103] : memref<17x32xf32, #tpu.memory_space<vmem>>, vector<12x32xf32>
    %c0_104 = arith.constant 0 : index
    %c96_105 = arith.constant 96 : index
    %79 = vector.load %arg18[%c0_104, %c96_105] : memref<14x192xf32, #tpu.memory_space<vmem>>, vector<12x32xf32>
    tpu.vector_store %arg18[%c0_104, %c96_105], %78 {strides = array<i32>} : memref<14x192xf32, #tpu.memory_space<vmem>>, vector<12x32xf32>,
    %c4_106 = arith.constant 4 : index
    %c0_107 = arith.constant 0 : index
    %80 = vector.load %arg17[%c4_106, %c0_107] : memref<17x32xf32, #tpu.memory_space<vmem>>, vector<12x32xf32>
    %c0_108 = arith.constant 0 : index
    %c128_109 = arith.constant 128 : index
    %81 = vector.load %arg18[%c0_108, %c128_109] : memref<14x192xf32, #tpu.memory_space<vmem>>, vector<12x32xf32>
    tpu.vector_store %arg18[%c0_108, %c128_109], %80 {strides = array<i32>} : memref<14x192xf32, #tpu.memory_space<vmem>>, vector<12x32xf32>,
    %c5_110 = arith.constant 5 : index
    %c0_111 = arith.constant 0 : index
    %82 = vector.load %arg17[%c5_110, %c0_111] : memref<17x32xf32, #tpu.memory_space<vmem>>, vector<12x32xf32>
    %c0_112 = arith.constant 0 : index
    %c160_113 = arith.constant 160 : index
    %83 = vector.load %arg18[%c0_112, %c160_113] : memref<14x192xf32, #tpu.memory_space<vmem>>, vector<12x32xf32>
    tpu.vector_store %arg18[%c0_112, %c160_113], %82 {strides = array<i32>} : memref<14x192xf32, #tpu.memory_space<vmem>>, vector<12x32xf32>,
    %c0_114 = arith.constant 0 : index
    %c0_115 = arith.constant 0 : index
    %84 = vector.load %arg18[%c0_114, %c0_115] : memref<14x192xf32, #tpu.memory_space<vmem>>, vector<12x192xf32>
    %c0_116 = arith.constant 0 : index
    %c0_117 = arith.constant 0 : index
    %85 = vector.load %arg6[%c0_116, %c0_117] : memref<192x32xf32, #tpu.memory_space<vmem>>, vector<192x32xf32>
    %cst_118 = arith.constant dense<0.000000e+00> : vector<12x32xf32>
    %86 = tpu.matmul %84, %85, %cst_118 {dimension_numbers = #tpu.dot_dimension_numbers<[1], [0], [0], [1], [0, 0, 1, 1], [], []>} : vector<12x192xf32>, vector<192x32xf32>, vector<12x32xf32> -> vector<12x32xf32>
    %c3_119 = arith.constant 3 : index
    %c0_120 = arith.constant 0 : index
    %87 = vector.load %arg11[%c3_119, %c0_120] : memref<8x32xf32, #tpu.memory_space<vmem>>, vector<1x32xf32>
    %88 = vector.broadcast %87 : vector<1x32xf32> to vector<12x32xf32>
    %89 = arith.addf %86, %88 : vector<12x32xf32>
    %cst_121 = arith.constant 0.000000e+00 : f32
    %90 = vector.broadcast %cst_121 : f32 to vector<12x32xf32>
    %91 = arith.maximumf %89, %90 : vector<12x32xf32>
    %c0_122 = arith.constant 0 : index
    %c0_123 = arith.constant 0 : index
    %c0_124 = arith.constant 0 : index
    %92 = vector.load %arg12[%c0_122, %c0_123, %c0_124] : memref<1x12x32xf32, #tpu.memory_space<vmem>>, vector<1x12x32xf32>
    %93 = vector.shape_cast %92 : vector<1x12x32xf32> to vector<12x32xf32>
    %94 = vector.shape_cast %91 : vector<12x32xf32> to vector<1x12x32xf32>
    tpu.vector_store %arg12[%c0_122, %c0_123, %c0_124], %94 {strides = array<i32>} : memref<1x12x32xf32, #tpu.memory_space<vmem>>, vector<1x12x32xf32>,
    %c0_125 = arith.constant 0 : index
    %c0_126 = arith.constant 0 : index
    %c0_127 = arith.constant 0 : index
    %95 = vector.load %arg2[%c0_125, %c0_126, %c0_127] : memref<1x500x54xf32, #tpu.memory_space<vmem>>, vector<1x500x54xf32>
    %96 = vector.shape_cast %95 : vector<1x500x54xf32> to vector<500x54xf32>
    %c0_128 = arith.constant 0 : index
    %c0_129 = arith.constant 0 : index
    %97 = vector.load %arg7[%c0_128, %c0_129] : memref<54x16xf32, #tpu.memory_space<vmem>>, vector<54x16xf32>
    %cst_130 = arith.constant dense<0.000000e+00> : vector<500x16xf32>
    %98 = tpu.matmul %96, %97, %cst_130 {dimension_numbers = #tpu.dot_dimension_numbers<[1], [0], [0], [1], [0, 0, 1, 1], [], []>} : vector<500x54xf32>, vector<54x16xf32>, vector<500x16xf32> -> vector<500x16xf32>
    %c4_131 = arith.constant 4 : index
    %c0_132 = arith.constant 0 : index
    %99 = vector.load %arg11[%c4_131, %c0_132] : memref<8x32xf32, #tpu.memory_space<vmem>>, vector<1x16xf32>
    %100 = vector.broadcast %99 : vector<1x16xf32> to vector<500x16xf32>
    %101 = arith.addf %98, %100 : vector<500x16xf32>
    %cst_133 = arith.constant 0.000000e+00 : f32
    %102 = vector.broadcast %cst_133 : f32 to vector<500x16xf32>
    %103 = arith.maximumf %101, %102 : vector<500x16xf32>
    %c0_134 = arith.constant 0 : index
    %c0_135 = arith.constant 0 : index
    %104 = vector.load %arg19[%c0_134, %c0_135] : memref<500x16xf32, #tpu.memory_space<vmem>>, vector<500x16xf32>
    tpu.vector_store %arg19[%c0_134, %c0_135], %103 {strides = array<i32>} : memref<500x16xf32, #tpu.memory_space<vmem>>, vector<500x16xf32>,
    %c0_136 = arith.constant 0 : index
    %c0_137 = arith.constant 0 : index
    %105 = tpu.strided_load %arg19[%c0_136, %c0_137] {strides = array<i32: 8, 1>} : memref<500x16xf32, #tpu.memory_space<vmem>>, vector<62x16xf32>
    %c1_138 = arith.constant 1 : index
    %c0_139 = arith.constant 0 : index
    %106 = tpu.strided_load %arg19[%c1_138, %c0_139] {strides = array<i32: 8, 1>} : memref<500x16xf32, #tpu.memory_space<vmem>>, vector<62x16xf32>
    %107 = arith.maximumf %105, %106 : vector<62x16xf32>
    %c2_140 = arith.constant 2 : index
    %c0_141 = arith.constant 0 : index
    %108 = tpu.strided_load %arg19[%c2_140, %c0_141] {strides = array<i32: 8, 1>} : memref<500x16xf32, #tpu.memory_space<vmem>>, vector<62x16xf32>
    %109 = arith.maximumf %107, %108 : vector<62x16xf32>
    %c3_142 = arith.constant 3 : index
    %c0_143 = arith.constant 0 : index
    %110 = tpu.strided_load %arg19[%c3_142, %c0_143] {strides = array<i32: 8, 1>} : memref<500x16xf32, #tpu.memory_space<vmem>>, vector<62x16xf32>
    %111 = arith.maximumf %109, %110 : vector<62x16xf32>
    %c4_144 = arith.constant 4 : index
    %c0_145 = arith.constant 0 : index
    %112 = tpu.strided_load %arg19[%c4_144, %c0_145] {strides = array<i32: 8, 1>} : memref<500x16xf32, #tpu.memory_space<vmem>>, vector<62x16xf32>
    %113 = arith.maximumf %111, %112 : vector<62x16xf32>
    %c5_146 = arith.constant 5 : index
    %c0_147 = arith.constant 0 : index
    %114 = tpu.strided_load %arg19[%c5_146, %c0_147] {strides = array<i32: 8, 1>} : memref<500x16xf32, #tpu.memory_space<vmem>>, vector<62x16xf32>
    %115 = arith.maximumf %113, %114 : vector<62x16xf32>
    %c6 = arith.constant 6 : index
    %c0_148 = arith.constant 0 : index
    %116 = tpu.strided_load %arg19[%c6, %c0_148] {strides = array<i32: 8, 1>} : memref<500x16xf32, #tpu.memory_space<vmem>>, vector<62x16xf32>
    %117 = arith.maximumf %115, %116 : vector<62x16xf32>
    %c7 = arith.constant 7 : index
    %c0_149 = arith.constant 0 : index
    %118 = tpu.strided_load %arg19[%c7, %c0_149] {strides = array<i32: 8, 1>} : memref<500x16xf32, #tpu.memory_space<vmem>>, vector<62x16xf32>
    %119 = arith.maximumf %117, %118 : vector<62x16xf32>
    %cst_150 = arith.constant 0.000000e+00 : f32
    %120 = vector.broadcast %cst_150 : f32 to vector<3x16xf32>
    %c0_151 = arith.constant 0 : index
    %c0_152 = arith.constant 0 : index
    %121 = vector.load %arg20[%c0_151, %c0_152] : memref<68x16xf32, #tpu.memory_space<vmem>>, vector<3x16xf32>
    tpu.vector_store %arg20[%c0_151, %c0_152], %120 {strides = array<i32>} : memref<68x16xf32, #tpu.memory_space<vmem>>, vector<3x16xf32>,
    %cst_153 = arith.constant 0.000000e+00 : f32
    %122 = vector.broadcast %cst_153 : f32 to vector<3x16xf32>
    %c65 = arith.constant 65 : index
    %c0_154 = arith.constant 0 : index
    %123 = vector.load %arg20[%c65, %c0_154] : memref<68x16xf32, #tpu.memory_space<vmem>>, vector<3x16xf32>
    tpu.vector_store %arg20[%c65, %c0_154], %122 {strides = array<i32>} : memref<68x16xf32, #tpu.memory_space<vmem>>, vector<3x16xf32>,
    %c3_155 = arith.constant 3 : index
    %c0_156 = arith.constant 0 : index
    %124 = vector.load %arg20[%c3_155, %c0_156] : memref<68x16xf32, #tpu.memory_space<vmem>>, vector<62x16xf32>
    tpu.vector_store %arg20[%c3_155, %c0_156], %119 {strides = array<i32>} : memref<68x16xf32, #tpu.memory_space<vmem>>, vector<62x16xf32>,
    %c0_157 = arith.constant 0 : index
    %c0_158 = arith.constant 0 : index
    %125 = vector.load %arg20[%c0_157, %c0_158] : memref<68x16xf32, #tpu.memory_space<vmem>>, vector<61x16xf32>
    %c0_159 = arith.constant 0 : index
    %c0_160 = arith.constant 0 : index
    %126 = vector.load %arg23[%c0_159, %c0_160] : memref<61x256xf32, #tpu.memory_space<vmem>>, vector<61x16xf32>
    tpu.vector_store %arg23[%c0_159, %c0_160], %125 {strides = array<i32>} : memref<61x256xf32, #tpu.memory_space<vmem>>, vector<61x16xf32>,
    %c1_161 = arith.constant 1 : index
    %c0_162 = arith.constant 0 : index
    %127 = vector.load %arg20[%c1_161, %c0_162] : memref<68x16xf32, #tpu.memory_space<vmem>>, vector<61x16xf32>
    %c0_163 = arith.constant 0 : index
    %c16_164 = arith.constant 16 : index
    %128 = vector.load %arg23[%c0_163, %c16_164] : memref<61x256xf32, #tpu.memory_space<vmem>>, vector<61x16xf32>
    tpu.vector_store %arg23[%c0_163, %c16_164], %127 {strides = array<i32>} : memref<61x256xf32, #tpu.memory_space<vmem>>, vector<61x16xf32>,
    %c2_165 = arith.constant 2 : index
    %c0_166 = arith.constant 0 : index
    %129 = vector.load %arg20[%c2_165, %c0_166] : memref<68x16xf32, #tpu.memory_space<vmem>>, vector<61x16xf32>
    %c0_167 = arith.constant 0 : index
    %c32_168 = arith.constant 32 : index
    %130 = vector.load %arg23[%c0_167, %c32_168] : memref<61x256xf32, #tpu.memory_space<vmem>>, vector<61x16xf32>
    tpu.vector_store %arg23[%c0_167, %c32_168], %129 {strides = array<i32>} : memref<61x256xf32, #tpu.memory_space<vmem>>, vector<61x16xf32>,
    %c3_169 = arith.constant 3 : index
    %c0_170 = arith.constant 0 : index
    %131 = vector.load %arg20[%c3_169, %c0_170] : memref<68x16xf32, #tpu.memory_space<vmem>>, vector<61x16xf32>
    %c0_171 = arith.constant 0 : index
    %c48_172 = arith.constant 48 : index
    %132 = vector.load %arg23[%c0_171, %c48_172] : memref<61x256xf32, #tpu.memory_space<vmem>>, vector<61x16xf32>
    tpu.vector_store %arg23[%c0_171, %c48_172], %131 {strides = array<i32>} : memref<61x256xf32, #tpu.memory_space<vmem>>, vector<61x16xf32>,
    %c4_173 = arith.constant 4 : index
    %c0_174 = arith.constant 0 : index
    %133 = vector.load %arg20[%c4_173, %c0_174] : memref<68x16xf32, #tpu.memory_space<vmem>>, vector<61x16xf32>
    %c0_175 = arith.constant 0 : index
    %c64_176 = arith.constant 64 : index
    %134 = vector.load %arg23[%c0_175, %c64_176] : memref<61x256xf32, #tpu.memory_space<vmem>>, vector<61x16xf32>
    tpu.vector_store %arg23[%c0_175, %c64_176], %133 {strides = array<i32>} : memref<61x256xf32, #tpu.memory_space<vmem>>, vector<61x16xf32>,
    %c5_177 = arith.constant 5 : index
    %c0_178 = arith.constant 0 : index
    %135 = vector.load %arg20[%c5_177, %c0_178] : memref<68x16xf32, #tpu.memory_space<vmem>>, vector<61x16xf32>
    %c0_179 = arith.constant 0 : index
    %c80_180 = arith.constant 80 : index
    %136 = vector.load %arg23[%c0_179, %c80_180] : memref<61x256xf32, #tpu.memory_space<vmem>>, vector<61x16xf32>
    tpu.vector_store %arg23[%c0_179, %c80_180], %135 {strides = array<i32>} : memref<61x256xf32, #tpu.memory_space<vmem>>, vector<61x16xf32>,
    %c6_181 = arith.constant 6 : index
    %c0_182 = arith.constant 0 : index
    %137 = vector.load %arg20[%c6_181, %c0_182] : memref<68x16xf32, #tpu.memory_space<vmem>>, vector<61x16xf32>
    %c0_183 = arith.constant 0 : index
    %c96_184 = arith.constant 96 : index
    %138 = vector.load %arg23[%c0_183, %c96_184] : memref<61x256xf32, #tpu.memory_space<vmem>>, vector<61x16xf32>
    tpu.vector_store %arg23[%c0_183, %c96_184], %137 {strides = array<i32>} : memref<61x256xf32, #tpu.memory_space<vmem>>, vector<61x16xf32>,
    %c7_185 = arith.constant 7 : index
    %c0_186 = arith.constant 0 : index
    %139 = vector.load %arg20[%c7_185, %c0_186] : memref<68x16xf32, #tpu.memory_space<vmem>>, vector<61x16xf32>
    %c0_187 = arith.constant 0 : index
    %c112 = arith.constant 112 : index
    %140 = vector.load %arg23[%c0_187, %c112] : memref<61x256xf32, #tpu.memory_space<vmem>>, vector<61x16xf32>
    tpu.vector_store %arg23[%c0_187, %c112], %139 {strides = array<i32>} : memref<61x256xf32, #tpu.memory_space<vmem>>, vector<61x16xf32>,
    %c0_188 = arith.constant 0 : index
    %c0_189 = arith.constant 0 : index
    %141 = vector.load %arg23[%c0_188, %c0_189] : memref<61x256xf32, #tpu.memory_space<vmem>>, vector<61x128xf32>
    %c0_190 = arith.constant 0 : index
    %c0_191 = arith.constant 0 : index
    %142 = vector.load %arg8[%c0_190, %c0_191] : memref<128x32xf32, #tpu.memory_space<vmem>>, vector<128x32xf32>
    %cst_192 = arith.constant dense<0.000000e+00> : vector<61x32xf32>
    %143 = tpu.matmul %141, %142, %cst_192 {dimension_numbers = #tpu.dot_dimension_numbers<[1], [0], [0], [1], [0, 0, 1, 1], [], []>} : vector<61x128xf32>, vector<128x32xf32>, vector<61x32xf32> -> vector<61x32xf32>
    %c5_193 = arith.constant 5 : index
    %c0_194 = arith.constant 0 : index
    %144 = vector.load %arg11[%c5_193, %c0_194] : memref<8x32xf32, #tpu.memory_space<vmem>>, vector<1x32xf32>
    %145 = vector.broadcast %144 : vector<1x32xf32> to vector<61x32xf32>
    %146 = arith.addf %143, %145 : vector<61x32xf32>
    %cst_195 = arith.constant 0.000000e+00 : f32
    %147 = vector.broadcast %cst_195 : f32 to vector<61x32xf32>
    %148 = arith.maximumf %146, %147 : vector<61x32xf32>
    %cst_196 = arith.constant 0.000000e+00 : f32
    %149 = vector.broadcast %cst_196 : f32 to vector<3x32xf32>
    %c0_197 = arith.constant 0 : index
    %c0_198 = arith.constant 0 : index
    %150 = vector.load %arg21[%c0_197, %c0_198] : memref<67x32xf32, #tpu.memory_space<vmem>>, vector<3x32xf32>
    tpu.vector_store %arg21[%c0_197, %c0_198], %149 {strides = array<i32>} : memref<67x32xf32, #tpu.memory_space<vmem>>, vector<3x32xf32>,
    %cst_199 = arith.constant 0.000000e+00 : f32
    %151 = vector.broadcast %cst_199 : f32 to vector<3x32xf32>
    %c64_200 = arith.constant 64 : index
    %c0_201 = arith.constant 0 : index
    %152 = vector.load %arg21[%c64_200, %c0_201] : memref<67x32xf32, #tpu.memory_space<vmem>>, vector<3x32xf32>
    tpu.vector_store %arg21[%c64_200, %c0_201], %151 {strides = array<i32>} : memref<67x32xf32, #tpu.memory_space<vmem>>, vector<3x32xf32>,
    %c3_202 = arith.constant 3 : index
    %c0_203 = arith.constant 0 : index
    %153 = vector.load %arg21[%c3_202, %c0_203] : memref<67x32xf32, #tpu.memory_space<vmem>>, vector<61x32xf32>
    tpu.vector_store %arg21[%c3_202, %c0_203], %148 {strides = array<i32>} : memref<67x32xf32, #tpu.memory_space<vmem>>, vector<61x32xf32>,
    %c0_204 = arith.constant 0 : index
    %c0_205 = arith.constant 0 : index
    %154 = vector.load %arg21[%c0_204, %c0_205] : memref<67x32xf32, #tpu.memory_space<vmem>>, vector<60x32xf32>
    %c0_206 = arith.constant 0 : index
    %c0_207 = arith.constant 0 : index
    %155 = vector.load %arg23[%c0_206, %c0_207] : memref<61x256xf32, #tpu.memory_space<vmem>>, vector<60x32xf32>
    tpu.vector_store %arg23[%c0_206, %c0_207], %154 {strides = array<i32>} : memref<61x256xf32, #tpu.memory_space<vmem>>, vector<60x32xf32>,
    %c1_208 = arith.constant 1 : index
    %c0_209 = arith.constant 0 : index
    %156 = vector.load %arg21[%c1_208, %c0_209] : memref<67x32xf32, #tpu.memory_space<vmem>>, vector<60x32xf32>
    %c0_210 = arith.constant 0 : index
    %c32_211 = arith.constant 32 : index
    %157 = vector.load %arg23[%c0_210, %c32_211] : memref<61x256xf32, #tpu.memory_space<vmem>>, vector<60x32xf32>
    tpu.vector_store %arg23[%c0_210, %c32_211], %156 {strides = array<i32>} : memref<61x256xf32, #tpu.memory_space<vmem>>, vector<60x32xf32>,
    %c2_212 = arith.constant 2 : index
    %c0_213 = arith.constant 0 : index
    %158 = vector.load %arg21[%c2_212, %c0_213] : memref<67x32xf32, #tpu.memory_space<vmem>>, vector<60x32xf32>
    %c0_214 = arith.constant 0 : index
    %c64_215 = arith.constant 64 : index
    %159 = vector.load %arg23[%c0_214, %c64_215] : memref<61x256xf32, #tpu.memory_space<vmem>>, vector<60x32xf32>
    tpu.vector_store %arg23[%c0_214, %c64_215], %158 {strides = array<i32>} : memref<61x256xf32, #tpu.memory_space<vmem>>, vector<60x32xf32>,
    %c3_216 = arith.constant 3 : index
    %c0_217 = arith.constant 0 : index
    %160 = vector.load %arg21[%c3_216, %c0_217] : memref<67x32xf32, #tpu.memory_space<vmem>>, vector<60x32xf32>
    %c0_218 = arith.constant 0 : index
    %c96_219 = arith.constant 96 : index
    %161 = vector.load %arg23[%c0_218, %c96_219] : memref<61x256xf32, #tpu.memory_space<vmem>>, vector<60x32xf32>
    tpu.vector_store %arg23[%c0_218, %c96_219], %160 {strides = array<i32>} : memref<61x256xf32, #tpu.memory_space<vmem>>, vector<60x32xf32>,
    %c4_220 = arith.constant 4 : index
    %c0_221 = arith.constant 0 : index
    %162 = vector.load %arg21[%c4_220, %c0_221] : memref<67x32xf32, #tpu.memory_space<vmem>>, vector<60x32xf32>
    %c0_222 = arith.constant 0 : index
    %c128_223 = arith.constant 128 : index
    %163 = vector.load %arg23[%c0_222, %c128_223] : memref<61x256xf32, #tpu.memory_space<vmem>>, vector<60x32xf32>
    tpu.vector_store %arg23[%c0_222, %c128_223], %162 {strides = array<i32>} : memref<61x256xf32, #tpu.memory_space<vmem>>, vector<60x32xf32>,
    %c5_224 = arith.constant 5 : index
    %c0_225 = arith.constant 0 : index
    %164 = vector.load %arg21[%c5_224, %c0_225] : memref<67x32xf32, #tpu.memory_space<vmem>>, vector<60x32xf32>
    %c0_226 = arith.constant 0 : index
    %c160_227 = arith.constant 160 : index
    %165 = vector.load %arg23[%c0_226, %c160_227] : memref<61x256xf32, #tpu.memory_space<vmem>>, vector<60x32xf32>
    tpu.vector_store %arg23[%c0_226, %c160_227], %164 {strides = array<i32>} : memref<61x256xf32, #tpu.memory_space<vmem>>, vector<60x32xf32>,
    %c6_228 = arith.constant 6 : index
    %c0_229 = arith.constant 0 : index
    %166 = vector.load %arg21[%c6_228, %c0_229] : memref<67x32xf32, #tpu.memory_space<vmem>>, vector<60x32xf32>
    %c0_230 = arith.constant 0 : index
    %c192 = arith.constant 192 : index
    %167 = vector.load %arg23[%c0_230, %c192] : memref<61x256xf32, #tpu.memory_space<vmem>>, vector<60x32xf32>
    tpu.vector_store %arg23[%c0_230, %c192], %166 {strides = array<i32>} : memref<61x256xf32, #tpu.memory_space<vmem>>, vector<60x32xf32>,
    %c7_231 = arith.constant 7 : index
    %c0_232 = arith.constant 0 : index
    %168 = vector.load %arg21[%c7_231, %c0_232] : memref<67x32xf32, #tpu.memory_space<vmem>>, vector<60x32xf32>
    %c0_233 = arith.constant 0 : index
    %c224 = arith.constant 224 : index
    %169 = vector.load %arg23[%c0_233, %c224] : memref<61x256xf32, #tpu.memory_space<vmem>>, vector<60x32xf32>
    tpu.vector_store %arg23[%c0_233, %c224], %168 {strides = array<i32>} : memref<61x256xf32, #tpu.memory_space<vmem>>, vector<60x32xf32>,
    %c0_234 = arith.constant 0 : index
    %c0_235 = arith.constant 0 : index
    %170 = vector.load %arg23[%c0_234, %c0_235] : memref<61x256xf32, #tpu.memory_space<vmem>>, vector<60x256xf32>
    %c0_236 = arith.constant 0 : index
    %c0_237 = arith.constant 0 : index
    %171 = vector.load %arg9[%c0_236, %c0_237] : memref<256x32xf32, #tpu.memory_space<vmem>>, vector<256x32xf32>
    %cst_238 = arith.constant dense<0.000000e+00> : vector<60x32xf32>
    %172 = tpu.matmul %170, %171, %cst_238 {dimension_numbers = #tpu.dot_dimension_numbers<[1], [0], [0], [1], [0, 0, 1, 1], [], []>} : vector<60x256xf32>, vector<256x32xf32>, vector<60x32xf32> -> vector<60x32xf32>
    %c6_239 = arith.constant 6 : index
    %c0_240 = arith.constant 0 : index
    %173 = vector.load %arg11[%c6_239, %c0_240] : memref<8x32xf32, #tpu.memory_space<vmem>>, vector<1x32xf32>
    %174 = vector.broadcast %173 : vector<1x32xf32> to vector<60x32xf32>
    %175 = arith.addf %172, %174 : vector<60x32xf32>
    %cst_241 = arith.constant 0.000000e+00 : f32
    %176 = vector.broadcast %cst_241 : f32 to vector<60x32xf32>
    %177 = arith.maximumf %175, %176 : vector<60x32xf32>
    %cst_242 = arith.constant 0.000000e+00 : f32
    %178 = vector.broadcast %cst_242 : f32 to vector<3x32xf32>
    %c0_243 = arith.constant 0 : index
    %c0_244 = arith.constant 0 : index
    %179 = vector.load %arg22[%c0_243, %c0_244] : memref<66x32xf32, #tpu.memory_space<vmem>>, vector<3x32xf32>
    tpu.vector_store %arg22[%c0_243, %c0_244], %178 {strides = array<i32>} : memref<66x32xf32, #tpu.memory_space<vmem>>, vector<3x32xf32>,
    %cst_245 = arith.constant 0.000000e+00 : f32
    %180 = vector.broadcast %cst_245 : f32 to vector<3x32xf32>
    %c63 = arith.constant 63 : index
    %c0_246 = arith.constant 0 : index
    %181 = vector.load %arg22[%c63, %c0_246] : memref<66x32xf32, #tpu.memory_space<vmem>>, vector<3x32xf32>
    tpu.vector_store %arg22[%c63, %c0_246], %180 {strides = array<i32>} : memref<66x32xf32, #tpu.memory_space<vmem>>, vector<3x32xf32>,
    %c3_247 = arith.constant 3 : index
    %c0_248 = arith.constant 0 : index
    %182 = vector.load %arg22[%c3_247, %c0_248] : memref<66x32xf32, #tpu.memory_space<vmem>>, vector<60x32xf32>
    tpu.vector_store %arg22[%c3_247, %c0_248], %177 {strides = array<i32>} : memref<66x32xf32, #tpu.memory_space<vmem>>, vector<60x32xf32>,
    %c0_249 = arith.constant 0 : index
    %c0_250 = arith.constant 0 : index
    %183 = vector.load %arg22[%c0_249, %c0_250] : memref<66x32xf32, #tpu.memory_space<vmem>>, vector<59x32xf32>
    %c0_251 = arith.constant 0 : index
    %c0_252 = arith.constant 0 : index
    %184 = vector.load %arg23[%c0_251, %c0_252] : memref<61x256xf32, #tpu.memory_space<vmem>>, vector<59x32xf32>
    tpu.vector_store %arg23[%c0_251, %c0_252], %183 {strides = array<i32>} : memref<61x256xf32, #tpu.memory_space<vmem>>, vector<59x32xf32>,
    %c1_253 = arith.constant 1 : index
    %c0_254 = arith.constant 0 : index
    %185 = vector.load %arg22[%c1_253, %c0_254] : memref<66x32xf32, #tpu.memory_space<vmem>>, vector<59x32xf32>
    %c0_255 = arith.constant 0 : index
    %c32_256 = arith.constant 32 : index
    %186 = vector.load %arg23[%c0_255, %c32_256] : memref<61x256xf32, #tpu.memory_space<vmem>>, vector<59x32xf32>
    tpu.vector_store %arg23[%c0_255, %c32_256], %185 {strides = array<i32>} : memref<61x256xf32, #tpu.memory_space<vmem>>, vector<59x32xf32>,
    %c2_257 = arith.constant 2 : index
    %c0_258 = arith.constant 0 : index
    %187 = vector.load %arg22[%c2_257, %c0_258] : memref<66x32xf32, #tpu.memory_space<vmem>>, vector<59x32xf32>
    %c0_259 = arith.constant 0 : index
    %c64_260 = arith.constant 64 : index
    %188 = vector.load %arg23[%c0_259, %c64_260] : memref<61x256xf32, #tpu.memory_space<vmem>>, vector<59x32xf32>
    tpu.vector_store %arg23[%c0_259, %c64_260], %187 {strides = array<i32>} : memref<61x256xf32, #tpu.memory_space<vmem>>, vector<59x32xf32>,
    %c3_261 = arith.constant 3 : index
    %c0_262 = arith.constant 0 : index
    %189 = vector.load %arg22[%c3_261, %c0_262] : memref<66x32xf32, #tpu.memory_space<vmem>>, vector<59x32xf32>
    %c0_263 = arith.constant 0 : index
    %c96_264 = arith.constant 96 : index
    %190 = vector.load %arg23[%c0_263, %c96_264] : memref<61x256xf32, #tpu.memory_space<vmem>>, vector<59x32xf32>
    tpu.vector_store %arg23[%c0_263, %c96_264], %189 {strides = array<i32>} : memref<61x256xf32, #tpu.memory_space<vmem>>, vector<59x32xf32>,
    %c4_265 = arith.constant 4 : index
    %c0_266 = arith.constant 0 : index
    %191 = vector.load %arg22[%c4_265, %c0_266] : memref<66x32xf32, #tpu.memory_space<vmem>>, vector<59x32xf32>
    %c0_267 = arith.constant 0 : index
    %c128_268 = arith.constant 128 : index
    %192 = vector.load %arg23[%c0_267, %c128_268] : memref<61x256xf32, #tpu.memory_space<vmem>>, vector<59x32xf32>
    tpu.vector_store %arg23[%c0_267, %c128_268], %191 {strides = array<i32>} : memref<61x256xf32, #tpu.memory_space<vmem>>, vector<59x32xf32>,
    %c5_269 = arith.constant 5 : index
    %c0_270 = arith.constant 0 : index
    %193 = vector.load %arg22[%c5_269, %c0_270] : memref<66x32xf32, #tpu.memory_space<vmem>>, vector<59x32xf32>
    %c0_271 = arith.constant 0 : index
    %c160_272 = arith.constant 160 : index
    %194 = vector.load %arg23[%c0_271, %c160_272] : memref<61x256xf32, #tpu.memory_space<vmem>>, vector<59x32xf32>
    tpu.vector_store %arg23[%c0_271, %c160_272], %193 {strides = array<i32>} : memref<61x256xf32, #tpu.memory_space<vmem>>, vector<59x32xf32>,
    %c6_273 = arith.constant 6 : index
    %c0_274 = arith.constant 0 : index
    %195 = vector.load %arg22[%c6_273, %c0_274] : memref<66x32xf32, #tpu.memory_space<vmem>>, vector<59x32xf32>
    %c0_275 = arith.constant 0 : index
    %c192_276 = arith.constant 192 : index
    %196 = vector.load %arg23[%c0_275, %c192_276] : memref<61x256xf32, #tpu.memory_space<vmem>>, vector<59x32xf32>
    tpu.vector_store %arg23[%c0_275, %c192_276], %195 {strides = array<i32>} : memref<61x256xf32, #tpu.memory_space<vmem>>, vector<59x32xf32>,
    %c7_277 = arith.constant 7 : index
    %c0_278 = arith.constant 0 : index
    %197 = vector.load %arg22[%c7_277, %c0_278] : memref<66x32xf32, #tpu.memory_space<vmem>>, vector<59x32xf32>
    %c0_279 = arith.constant 0 : index
    %c224_280 = arith.constant 224 : index
    %198 = vector.load %arg23[%c0_279, %c224_280] : memref<61x256xf32, #tpu.memory_space<vmem>>, vector<59x32xf32>
    tpu.vector_store %arg23[%c0_279, %c224_280], %197 {strides = array<i32>} : memref<61x256xf32, #tpu.memory_space<vmem>>, vector<59x32xf32>,
    %c0_281 = arith.constant 0 : index
    %c0_282 = arith.constant 0 : index
    %199 = vector.load %arg23[%c0_281, %c0_282] : memref<61x256xf32, #tpu.memory_space<vmem>>, vector<59x256xf32>
    %c0_283 = arith.constant 0 : index
    %c0_284 = arith.constant 0 : index
    %200 = vector.load %arg10[%c0_283, %c0_284] : memref<256x32xf32, #tpu.memory_space<vmem>>, vector<256x32xf32>
    %cst_285 = arith.constant dense<0.000000e+00> : vector<59x32xf32>
    %201 = tpu.matmul %199, %200, %cst_285 {dimension_numbers = #tpu.dot_dimension_numbers<[1], [0], [0], [1], [0, 0, 1, 1], [], []>} : vector<59x256xf32>, vector<256x32xf32>, vector<59x32xf32> -> vector<59x32xf32>
    %c7_286 = arith.constant 7 : index
    %c0_287 = arith.constant 0 : index
    %202 = vector.load %arg11[%c7_286, %c0_287] : memref<8x32xf32, #tpu.memory_space<vmem>>, vector<1x32xf32>
    %203 = vector.broadcast %202 : vector<1x32xf32> to vector<59x32xf32>
    %204 = arith.addf %201, %203 : vector<59x32xf32>
    %cst_288 = arith.constant 0.000000e+00 : f32
    %205 = vector.broadcast %cst_288 : f32 to vector<59x32xf32>
    %206 = arith.maximumf %204, %205 : vector<59x32xf32>
    %c0_289 = arith.constant 0 : index
    %c0_290 = arith.constant 0 : index
    %c0_291 = arith.constant 0 : index
    %207 = vector.load %arg13[%c0_289, %c0_290, %c0_291] : memref<1x59x32xf32, #tpu.memory_space<vmem>>, vector<1x59x32xf32>
    %208 = vector.shape_cast %207 : vector<1x59x32xf32> to vector<59x32xf32>
    %209 = vector.shape_cast %206 : vector<59x32xf32> to vector<1x59x32xf32>
    tpu.vector_store %arg13[%c0_289, %c0_290, %c0_291], %209 {strides = array<i32>} : memref<1x59x32xf32, #tpu.memory_space<vmem>>, vector<1x59x32xf32>,
    return
  }
  func.func @transform_0(%arg0: i32) -> (i32, i32, i32) {
    %c0_i32 = arith.constant 0 : i32
    %c0_i32_0 = arith.constant 0 : i32
    %c0_i32_1 = arith.constant 0 : i32
    return %arg0, %c0_i32, %c0_i32_0 : i32, i32, i32
  }
  func.func @transform_1(%arg0: i32) -> (i32, i32, i32) {
    %c0_i32 = arith.constant 0 : i32
    %c0_i32_0 = arith.constant 0 : i32
    %c0_i32_1 = arith.constant 0 : i32
    return %arg0, %c0_i32, %c0_i32_0 : i32, i32, i32
  }
  func.func @transform_2(%arg0: i32) -> (i32, i32) {
    %c0_i32 = arith.constant 0 : i32
    %c0_i32_0 = arith.constant 0 : i32
    %c0_i32_1 = arith.constant 0 : i32
    return %c0_i32, %c0_i32_0 : i32, i32
  }
  func.func @transform_3(%arg0: i32) -> (i32, i32) {
    %c0_i32 = arith.constant 0 : i32
    %c0_i32_0 = arith.constant 0 : i32
    %c0_i32_1 = arith.constant 0 : i32
    return %c0_i32, %c0_i32_0 : i32, i32
  }
  func.func @transform_4(%arg0: i32) -> (i32, i32) {
    %c0_i32 = arith.constant 0 : i32
    %c0_i32_0 = arith.constant 0 : i32
    %c0_i32_1 = arith.constant 0 : i32
    return %c0_i32, %c0_i32_0 : i32, i32
  }
  func.func @transform_5(%arg0: i32) -> (i32, i32) {
    %c0_i32 = arith.constant 0 : i32
    %c0_i32_0 = arith.constant 0 : i32
    %c0_i32_1 = arith.constant 0 : i32
    return %c0_i32, %c0_i32_0 : i32, i32
  }
  func.func @transform_6(%arg0: i32) -> (i32, i32) {
    %c0_i32 = arith.constant 0 : i32
    %c0_i32_0 = arith.constant 0 : i32
    %c0_i32_1 = arith.constant 0 : i32
    return %c0_i32, %c0_i32_0 : i32, i32
  }
  func.func @transform_7(%arg0: i32) -> (i32, i32) {
    %c0_i32 = arith.constant 0 : i32
    %c0_i32_0 = arith.constant 0 : i32
    %c0_i32_1 = arith.constant 0 : i32
    return %c0_i32, %c0_i32_0 : i32, i32
  }
  func.func @transform_8(%arg0: i32) -> (i32, i32) {
    %c0_i32 = arith.constant 0 : i32
    %c0_i32_0 = arith.constant 0 : i32
    %c0_i32_1 = arith.constant 0 : i32
    return %c0_i32, %c0_i32_0 : i32, i32
  }
  func.func @transform_9(%arg0: i32) -> (i32, i32) {
    %c0_i32 = arith.constant 0 : i32
    %c0_i32_0 = arith.constant 0 : i32
    %c0_i32_1 = arith.constant 0 : i32
    return %c0_i32, %c0_i32_0 : i32, i32
  }
  func.func @transform_10(%arg0: i32) -> (i32, i32) {
    %c0_i32 = arith.constant 0 : i32
    %c0_i32_0 = arith.constant 0 : i32
    %c0_i32_1 = arith.constant 0 : i32
    return %c0_i32, %c0_i32_0 : i32, i32
  }
  func.func @transform_11(%arg0: i32) -> (i32, i32, i32) {
    %c0_i32 = arith.constant 0 : i32
    %c0_i32_0 = arith.constant 0 : i32
    %c0_i32_1 = arith.constant 0 : i32
    return %arg0, %c0_i32, %c0_i32_0 : i32, i32, i32
  }
  func.func @transform_12(%arg0: i32) -> (i32, i32, i32) {
    %c0_i32 = arith.constant 0 : i32
    %c0_i32_0 = arith.constant 0 : i32
    %c0_i32_1 = arith.constant 0 : i32
    return %arg0, %c0_i32, %c0_i32_0 : i32, i32, i32
  }
}

</mosaic_0001>

<llo_original>
// kernel: deepsleepnet_feature_extractor.1
$region0: #{deepsleepnet_feature_extractor.1}
  #allocation0 [shape = 'u32[]', space=smem, size = 0x4, offset = 0x4, fixed_abs, tag = 'smem constant byte address 0x4 - core index']
  #allocation1 [shape = 'u32[144,128]{1,0:T(1,128)}', space=vmem, size = 0x12000, scoped, tag = 'internal scratch']
  #allocation2 [shape = 'f32[60,16]{1,0:T(8,128)}', space=vmem, size = 0x8000, scoped, tag = 'scratch operand']
  #allocation3 [shape = 'f32[19,16]{1,0:T(8,128)}', space=vmem, size = 0x3000, scoped, tag = 'scratch operand']
  #allocation4 [shape = 'f32[18,32]{1,0:T(8,128)}', space=vmem, size = 0x3000, scoped, tag = 'scratch operand']
  #allocation5 [shape = 'f32[17,32]{1,0:T(8,128)}', space=vmem, size = 0x3000, scoped, tag = 'scratch operand']
  #allocation6 [shape = 'f32[14,192]{1,0:T(8,128)}', space=vmem, size = 0x4000, scoped, tag = 'scratch operand']
  #allocation7 [shape = 'f32[500,16]{1,0:T(8,128)}', space=vmem, size = 0x3f000, scoped, tag = 'scratch operand']
  #allocation8 [shape = 'f32[68,16]{1,0:T(8,128)}', space=vmem, size = 0x9000, scoped, tag = 'scratch operand']
  #allocation9 [shape = 'f32[67,32]{1,0:T(8,128)}', space=vmem, size = 0x9000, scoped, tag = 'scratch operand']
  #allocation10 [shape = 'f32[66,32]{1,0:T(8,128)}', space=vmem, size = 0x9000, scoped, tag = 'scratch operand']
  #allocation11 [shape = 'f32[61,256]{1,0:T(8,128)}', space=vmem, size = 0x10000, scoped, tag = 'scratch operand']
  %s0 = inlined_call_operand.vmem [shape: f32[2,60,400], index: 0, kind: input, shape index: {}]
  %s1 = inlined_call_operand.vmem [shape: f32[2,500,54], index: 1, kind: input, shape index: {}]
  %s2 = inlined_call_operand.vmem [shape: f32[400,16], index: 2, kind: input, shape index: {}]
  %s3 = inlined_call_operand.vmem [shape: f32[96,32], index: 3, kind: input, shape index: {}]
  %s4 = inlined_call_operand.vmem [shape: f32[192,32], index: 4, kind: input, shape index: {}]
  %s5 = inlined_call_operand.vmem [shape: f32[192,32], index: 5, kind: input, shape index: {}]
  %s6 = inlined_call_operand.vmem [shape: f32[54,16], index: 6, kind: input, shape index: {}]
  %s7 = inlined_call_operand.vmem [shape: f32[128,32], index: 7, kind: input, shape index: {}]
  %s8 = inlined_call_operand.vmem [shape: f32[256,32], index: 8, kind: input, shape index: {}]
  %s9 = inlined_call_operand.vmem [shape: f32[256,32], index: 9, kind: input, shape index: {}]
  %s10 = inlined_call_operand.vmem [shape: f32[8,32], index: 10, kind: input, shape index: {}]
  %s11 = inlined_call_operand.vmem [shape: f32[2,12,32], index: 11, kind: output, shape index: {0}]
  %s12 = inlined_call_operand.vmem [shape: f32[2,59,32], index: 12, kind: output, shape index: {1}]
  %13 = xla_tuple %s11, %s12
  %s14 = sld [smem:[#allocation0]]
  $region85: #{deepsleepnet_feature_extractor.1} parent=0
    _
  %s16 = ssub.s32 1, %s14
  %s17 = scalar_select 0, %s16, %s14
  loop: start=0, step=1, limit=4
  $region2: #{deepsleepnet_feature_extractor.1} parent=0 // loop_pre_header
    _
  $region3: #{deepsleepnet_feature_extractor.1} parent=0 // loop_header
    %s19 = sphi 0, %s23
    %p20 = scmp.ge.s32.totalorder %s19, 4
    %s29 = sphi 0, %s31
    %s32 = sphi 0, %s29
    %s33 = sphi 0, %s32
    %s49 = sphi 0, %s33
    %s55 = sphi 0, %s57
    %s58 = sphi 0, %s55
    %s59 = sphi 0, %s58
    %s75 = sphi 0, %s59
    %s79 = sphi 0, %s79
    %s81 = sphi 0, %s79
    %s82 = sphi 0, %s81
    %s96 = sphi 0, %s82
    %s100 = sphi 0, %s100
    %s102 = sphi 0, %s100
    %s103 = sphi 0, %s102
    %s117 = sphi 0, %s103
    %s121 = sphi 0, %s121
    %s123 = sphi 0, %s121
    %s124 = sphi 0, %s123
    %s138 = sphi 0, %s124
    %s142 = sphi 0, %s142
    %s144 = sphi 0, %s142
    %s145 = sphi 0, %s144
    %s159 = sphi 0, %s145
    %s163 = sphi 0, %s163
    %s165 = sphi 0, %s163
    %s166 = sphi 0, %s165
    %s180 = sphi 0, %s166
    %s184 = sphi 0, %s184
    %s186 = sphi 0, %s184
    %s187 = sphi 0, %s186
    %s201 = sphi 0, %s187
    %s205 = sphi 0, %s205
    %s207 = sphi 0, %s205
    %s208 = sphi 0, %s207
    %s222 = sphi 0, %s208
    %s226 = sphi 0, %s226
    %s228 = sphi 0, %s226
    %s229 = sphi 0, %s228
    %s243 = sphi 0, %s229
    %s247 = sphi 0, %s247
    %s249 = sphi 0, %s247
    %s250 = sphi 0, %s249
    %s264 = sphi 0, %s250
    %s270 = sphi 0, %s272
    %s273 = sphi 0, %s270
    %s274 = sphi 0, %s273
    %s290 = sphi 0, %s274
    %s296 = sphi 0, %s298
    %s299 = sphi 0, %s296
    %s300 = sphi 0, %s299
    %s316 = sphi 0, %s300
  $region4: #{deepsleepnet_feature_extractor.1} parent=0 // loop_header_branch
    %22 = sbr.rel (%p20) target = $region8
  $region5: #{deepsleepnet_feature_extractor.1} parent=0 // loop_body
    %s24 = ssub.s32 %s19, 1
    %s25 = ssub.s32 %s19, 2
    %s26 = sadd.s32 %s19, 1
    %s27 = ssub.s32 %s19, %s26
    %p28 = scmp.eq.s32.totalorder %s27, 0
    %s30 = sadd.s32 %s29, 1
    %s31 = scalar_select %p28, %s29, %s30
    %p34 = pneg %p28
    %p35 = scmp.eq.s32.totalorder %s19, 1
    %p36 = por %p34, %p35
    %p37 = scmp.ne.s32.totalorder %s29, %s32
    %p38 = scmp.eq.s32.totalorder %s19, 0
    %p39 = por %p37, %p38
    %p40 = scmp.ne.s32.totalorder %s29, %s32
    %p41 = scmp.eq.s32.totalorder %s24, 1
    %p42 = por %p40, %p41
    %p43 = scmp.ne.s32.totalorder %s32, %s33
    %p44 = scmp.eq.s32.totalorder %s24, 0
    %p45 = por %p43, %p44
    %p46 = scmp.ne.s32.totalorder %s32, %s33
    %p47 = scmp.eq.s32.totalorder %s25, 1
    %p48 = por %p46, %p47
    %p50 = scmp.ne.s32.totalorder %s33, %s49
    %p51 = scmp.eq.s32.totalorder %s25, 0
    %p52 = por %p50, %p51
    %s53 = ssub.s32 %s19, %s26
    %p54 = scmp.eq.s32.totalorder %s53, 0
    %s56 = sadd.s32 %s55, 1
    %s57 = scalar_select %p54, %s55, %s56
    %p60 = pneg %p54
    %p61 = scmp.eq.s32.totalorder %s19, 1
    %p62 = por %p60, %p61
    %p63 = scmp.ne.s32.totalorder %s55, %s58
    %p64 = scmp.eq.s32.totalorder %s19, 0
    %p65 = por %p63, %p64
    %p66 = scmp.ne.s32.totalorder %s55, %s58
    %p67 = scmp.eq.s32.totalorder %s24, 1
    %p68 = por %p66, %p67
    %p69 = scmp.ne.s32.totalorder %s58, %s59
    %p70 = scmp.eq.s32.totalorder %s24, 0
    %p71 = por %p69, %p70
    %p72 = scmp.ne.s32.totalorder %s58, %s59
    %p73 = scmp.eq.s32.totalorder %s25, 1
    %p74 = por %p72, %p73
    %p76 = scmp.ne.s32.totalorder %s59, %s75
    %p77 = scmp.eq.s32.totalorder %s25, 0
    %p78 = por %p76, %p77
    %s80 = sadd.s32 %s79, 1
    %p83 = scmp.eq.s32.totalorder %s19, 1
    %p84 = scmp.ne.s32.totalorder %s79, %s81
    %p85 = scmp.eq.s32.totalorder %s19, 0
    %p86 = por %p84, %p85
    %p87 = scmp.ne.s32.totalorder %s79, %s81
    %p88 = scmp.eq.s32.totalorder %s24, 1
    %p89 = por %p87, %p88
    %p90 = scmp.ne.s32.totalorder %s81, %s82
    %p91 = scmp.eq.s32.totalorder %s24, 0
    %p92 = por %p90, %p91
    %p93 = scmp.ne.s32.totalorder %s81, %s82
    %p94 = scmp.eq.s32.totalorder %s25, 1
    %p95 = por %p93, %p94
    %p97 = scmp.ne.s32.totalorder %s82, %s96
    %p98 = scmp.eq.s32.totalorder %s25, 0
    %p99 = por %p97, %p98
    %s101 = sadd.s32 %s100, 1
    %p104 = scmp.eq.s32.totalorder %s19, 1
    %p105 = scmp.ne.s32.totalorder %s100, %s102
    %p106 = scmp.eq.s32.totalorder %s19, 0
    %p107 = por %p105, %p106
    %p108 = scmp.ne.s32.totalorder %s100, %s102
    %p109 = scmp.eq.s32.totalorder %s24, 1
    %p110 = por %p108, %p109
    %p111 = scmp.ne.s32.totalorder %s102, %s103
    %p112 = scmp.eq.s32.totalorder %s24, 0
    %p113 = por %p111, %p112
    %p114 = scmp.ne.s32.totalorder %s102, %s103
    %p115 = scmp.eq.s32.totalorder %s25, 1
    %p116 = por %p114, %p115
    %p118 = scmp.ne.s32.totalorder %s103, %s117
    %p119 = scmp.eq.s32.totalorder %s25, 0
    %p120 = por %p118, %p119
    %s122 = sadd.s32 %s121, 1
    %p125 = scmp.eq.s32.totalorder %s19, 1
    %p126 = scmp.ne.s32.totalorder %s121, %s123
    %p127 = scmp.eq.s32.totalorder %s19, 0
    %p128 = por %p126, %p127
    %p129 = scmp.ne.s32.totalorder %s121, %s123
    %p130 = scmp.eq.s32.totalorder %s24, 1
    %p131 = por %p129, %p130
    %p132 = scmp.ne.s32.totalorder %s123, %s124
    %p133 = scmp.eq.s32.totalorder %s24, 0
    %p134 = por %p132, %p133
    %p135 = scmp.ne.s32.totalorder %s123, %s124
    %p136 = scmp.eq.s32.totalorder %s25, 1
    %p137 = por %p135, %p136
    %p139 = scmp.ne.s32.totalorder %s124, %s138
    %p140 = scmp.eq.s32.totalorder %s25, 0
    %p141 = por %p139, %p140
    %s143 = sadd.s32 %s142, 1
    %p146 = scmp.eq.s32.totalorder %s19, 1
    %p147 = scmp.ne.s32.totalorder %s142, %s144
    %p148 = scmp.eq.s32.totalorder %s19, 0
    %p149 = por %p147, %p148
    %p150 = scmp.ne.s32.totalorder %s142, %s144
    %p151 = scmp.eq.s32.totalorder %s24, 1
    %p152 = por %p150, %p151
    %p153 = scmp.ne.s32.totalorder %s144, %s145
    %p154 = scmp.eq.s32.totalorder %s24, 0
    %p155 = por %p153, %p154
    %p156 = scmp.ne.s32.totalorder %s144, %s145
    %p157 = scmp.eq.s32.totalorder %s25, 1
    %p158 = por %p156, %p157
    %p160 = scmp.ne.s32.totalorder %s145, %s159
    %p161 = scmp.eq.s32.totalorder %s25, 0
    %p162 = por %p160, %p161
    %s164 = sadd.s32 %s163, 1
    %p167 = scmp.eq.s32.totalorder %s19, 1
    %p168 = scmp.ne.s32.totalorder %s163, %s165
    %p169 = scmp.eq.s32.totalorder %s19, 0
    %p170 = por %p168, %p169
    %p171 = scmp.ne.s32.totalorder %s163, %s165
    %p172 = scmp.eq.s32.totalorder %s24, 1
    %p173 = por %p171, %p172
    %p174 = scmp.ne.s32.totalorder %s165, %s166
    %p175 = scmp.eq.s32.totalorder %s24, 0
    %p176 = por %p174, %p175
    %p177 = scmp.ne.s32.totalorder %s165, %s166
    %p178 = scmp.eq.s32.totalorder %s25, 1
    %p179 = por %p177, %p178
    %p181 = scmp.ne.s32.totalorder %s166, %s180
    %p182 = scmp.eq.s32.totalorder %s25, 0
    %p183 = por %p181, %p182
    %s185 = sadd.s32 %s184, 1
    %p188 = scmp.eq.s32.totalorder %s19, 1
    %p189 = scmp.ne.s32.totalorder %s184, %s186
    %p190 = scmp.eq.s32.totalorder %s19, 0
    %p191 = por %p189, %p190
    %p192 = scmp.ne.s32.totalorder %s184, %s186
    %p193 = scmp.eq.s32.totalorder %s24, 1
    %p194 = por %p192, %p193
    %p195 = scmp.ne.s32.totalorder %s186, %s187
    %p196 = scmp.eq.s32.totalorder %s24, 0
    %p197 = por %p195, %p196
    %p198 = scmp.ne.s32.totalorder %s186, %s187
    %p199 = scmp.eq.s32.totalorder %s25, 1
    %p200 = por %p198, %p199
    %p202 = scmp.ne.s32.totalorder %s187, %s201
    %p203 = scmp.eq.s32.totalorder %s25, 0
    %p204 = por %p202, %p203
    %s206 = sadd.s32 %s205, 1
    %p209 = scmp.eq.s32.totalorder %s19, 1
    %p210 = scmp.ne.s32.totalorder %s205, %s207
    %p211 = scmp.eq.s32.totalorder %s19, 0
    %p212 = por %p210, %p211
    %p213 = scmp.ne.s32.totalorder %s205, %s207
    %p214 = scmp.eq.s32.totalorder %s24, 1
    %p215 = por %p213, %p214
    %p216 = scmp.ne.s32.totalorder %s207, %s208
    %p217 = scmp.eq.s32.totalorder %s24, 0
    %p218 = por %p216, %p217
    %p219 = scmp.ne.s32.totalorder %s207, %s208
    %p220 = scmp.eq.s32.totalorder %s25, 1
    %p221 = por %p219, %p220
    %p223 = scmp.ne.s32.totalorder %s208, %s222
    %p224 = scmp.eq.s32.totalorder %s25, 0
    %p225 = por %p223, %p224
    %s227 = sadd.s32 %s226, 1
    %p230 = scmp.eq.s32.totalorder %s19, 1
    %p231 = scmp.ne.s32.totalorder %s226, %s228
    %p232 = scmp.eq.s32.totalorder %s19, 0
    %p233 = por %p231, %p232
    %p234 = scmp.ne.s32.totalorder %s226, %s228
    %p235 = scmp.eq.s32.totalorder %s24, 1
    %p236 = por %p234, %p235
    %p237 = scmp.ne.s32.totalorder %s228, %s229
    %p238 = scmp.eq.s32.totalorder %s24, 0
    %p239 = por %p237, %p238
    %p240 = scmp.ne.s32.totalorder %s228, %s229
    %p241 = scmp.eq.s32.totalorder %s25, 1
    %p242 = por %p240, %p241
    %p244 = scmp.ne.s32.totalorder %s229, %s243
    %p245 = scmp.eq.s32.totalorder %s25, 0
    %p246 = por %p244, %p245
    %s248 = sadd.s32 %s247, 1
    %p251 = scmp.eq.s32.totalorder %s19, 1
    %p252 = scmp.ne.s32.totalorder %s247, %s249
    %p253 = scmp.eq.s32.totalorder %s19, 0
    %p254 = por %p252, %p253
    %p255 = scmp.ne.s32.totalorder %s247, %s249
    %p256 = scmp.eq.s32.totalorder %s24, 1
    %p257 = por %p255, %p256
    %p258 = scmp.ne.s32.totalorder %s249, %s250
    %p259 = scmp.eq.s32.totalorder %s24, 0
    %p260 = por %p258, %p259
    %p261 = scmp.ne.s32.totalorder %s249, %s250
    %p262 = scmp.eq.s32.totalorder %s25, 1
    %p263 = por %p261, %p262
    %p265 = scmp.ne.s32.totalorder %s250, %s264
    %p266 = scmp.eq.s32.totalorder %s25, 0
    %p267 = por %p265, %p266
    %s268 = ssub.s32 %s19, %s26
    %p269 = scmp.eq.s32.totalorder %s268, 0
    %s271 = sadd.s32 %s270, 1
    %s272 = scalar_select %p269, %s270, %s271
    %p275 = pneg %p269
    %p276 = scmp.eq.s32.totalorder %s19, 1
    %p277 = por %p275, %p276
    %p278 = scmp.ne.s32.totalorder %s270, %s273
    %p279 = scmp.eq.s32.totalorder %s19, 0
    %p280 = por %p278, %p279
    %p281 = scmp.ne.s32.totalorder %s270, %s273
    %p282 = scmp.eq.s32.totalorder %s24, 1
    %p283 = por %p281, %p282
    %p284 = scmp.ne.s32.totalorder %s273, %s274
    %p285 = scmp.eq.s32.totalorder %s24, 0
    %p286 = por %p284, %p285
    %p287 = scmp.ne.s32.totalorder %s273, %s274
    %p288 = scmp.eq.s32.totalorder %s25, 1
    %p289 = por %p287, %p288
    %p291 = scmp.ne.s32.totalorder %s274, %s290
    %p292 = scmp.eq.s32.totalorder %s25, 0
    %p293 = por %p291, %p292
    %s294 = ssub.s32 %s19, %s26
    %p295 = scmp.eq.s32.totalorder %s294, 0
    %s297 = sadd.s32 %s296, 1
    %s298 = scalar_select %p295, %s296, %s297
    %p301 = pneg %p295
    %p302 = scmp.eq.s32.totalorder %s19, 1
    %p303 = por %p301, %p302
    %p304 = scmp.ne.s32.totalorder %s296, %s299
    %p305 = scmp.eq.s32.totalorder %s19, 0
    %p306 = por %p304, %p305
    %p307 = scmp.ne.s32.totalorder %s296, %s299
    %p308 = scmp.eq.s32.totalorder %s24, 1
    %p309 = por %p307, %p308
    %p310 = scmp.ne.s32.totalorder %s299, %s300
    %p311 = scmp.eq.s32.totalorder %s24, 0
    %p312 = por %p310, %p311
    %p313 = scmp.ne.s32.totalorder %s299, %s300
    %p314 = scmp.eq.s32.totalorder %s25, 1
    %p315 = por %p313, %p314
    %p317 = scmp.ne.s32.totalorder %s300, %s316
    %p318 = scmp.eq.s32.totalorder %s25, 0
    %p319 = por %p317, %p318
    %p320 = scmp.le.s32.totalorder 1, %s19
    %p321 = scmp.lt.s32.totalorder %s19, 3
    %p322 = pnand %p320, %p321
    %p323 = pneg %p322
    // Predicated region
    $region9: #{deepsleepnet_feature_extractor.1} parent=5 // pred_check
      _
    $region10: #{deepsleepnet_feature_extractor.1} parent=5 // pred_check_branch
      %325 = sbr.rel (%p322) target = $region12
    $region11: #{deepsleepnet_feature_extractor.1} parent=5 // pred_region
      %s326 = ssub.s32 %s19, 1
      // Predicated region
      $region13: #{deepsleepnet_feature_extractor.1} parent=11 // pred_check
        %p327 = pneg %p92
      $region14: #{deepsleepnet_feature_extractor.1} parent=11 // pred_check_branch
        %329 = sbr.rel (%p327) target = $region16
      $region15: #{deepsleepnet_feature_extractor.1} parent=11 // pred_region
        _
      $region16: #{deepsleepnet_feature_extractor.1} parent=11 // pred_fallthru
        _
      // Predicated region
      $region17: #{deepsleepnet_feature_extractor.1} parent=11 // pred_check
        %p330 = pneg %p113
      $region18: #{deepsleepnet_feature_extractor.1} parent=11 // pred_check_branch
        %332 = sbr.rel (%p330) target = $region20
      $region19: #{deepsleepnet_feature_extractor.1} parent=11 // pred_region
        _
      $region20: #{deepsleepnet_feature_extractor.1} parent=11 // pred_fallthru
        _
      // Predicated region
      $region21: #{deepsleepnet_feature_extractor.1} parent=11 // pred_check
        %p333 = pneg %p134
      $region22: #{deepsleepnet_feature_extractor.1} parent=11 // pred_check_branch
        %335 = sbr.rel (%p333) target = $region24
      $region23: #{deepsleepnet_feature_extractor.1} parent=11 // pred_region
        _
      $region24: #{deepsleepnet_feature_extractor.1} parent=11 // pred_fallthru
        _
      // Predicated region
      $region25: #{deepsleepnet_feature_extractor.1} parent=11 // pred_check
        %p336 = pneg %p155
      $region26: #{deepsleepnet_feature_extractor.1} parent=11 // pred_check_branch
        %338 = sbr.rel (%p336) target = $region28
      $region27: #{deepsleepnet_feature_extractor.1} parent=11 // pred_region
        _
      $region28: #{deepsleepnet_feature_extractor.1} parent=11 // pred_fallthru
        _
      // Predicated region
      $region29: #{deepsleepnet_feature_extractor.1} parent=11 // pred_check
        %p339 = pneg %p176
      $region30: #{deepsleepnet_feature_extractor.1} parent=11 // pred_check_branch
        %341 = sbr.rel (%p339) target = $region32
      $region31: #{deepsleepnet_feature_extractor.1} parent=11 // pred_region
        _
      $region32: #{deepsleepnet_feature_extractor.1} parent=11 // pred_fallthru
        _
      // Predicated region
      $region33: #{deepsleepnet_feature_extractor.1} parent=11 // pred_check
        %p342 = pneg %p197
      $region34: #{deepsleepnet_feature_extractor.1} parent=11 // pred_check_branch
        %344 = sbr.rel (%p342) target = $region36
      $region35: #{deepsleepnet_feature_extractor.1} parent=11 // pred_region
        _
      $region36: #{deepsleepnet_feature_extractor.1} parent=11 // pred_fallthru
        _
      // Predicated region
      $region37: #{deepsleepnet_feature_extractor.1} parent=11 // pred_check
        %p345 = pneg %p218
      $region38: #{deepsleepnet_feature_extractor.1} parent=11 // pred_check_branch
        %347 = sbr.rel (%p345) target = $region40
      $region39: #{deepsleepnet_feature_extractor.1} parent=11 // pred_region
        _
      $region40: #{deepsleepnet_feature_extractor.1} parent=11 // pred_fallthru
        _
      // Predicated region
      $region41: #{deepsleepnet_feature_extractor.1} parent=11 // pred_check
        %p348 = pneg %p239
      $region42: #{deepsleepnet_feature_extractor.1} parent=11 // pred_check_branch
        %350 = sbr.rel (%p348) target = $region44
      $region43: #{deepsleepnet_feature_extractor.1} parent=11 // pred_region
        _
      $region44: #{deepsleepnet_feature_extractor.1} parent=11 // pred_fallthru
        _
      // Predicated region
      $region45: #{deepsleepnet_feature_extractor.1} parent=11 // pred_check
        %p351 = pneg %p260
      $region46: #{deepsleepnet_feature_extractor.1} parent=11 // pred_check_branch
        %353 = sbr.rel (%p351) target = $region48
      $region47: #{deepsleepnet_feature_extractor.1} parent=11 // pred_region
        _
      $region48: #{deepsleepnet_feature_extractor.1} parent=11 // pred_fallthru
        _
    $region12: #{deepsleepnet_feature_extractor.1} parent=5 // pred_fallthru
      _
    %p354 = scmp.lt.s32.totalorder %s19, 2
    // Predicated region
    $region49: #{deepsleepnet_feature_extractor.1} parent=5 // pred_check
      %p355 = pneg %p354
    $region50: #{deepsleepnet_feature_extractor.1} parent=5 // pred_check_branch
      %357 = sbr.rel (%p355) target = $region52
    $region51: #{deepsleepnet_feature_extractor.1} parent=5 // pred_region
      // Predicated region
      $region53: #{deepsleepnet_feature_extractor.1} parent=51 // pred_check
        %p358 = pneg %p39
      $region54: #{deepsleepnet_feature_extractor.1} parent=51 // pred_check_branch
        %360 = sbr.rel (%p358) target = $region56
      $region55: #{deepsleepnet_feature_extractor.1} parent=51 // pred_region
        %p361 = scmp.lt.s32.totalorder %s19, 1
        %s362 = scalar_select %p361, %s19, 1
        %s363 = smul.addr %s362, 32
        %s364 = smul.addr %s363, 8
        %s365 = scalar_lea.vmem %s0, %s364
      $region56: #{deepsleepnet_feature_extractor.1} parent=51 // pred_fallthru
        _
      // Predicated region
      $region57: #{deepsleepnet_feature_extractor.1} parent=51 // pred_check
        %p366 = pneg %p65
      $region58: #{deepsleepnet_feature_extractor.1} parent=51 // pred_check_branch
        %368 = sbr.rel (%p366) target = $region60
      $region59: #{deepsleepnet_feature_extractor.1} parent=51 // pred_region
        %p369 = scmp.lt.s32.totalorder %s19, 1
        %s370 = scalar_select %p369, %s19, 1
        %s371 = smul.addr %s370, 63
        %s372 = smul.addr %s371, 8
        %s373 = scalar_lea.vmem %s1, %s372
      $region60: #{deepsleepnet_feature_extractor.1} parent=51 // pred_fallthru
        _
    $region52: #{deepsleepnet_feature_extractor.1} parent=5 // pred_fallthru
      _
    %p374 = scmp.le.s32.totalorder 1, %s19
    %p375 = scmp.lt.s32.totalorder %s19, 3
    %p376 = pnand %p374, %p375
    %p377 = pneg %p376
    // Predicated region
    $region61: #{deepsleepnet_feature_extractor.1} parent=5 // pred_check
      _
    $region62: #{deepsleepnet_feature_extractor.1} parent=5 // pred_check_branch
      %379 = sbr.rel (%p376) target = $region64
    $region63: #{deepsleepnet_feature_extractor.1} parent=5 // pred_region
      %s380 = ssub.s32 %s19, 1
      %p381 = scmp.lt.s32.totalorder %s24, 1
      %s382 = scalar_select %p381, %s24, 1
      %s383 = smul.addr %s382, 32
      %s384 = smul.addr %s383, 8
      %s385 = scalar_lea.vmem %s0, %s384
      %p386 = pneg %p45
      %p387 = pneg %p42
      %p388 = scmp.lt.s32.totalorder %s24, 1
      %s389 = scalar_select %p388, %s24, 1
      %s390 = smul.addr %s389, 63
      %s391 = smul.addr %s390, 8
      %s392 = scalar_lea.vmem %s1, %s391
      %p393 = pneg %p71
      %p394 = pneg %p68
      %p395 = pneg %p92
      %p396 = pneg %p89
      %p397 = pneg %p113
      %p398 = pneg %p110
      %p399 = pneg %p134
      %p400 = pneg %p131
      %p401 = pneg %p155
      %p402 = pneg %p152
      %p403 = pneg %p176
      %p404 = pneg %p173
      %p405 = pneg %p197
      %p406 = pneg %p194
      %p407 = pneg %p218
      %p408 = pneg %p215
      %p409 = pneg %p239
      %p410 = pneg %p236
      %p411 = pneg %p260
      %p412 = pneg %p257
      %p413 = pneg %p286
      %p414 = pneg %p283
      %p415 = scmp.lt.s32.totalorder %s24, 1
      %s416 = scalar_select %p415, %s24, 1
      %s417 = smul.addr %s416, 2
      %s418 = smul.addr %s417, 8
      %s419 = scalar_lea.vmem %s11, %s418
      %p420 = pneg %p312
      %p421 = pneg %p309
      %p422 = scmp.lt.s32.totalorder %s24, 1
      %s423 = scalar_select %p422, %s24, 1
      %s424 = smul.addr %s423, 8
      %s425 = smul.addr %s424, 8
      %s426 = scalar_lea.vmem %s12, %s425
      %p427 = scmp.lt.s32.totalorder %s24, 1
      %s428 = scalar_select %p427, %s24, 1
      %s429 = smul.addr %s428, 32
      %s430 = smul.addr %s429, 8
      %s431 = scalar_lea.vmem %s0, %s430
      %p432 = scmp.lt.s32.totalorder %s24, 1
      %s433 = scalar_select %p432, %s24, 1
      %s434 = smul.addr %s433, 63
      %s435 = smul.addr %s434, 8
      %s436 = scalar_lea.vmem %s1, %s435
      %p437 = scmp.lt.s32.totalorder %s24, 1
      %s438 = scalar_select %p437, %s24, 1
      %s439 = smul.addr %s438, 2
      %s440 = smul.addr %s439, 8
      %s441 = scalar_lea.vmem %s11, %s440
      %p442 = scmp.lt.s32.totalorder %s24, 1
      %s443 = scalar_select %p442, %s24, 1
      %s444 = smul.addr %s443, 8
      %s445 = smul.addr %s444, 8
      %s446 = scalar_lea.vmem %s12, %s445
      %v447 = vld [vmem:[%s431] sm:$0xff]
      %v448 = vld [vmem:[%s431 + $0x8] sm:$0xff]
      %v449 = vld [vmem:[%s431 + $0x10] sm:$0xff]
      %v450 = vld [vmem:[%s431 + $0x18] sm:$0xff]
      %v451 = vld [vmem:[%s431 + $0x20] sm:$0xff]
      %v452 = vld [vmem:[%s431 + $0x28] sm:$0xff]
      %v453 = vld [vmem:[%s431 + $0x30] sm:$0xff]
      %v454 = vld [vmem:[%s431 + $0x38] sm:$0xff]
      %v455 = vld [vmem:[%s431 + $0x40] sm:$0xff]
      %v456 = vld [vmem:[%s431 + $0x48] sm:$0xff]
      %v457 = vld [vmem:[%s431 + $0x50] sm:$0xff]
      %v458 = vld [vmem:[%s431 + $0x58] sm:$0xff]
      %v459 = vld [vmem:[%s431 + $0x60] sm:$0xff]
      %v460 = vld [vmem:[%s431 + $0x68] sm:$0xff]
      %v461 = vld [vmem:[%s431 + $0x70] sm:$0xff]
      %v462 = vld [vmem:[%s431 + $0x78] sm:$0xff]
      %v463 = vld [vmem:[%s431 + $0x80] sm:$0xff]
      %v464 = vld [vmem:[%s431 + $0x88] sm:$0xff]
      %v465 = vld [vmem:[%s431 + $0x90] sm:$0xff]
      %v466 = vld [vmem:[%s431 + $0x98] sm:$0xff]
      %v467 = vld [vmem:[%s431 + $0xa0] sm:$0xff]
      %v468 = vld [vmem:[%s431 + $0xa8] sm:$0xff]
      %v469 = vld [vmem:[%s431 + $0xb0] sm:$0xff]
      %v470 = vld [vmem:[%s431 + $0xb8] sm:$0xff]
      %v471 = vld [vmem:[%s431 + $0xc0] sm:$0xff]
      %v472 = vld [vmem:[%s431 + $0xc8] sm:$0xff]
      %v473 = vld [vmem:[%s431 + $0xd0] sm:$0xff]
      %v474 = vld [vmem:[%s431 + $0xd8] sm:$0xff]
      %v475 = vld [vmem:[%s431 + $0xe0] sm:$0xf]
      %v476 = vld [vmem:[%s431 + $0xe8] sm:$0xf]
      %v477 = vld [vmem:[%s431 + $0xf0] sm:$0xf]
      %v478 = vld [vmem:[%s431 + $0xf8] sm:$0xf]
      %v479 = vld [vmem:[%s2] sm:$0xff]
      %v480 = vld [vmem:[%s2 + $0x8] sm:$0xff]
      %v481 = vld [vmem:[%s2 + $0x10] sm:$0xff]
      %v482 = vld [vmem:[%s2 + $0x18] sm:$0xff]
      %v483 = vld [vmem:[%s2 + $0x20] sm:$0xff]
      %v484 = vld [vmem:[%s2 + $0x28] sm:$0xff]
      %v485 = vld [vmem:[%s2 + $0x30] sm:$0xff]
      %v486 = vld [vmem:[%s2 + $0x38] sm:$0xff]
      %v487 = vld [vmem:[%s2 + $0x40] sm:$0xff]
      %v488 = vld [vmem:[%s2 + $0x48] sm:$0xff]
      %v489 = vld [vmem:[%s2 + $0x50] sm:$0xff]
      %v490 = vld [vmem:[%s2 + $0x58] sm:$0xff]
      %v491 = vld [vmem:[%s2 + $0x60] sm:$0xff]
      %v492 = vld [vmem:[%s2 + $0x68] sm:$0xff]
      %v493 = vld [vmem:[%s2 + $0x70] sm:$0xff]
      %v494 = vld [vmem:[%s2 + $0x78] sm:$0xff]
      %v495 = vld [vmem:[%s2 + $0x80] sm:$0xff]
      %v496 = vld [vmem:[%s2 + $0x88] sm:$0xff]
      %v497 = vld [vmem:[%s2 + $0x90] sm:$0xff]
      %v498 = vld [vmem:[%s2 + $0x98] sm:$0xff]
      %v499 = vld [vmem:[%s2 + $0xa0] sm:$0xff]
      %v500 = vld [vmem:[%s2 + $0xa8] sm:$0xff]
      %v501 = vld [vmem:[%s2 + $0xb0] sm:$0xff]
      %v502 = vld [vmem:[%s2 + $0xb8] sm:$0xff]
      %v503 = vld [vmem:[%s2 + $0xc0] sm:$0xff]
      %v504 = vld [vmem:[%s2 + $0xc8] sm:$0xff]
      %v505 = vld [vmem:[%s2 + $0xd0] sm:$0xff]
      %v506 = vld [vmem:[%s2 + $0xd8] sm:$0xff]
      %v507 = vld [vmem:[%s2 + $0xe0] sm:$0xff]
      %v508 = vld [vmem:[%s2 + $0xe8] sm:$0xff]
      %v509 = vld [vmem:[%s2 + $0xf0] sm:$0xff]
      %v510 = vld [vmem:[%s2 + $0xf8] sm:$0xff]
      %v511 = vld [vmem:[%s2 + $0x100] sm:$0xff]
      %v512 = vld [vmem:[%s2 + $0x108] sm:$0xff]
      %v513 = vld [vmem:[%s2 + $0x110] sm:$0xff]
      %v514 = vld [vmem:[%s2 + $0x118] sm:$0xff]
      %v515 = vld [vmem:[%s2 + $0x120] sm:$0xff]
      %v516 = vld [vmem:[%s2 + $0x128] sm:$0xff]
      %v517 = vld [vmem:[%s2 + $0x130] sm:$0xff]
      %v518 = vld [vmem:[%s2 + $0x138] sm:$0xff]
      %v519 = vld [vmem:[%s2 + $0x140] sm:$0xff]
      %v520 = vld [vmem:[%s2 + $0x148] sm:$0xff]
      %v521 = vld [vmem:[%s2 + $0x150] sm:$0xff]
      %v522 = vld [vmem:[%s2 + $0x158] sm:$0xff]
      %v523 = vld [vmem:[%s2 + $0x160] sm:$0xff]
      %v524 = vld [vmem:[%s2 + $0x168] sm:$0xff]
      %v525 = vld [vmem:[%s2 + $0x170] sm:$0xff]
      %v526 = vld [vmem:[%s2 + $0x178] sm:$0xff]
      %v527 = vld [vmem:[%s2 + $0x180] sm:$0xff]
      %v528 = vld [vmem:[%s2 + $0x188] sm:$0xff]
      %v529 = vld [vmem:[%s10] sm:$0x1]
      %v530 = vlaneseq
      %v531 = vshrl.u32 %v530, 7
      %v532 = vsub.s32 0, %v531
      %v533 = vrot.slane %v529, %v532
      %vm534 = vcmask 130048
      %v536 = vsel %vm534, %v450, 0
      %v539 = vsel %vm534, %v454, 0
      %v542 = vsel %vm534, %v458, 0
      %v545 = vsel %vm534, %v462, 0
      %v548 = vsel %vm534, %v466, 0
      %v551 = vsel %vm534, %v470, 0
      %v554 = vsel %vm534, %v474, 0
      %v557 = vsel %vm534, %v478, 0
      %559 = vmatprep.subr.mxu0 0.0
      %560 = vmatpush1.msra.mxu0 %v479
      %561 = vmatprep.subr.mxu0 0.0
      %562 = vmatpush1.msra.mxu0 %v480
      %563 = vmatprep.subr.mxu0 0.0
      %564 = vmatpush1.msra.mxu0 %v481
      %565 = vmatprep.subr.mxu0 0.0
      %566 = vmatpush1.msra.mxu0 %v482
      %567 = vmatprep.subr.mxu0 0.0
      %568 = vmatpush1.msra.mxu0 %v483
      %569 = vmatprep.subr.mxu0 0.0
      %570 = vmatpush1.msra.mxu0 %v484
      %571 = vmatprep.subr.mxu0 0.0
      %572 = vmatpush1.msra.mxu0 %v485
      %573 = vmatprep.subr.mxu0 0.0
      %574 = vmatpush1.msra.mxu0 %v486
      %575 = vmatprep.subr.mxu0 0.0
      %576 = vmatpush1.msra.mxu0 %v487
      %577 = vmatprep.subr.mxu0 0.0
      %578 = vmatpush1.msra.mxu0 %v488
      %579 = vmatprep.subr.mxu0 0.0
      %580 = vmatpush1.msra.mxu0 %v489
      %581 = vmatprep.subr.mxu0 0.0
      %582 = vmatpush1.msra.mxu0 %v490
      %583 = vmatprep.subr.mxu0 0.0
      %584 = vmatpush1.msra.mxu0 %v491
      %585 = vmatprep.subr.mxu0 0.0
      %586 = vmatpush1.msra.mxu0 %v492
      %587 = vmatprep.subr.mxu0 0.0
      %588 = vmatpush1.msra.mxu0 %v493
      %589 = vmatprep.subr.mxu0 0.0
      %590 = vmatpush1.msra.mxu0 %v494
      %591 = vmatprep.subr.mxu0 0.0
      %592 = vmatpush1.msra.mxu0 %v495
      %593 = vmatprep.subr.mxu0 0.0
      %594 = vmatpush1.msra.mxu0 %v496
      %595 = vmatprep.subr.mxu0 0.0
      %596 = vmatpush1.msra.mxu0 %v497
      %597 = vmatprep.subr.mxu0 0.0
      %598 = vmatpush1.msra.mxu0 %v498
      %599 = vmatprep.subr.mxu0 0.0
      %600 = vmatpush1.msra.mxu0 %v499
      %601 = vmatprep.subr.mxu0 0.0
      %602 = vmatpush1.msra.mxu0 %v500
      %603 = vmatprep.subr.mxu0 0.0
      %604 = vmatpush1.msra.mxu0 %v501
      %605 = vmatprep.subr.mxu0 0.0
      %606 = vmatpush1.msra.mxu0 %v502
      %607 = vmatprep.subr.mxu0 0.0
      %608 = vmatpush1.msra.mxu0 %v503
      %609 = vmatprep.subr.mxu0 0.0
      %610 = vmatpush1.msra.mxu0 %v504
      %611 = vmatprep.subr.mxu0 0.0
      %612 = vmatpush1.msra.mxu0 %v505
      %613 = vmatprep.subr.mxu0 0.0
      %614 = vmatpush1.msra.mxu0 %v506
      %615 = vmatprep.subr.mxu0 0.0
      %616 = vmatpush1.msra.mxu0 %v507
      %617 = vmatprep.subr.mxu0 0.0
      %618 = vmatpush1.msra.mxu0 %v508
      %619 = vmatprep.subr.mxu0 0.0
      %620 = vmatpush1.msra.mxu0 %v509
      %621 = vmatprep.subr.mxu0 0.0
      %622 = vmatpush1.msra.mxu0 %v510
      %623 = vmatprep.mubr.f32.mxu0 %v448
      %624 = vmatmul.mubr.f32.gmra.mrb[0].mxu0 %v447
      %v625 = vpop.f32.mrb[0].mxu0
      %v626 = vadd.f32 %v533, %v625
      %v627 = vpop.f32.mrb[0].mxu0
      %628 = vmatprep.mubr.f32.mxu0 %v452
      %629 = vmatmul.mubr.f32.gmra.mrb[0].mxu0 %v451
      %v630 = vpop.f32.mrb[0].mxu0
      %v631 = vadd.f32 %v533, %v630
      %v632 = vpop.f32.mrb[0].mxu0
      %633 = vmatprep.mubr.f32.mxu0 %v456
      %634 = vmatmul.mubr.f32.gmra.mrb[0].mxu0 %v455
      %v635 = vpop.f32.mrb[0].mxu0
      %v636 = vadd.f32 %v533, %v635
      %v637 = vpop.f32.mrb[0].mxu0
      %638 = vmatprep.mubr.f32.mxu0 %v460
      %639 = vmatmul.mubr.f32.gmra.mrb[0].mxu0 %v459
      %v640 = vpop.f32.mrb[0].mxu0
      %v641 = vadd.f32 %v533, %v640
      %v642 = vpop.f32.mrb[0].mxu0
      %643 = vmatprep.mubr.f32.mxu0 %v464
      %644 = vmatmul.mubr.f32.gmra.mrb[0].mxu0 %v463
      %v645 = vpop.f32.mrb[0].mxu0
      %v646 = vadd.f32 %v533, %v645
      %v647 = vpop.f32.mrb[0].mxu0
      %648 = vmatprep.mubr.f32.mxu0 %v468
      %649 = vmatmul.mubr.f32.gmra.mrb[0].mxu0 %v467
      %v650 = vpop.f32.mrb[0].mxu0
      %v651 = vadd.f32 %v533, %v650
      %v652 = vpop.f32.mrb[0].mxu0
      %653 = vmatprep.mubr.f32.mxu0 %v472
      %654 = vmatmul.mubr.f32.gmra.mrb[0].mxu0 %v471
      %v655 = vpop.f32.mrb[0].mxu0
      %v656 = vadd.f32 %v533, %v655
      %v657 = vpop.f32.mrb[0].mxu0
      %658 = vmatprep.mubr.f32.mxu0 %v476
      %659 = vmatmul.mubr.f32.gmra.mrb[0].mxu0 %v475
      %v660 = vpop.f32.mrb[0].mxu0
      %v661 = vadd.f32 %v533, %v660
      %v662 = vpop.f32.mrb[0].mxu0
      %663 = vdwg.mxu0
      %664 = vmatprep.subr.mxu0 0.0
      %665 = vmatpush1.msra.mxu0 %v511
      %666 = vmatprep.subr.mxu0 0.0
      %667 = vmatpush1.msra.mxu0 %v512
      %668 = vmatprep.subr.mxu0 0.0
      %669 = vmatpush1.msra.mxu0 %v513
      %670 = vmatprep.subr.mxu0 0.0
      %671 = vmatpush1.msra.mxu0 %v514
      %672 = vmatprep.subr.mxu0 0.0
      %673 = vmatpush1.msra.mxu0 %v515
      %674 = vmatprep.subr.mxu0 0.0
      %675 = vmatpush1.msra.mxu0 %v516
      %676 = vmatprep.subr.mxu0 0.0
      %677 = vmatpush1.msra.mxu0 %v517
      %678 = vmatprep.subr.mxu0 0.0
      %679 = vmatpush1.msra.mxu0 %v518
      %680 = vmatprep.subr.mxu0 0.0
      %681 = vmatpush1.msra.mxu0 %v519
      %682 = vmatprep.subr.mxu0 0.0
      %683 = vmatpush1.msra.mxu0 %v520
      %684 = vmatprep.subr.mxu0 0.0
      %685 = vmatpush1.msra.mxu0 %v521
      %686 = vmatprep.subr.mxu0 0.0
      %687 = vmatpush1.msra.mxu0 %v522
      %688 = vmatprep.subr.mxu0 0.0
      %689 = vmatpush1.msra.mxu0 %v523
      %690 = vmatprep.subr.mxu0 0.0
      %691 = vmatpush1.msra.mxu0 %v524
      %692 = vmatprep.subr.mxu0 0.0
      %693 = vmatpush1.msra.mxu0 %v525
      %694 = vmatprep.subr.mxu0 0.0
      %695 = vmatpush1.msra.mxu0 %v526
      %696 = vmatprep.subr.mxu0 0.0
      %697 = vmatpush1.msra.mxu0 %v527
      %698 = vmatprep.subr.mxu0 0.0
      %699 = vmatpush1.msra.mxu0 %v528
      %700 = vmatprep.subr.mxu0 0.0
      %701 = vmatpush1.msra.mxu0 0.0
      %702 = vmatprep.subr.mxu0 0.0
      %703 = vmatpush1.msra.mxu0 0.0
      %704 = vmatprep.subr.mxu0 0.0
      %705 = vmatpush1.msra.mxu0 0.0
      %706 = vmatprep.subr.mxu0 0.0
      %707 = vmatpush1.msra.mxu0 0.0
      %708 = vmatprep.subr.mxu0 0.0
      %709 = vmatpush1.msra.mxu0 0.0
      %710 = vmatprep.subr.mxu0 0.0
      %711 = vmatpush1.msra.mxu0 0.0
      %712 = vmatprep.subr.mxu0 0.0
      %713 = vmatpush1.msra.mxu0 0.0
      %714 = vmatprep.subr.mxu0 0.0
      %715 = vmatpush1.msra.mxu0 0.0
      %716 = vmatprep.subr.mxu0 0.0
      %717 = vmatpush1.msra.mxu0 0.0
      %718 = vmatprep.subr.mxu0 0.0
      %719 = vmatpush1.msra.mxu0 0.0
      %720 = vmatprep.subr.mxu0 0.0
      %721 = vmatpush1.msra.mxu0 0.0
      %722 = vmatprep.subr.mxu0 0.0
      %723 = vmatpush1.msra.mxu0 0.0
      %724 = vmatprep.subr.mxu0 0.0
      %725 = vmatpush1.msra.mxu0 0.0
      %726 = vmatprep.subr.mxu0 0.0
      %727 = vmatpush1.msra.mxu0 0.0
      %728 = vmatprep.mubr.f32.mxu0 %v536
      %729 = vmatmul.mubr.f32.gmra.mrb[0].mxu0 %v449
      %v730 = vpop.f32.mrb[0].mxu0
      %v731 = vadd.f32 %v626, %v730
      %v732 = vpop.f32.mrb[0].mxu0
      %733 = vmatprep.mubr.f32.mxu0 %v539
      %734 = vmatmul.mubr.f32.gmra.mrb[0].mxu0 %v453
      %v735 = vpop.f32.mrb[0].mxu0
      %v736 = vadd.f32 %v631, %v735
      %v737 = vpop.f32.mrb[0].mxu0
      %738 = vmatprep.mubr.f32.mxu0 %v542
      %739 = vmatmul.mubr.f32.gmra.mrb[0].mxu0 %v457
      %v740 = vpop.f32.mrb[0].mxu0
      %v741 = vadd.f32 %v636, %v740
      %v742 = vpop.f32.mrb[0].mxu0
      %743 = vmatprep.mubr.f32.mxu0 %v545
      %744 = vmatmul.mubr.f32.gmra.mrb[0].mxu0 %v461
      %v745 = vpop.f32.mrb[0].mxu0
      %v746 = vadd.f32 %v641, %v745
      %v747 = vpop.f32.mrb[0].mxu0
      %748 = vmatprep.mubr.f32.mxu0 %v548
      %749 = vmatmul.mubr.f32.gmra.mrb[0].mxu0 %v465
      %v750 = vpop.f32.mrb[0].mxu0
      %v751 = vadd.f32 %v646, %v750
      %v752 = vpop.f32.mrb[0].mxu0
      %753 = vmatprep.mubr.f32.mxu0 %v551
      %754 = vmatmul.mubr.f32.gmra.mrb[0].mxu0 %v469
      %v755 = vpop.f32.mrb[0].mxu0
      %v756 = vadd.f32 %v651, %v755
      %v757 = vpop.f32.mrb[0].mxu0
      %758 = vmatprep.mubr.f32.mxu0 %v554
      %759 = vmatmul.mubr.f32.gmra.mrb[0].mxu0 %v473
      %v760 = vpop.f32.mrb[0].mxu0
      %v761 = vadd.f32 %v656, %v760
      %v762 = vpop.f32.mrb[0].mxu0
      %763 = vmatprep.mubr.f32.mxu0 %v557
      %764 = vmatmul.mubr.f32.gmra.mrb[0].mxu0 %v477
      %v765 = vpop.f32.mrb[0].mxu0
      %v766 = vadd.f32 %v661, %v765
      %v767 = vpop.f32.mrb[0].mxu0
      %768 = vdwg.mxu0
      %v769 = vmax.f32 %v731, 0.0
      %v770 = vmax.f32 %v736, 0.0
      %v771 = vmax.f32 %v741, 0.0
      %v772 = vmax.f32 %v746, 0.0
      %v773 = vmax.f32 %v751, 0.0
      %v774 = vmax.f32 %v756, 0.0
      %v775 = vmax.f32 %v761, 0.0
      %v776 = vmax.f32 %v766, 0.0
      %777 = vst.msk [vmem:[#allocation2] sm:$0xff] %vm534, %v769
      %778 = vst.msk [vmem:[#allocation2 + $0x8] sm:$0xff] %vm534, %v770
      %779 = vst.msk [vmem:[#allocation2 + $0x10] sm:$0xff] %vm534, %v771
      %780 = vst.msk [vmem:[#allocation2 + $0x18] sm:$0xff] %vm534, %v772
      %781 = vst.msk [vmem:[#allocation2 + $0x20] sm:$0xff] %vm534, %v773
      %782 = vst.msk [vmem:[#allocation2 + $0x28] sm:$0xff] %vm534, %v774
      %783 = vst.msk [vmem:[#allocation2 + $0x30] sm:$0xff] %vm534, %v775
      %vm784 = vcmask 125952
      %785 = vst.msk [vmem:[#allocation2 + $0x38] sm:$0xf] %vm784, %v776
      %v786 = vld [vmem:[#allocation2] ss:$4 sm:$0xff]
      %s787 = scalar_lea.vmem [#allocation2], 32
      %v788 = vld [vmem:[%s787] ss:$4 sm:$0x7f]
      %s789 = scalar_lea.vmem [#allocation2], 1
      %v790 = vld [vmem:[%s789] ss:$4 sm:$0xff]
      %s791 = scalar_lea.vmem [#allocation2], 33
      %v792 = vld [vmem:[%s791] ss:$4 sm:$0x7f]
      %v793 = vmax.f32 %v786, %v790
      %v794 = vmax.f32 %v788, %v792
      %s795 = scalar_lea.vmem [#allocation2], 2
      %v796 = vld [vmem:[%s795] ss:$4 sm:$0xff]
      %s797 = scalar_lea.vmem [#allocation2], 34
      %v798 = vld [vmem:[%s797] ss:$4 sm:$0x7f]
      %v799 = vmax.f32 %v793, %v796
      %v800 = vmax.f32 %v794, %v798
      %s801 = scalar_lea.vmem [#allocation2], 3
      %v802 = vld [vmem:[%s801] ss:$4 sm:$0xff]
      %s803 = scalar_lea.vmem [#allocation2], 35
      %v804 = vld [vmem:[%s803] ss:$4 sm:$0x7f]
      %v805 = vmax.f32 %v799, %v802
      %v806 = vmax.f32 %v800, %v804
      %vm807 = vcmask 123904
      %808 = vst.msk [vmem:[#allocation3] sm:$0x3] %vm807, 0.0
      %809 = vst.msk [vmem:[#allocation3 + $0x11] sm:$0x3] %vm807, 0.0
      %810 = vst.msk [vmem:[#allocation3 + $0x2] sm:$0xff] %vm534, %v805
      %vm811 = vcmask 129024
      %812 = vst.msk [vmem:[#allocation3 + $0xa] sm:$0x7f] %vm811, %v806
      %v813 = vld [vmem:[#allocation3] sm:$0xff]
      %v814 = vld [vmem:[#allocation3 + $0x8] sm:$0x3f]
      %815 = vst.msk [vmem:[#allocation6] sm:$0xff] %vm534, %v813
      %vm816 = vcmask 128000
      %817 = vst.msk [vmem:[#allocation6 + $0x10] sm:$0x3f] %vm816, %v814
      %v818 = vld [vmem:[#allocation3 + $0x1] sm:$0xff]
      %v819 = vld [vmem:[#allocation3 + $0x9] sm:$0x3f]
      %822 = vrot.lane.b32.xlu0 %v818, 16
      %v823 = vpop.permute.xlu0 %822
      %824 = vrot.lane.b32.xlu0 %v819, 16
      %v825 = vpop.permute.xlu0 %824
      %vm828 = vcmask 261248
      %829 = vst.msk [vmem:[#allocation6] sm:$0xff] %vm828, %v823
      %vm830 = vcmask 259200
      %831 = vst.msk [vmem:[#allocation6 + $0x10] sm:$0x3f] %vm830, %v825
      %v832 = vld [vmem:[#allocation3 + $0x2] sm:$0xff]
      %v833 = vld [vmem:[#allocation3 + $0xa] sm:$0x3f]
      %836 = vrot.lane.b32.xlu0 %v832, 32
      %v837 = vpop.permute.xlu0 %836
      %838 = vrot.lane.b32.xlu0 %v833, 32
      %v839 = vpop.permute.xlu0 %838
      %vm842 = vcmask 392448
      %843 = vst.msk [vmem:[#allocation6] sm:$0xff] %vm842, %v837
      %vm844 = vcmask 390400
      %845 = vst.msk [vmem:[#allocation6 + $0x10] sm:$0x3f] %vm844, %v839
      %v846 = vld [vmem:[#allocation3 + $0x3] sm:$0xff]
      %v847 = vld [vmem:[#allocation3 + $0xb] sm:$0x3f]
      %850 = vrot.lane.b32.xlu0 %v846, 48
      %v851 = vpop.permute.xlu0 %850
      %852 = vrot.lane.b32.xlu0 %v847, 48
      %v853 = vpop.permute.xlu0 %852
      %vm856 = vcmask 523648
      %857 = vst.msk [vmem:[#allocation6] sm:$0xff] %vm856, %v851
      %vm858 = vcmask 521600
      %859 = vst.msk [vmem:[#allocation6 + $0x10] sm:$0x3f] %vm858, %v853
      %v860 = vld [vmem:[#allocation3 + $0x4] sm:$0xff]
      %v861 = vld [vmem:[#allocation3 + $0xc] sm:$0x3f]
      %864 = vrot.lane.b32.xlu0 %v860, 64
      %v865 = vpop.permute.xlu0 %864
      %866 = vrot.lane.b32.xlu0 %v861, 64
      %v867 = vpop.permute.xlu0 %866
      %vm870 = vcmask 654848
      %871 = vst.msk [vmem:[#allocation6] sm:$0xff] %vm870, %v865
      %vm872 = vcmask 652800
      %873 = vst.msk [vmem:[#allocation6 + $0x10] sm:$0x3f] %vm872, %v867
      %v874 = vld [vmem:[#allocation3 + $0x5] sm:$0xff]
      %v875 = vld [vmem:[#allocation3 + $0xd] sm:$0x3f]
      %878 = vrot.lane.b32.xlu0 %v874, 80
      %v879 = vpop.permute.xlu0 %878
      %880 = vrot.lane.b32.xlu0 %v875, 80
      %v881 = vpop.permute.xlu0 %880
      %vm884 = vcmask 786048
      %885 = vst.msk [vmem:[#allocation6] sm:$0xff] %vm884, %v879
      %vm886 = vcmask 784000
      %887 = vst.msk [vmem:[#allocation6 + $0x10] sm:$0x3f] %vm886, %v881
      %v888 = vld [vmem:[#allocation6] sm:$0xff]
      %v889 = vld [vmem:[#allocation6 + $0x10] sm:$0x3f]
      %v890 = vld [vmem:[%s3] sm:$0xff]
      %v891 = vld [vmem:[%s3 + $0x8] sm:$0xff]
      %v892 = vld [vmem:[%s3 + $0x10] sm:$0xff]
      %v893 = vld [vmem:[%s3 + $0x18] sm:$0xff]
      %v894 = vld [vmem:[%s3 + $0x20] sm:$0xff]
      %v895 = vld [vmem:[%s3 + $0x28] sm:$0xff]
      %v896 = vld [vmem:[%s3 + $0x30] sm:$0xff]
      %v897 = vld [vmem:[%s3 + $0x38] sm:$0xff]
      %v898 = vld [vmem:[%s3 + $0x40] sm:$0xff]
      %v899 = vld [vmem:[%s3 + $0x48] sm:$0xff]
      %v900 = vld [vmem:[%s3 + $0x50] sm:$0xff]
      %v901 = vld [vmem:[%s3 + $0x58] sm:$0xff]
      %v902 = vld [vmem:[%s10 + $0x1] sm:$0x1]
      %v903 = vlaneseq
      %v904 = vshrl.u32 %v903, 7
      %v905 = vsub.s32 0, %v904
      %v906 = vrot.slane %v902, %v905
      %vm907 = vcmask 785408
      %v909 = vsel %vm907, %v888, 0
      %v912 = vsel %vm907, %v889, 0
      %914 = vmatprep.subr.mxu0 0.0
      %915 = vmatpush1.msra.mxu0 %v890
      %916 = vmatprep.subr.mxu0 0.0
      %917 = vmatpush1.msra.mxu0 %v891
      %918 = vmatprep.subr.mxu0 0.0
      %919 = vmatpush1.msra.mxu0 %v892
      %920 = vmatprep.subr.mxu0 0.0
      %921 = vmatpush1.msra.mxu0 %v893
      %922 = vmatprep.subr.mxu0 0.0
      %923 = vmatpush1.msra.mxu0 %v894
      %924 = vmatprep.subr.mxu0 0.0
      %925 = vmatpush1.msra.mxu0 %v895
      %926 = vmatprep.subr.mxu0 0.0
      %927 = vmatpush1.msra.mxu0 %v896
      %928 = vmatprep.subr.mxu0 0.0
      %929 = vmatpush1.msra.mxu0 %v897
      %930 = vmatprep.subr.mxu0 0.0
      %931 = vmatpush1.msra.mxu0 %v898
      %932 = vmatprep.subr.mxu0 0.0
      %933 = vmatpush1.msra.mxu0 %v899
      %934 = vmatprep.subr.mxu0 0.0
      %935 = vmatpush1.msra.mxu0 %v900
      %936 = vmatprep.subr.mxu0 0.0
      %937 = vmatpush1.msra.mxu0 %v901
      %938 = vmatprep.subr.mxu0 0.0
      %939 = vmatpush1.msra.mxu0 0.0
      %940 = vmatprep.subr.mxu0 0.0
      %941 = vmatpush1.msra.mxu0 0.0
      %942 = vmatprep.subr.mxu0 0.0
      %943 = vmatpush1.msra.mxu0 0.0
      %944 = vmatprep.subr.mxu0 0.0
      %945 = vmatpush1.msra.mxu0 0.0
      %946 = vmatprep.subr.mxu0 0.0
      %947 = vmatpush1.msra.mxu0 0.0
      %948 = vmatprep.subr.mxu0 0.0
      %949 = vmatpush1.msra.mxu0 0.0
      %950 = vmatprep.subr.mxu0 0.0
      %951 = vmatpush1.msra.mxu0 0.0
      %952 = vmatprep.subr.mxu0 0.0
      %953 = vmatpush1.msra.mxu0 0.0
      %954 = vmatprep.subr.mxu0 0.0
      %955 = vmatpush1.msra.mxu0 0.0
      %956 = vmatprep.subr.mxu0 0.0
      %957 = vmatpush1.msra.mxu0 0.0
      %958 = vmatprep.subr.mxu0 0.0
      %959 = vmatpush1.msra.mxu0 0.0
      %960 = vmatprep.subr.mxu0 0.0
      %961 = vmatpush1.msra.mxu0 0.0
      %962 = vmatprep.subr.mxu0 0.0
      %963 = vmatpush1.msra.mxu0 0.0
      %964 = vmatprep.subr.mxu0 0.0
      %965 = vmatpush1.msra.mxu0 0.0
      %966 = vmatprep.subr.mxu0 0.0
      %967 = vmatpush1.msra.mxu0 0.0
      %968 = vmatprep.subr.mxu0 0.0
      %969 = vmatpush1.msra.mxu0 0.0
      %970 = vmatprep.subr.mxu0 0.0
      %971 = vmatpush1.msra.mxu0 0.0
      %972 = vmatprep.subr.mxu0 0.0
      %973 = vmatpush1.msra.mxu0 0.0
      %974 = vmatprep.subr.mxu0 0.0
      %975 = vmatpush1.msra.mxu0 0.0
      %976 = vmatprep.subr.mxu0 0.0
      %977 = vmatpush1.msra.mxu0 0.0
      %978 = vmatprep.mubr.f32.mxu0 0.0
      %979 = vmatmul.mubr.f32.gmra.mrb[0].mxu0 %v909
      %v980 = vpop.f32.mrb[0].mxu0
      %v981 = vadd.f32 %v906, %v980
      %v982 = vpop.f32.mrb[0].mxu0
      %983 = vmatprep.mubr.f32.mxu0 0.0
      %984 = vmatmul.mubr.f32.gmra.mrb[0].mxu0 %v912
      %v985 = vpop.f32.mrb[0].mxu0
      %v986 = vadd.f32 %v906, %v985
      %v987 = vpop.f32.mrb[0].mxu0
      %988 = vdwg.mxu0
      %v989 = vmax.f32 %v981, 0.0
      %v990 = vmax.f32 %v986, 0.0
      %vm991 = vcmask 254976
      %992 = vst.msk [vmem:[#allocation4] sm:$0x3] %vm991, 0.0
      %993 = vst.msk [vmem:[#allocation4 + $0x10] sm:$0x3] %vm991, 0.0
      %vm994 = vcmask 261120
      %995 = vst.msk [vmem:[#allocation4 + $0x2] sm:$0xff] %vm994, %v989
      %vm996 = vcmask 259072
      %997 = vst.msk [vmem:[#allocation4 + $0xa] sm:$0x3f] %vm996, %v990
      %v998 = vld [vmem:[#allocation4] sm:$0xff]
      %v999 = vld [vmem:[#allocation4 + $0x8] sm:$0x1f]
      %1000 = vst.msk [vmem:[#allocation6] sm:$0xff] %vm994, %v998
      %vm1001 = vcmask 258048
      %1002 = vst.msk [vmem:[#allocation6 + $0x10] sm:$0x1f] %vm1001, %v999
      %v1003 = vld [vmem:[#allocation4 + $0x1] sm:$0xff]
      %v1004 = vld [vmem:[#allocation4 + $0x9] sm:$0x1f]
      %1007 = vrot.lane.b32.xlu0 %v1003, 32
      %v1008 = vpop.permute.xlu0 %1007
      %1009 = vrot.lane.b32.xlu0 %v1004, 32
      %v1010 = vpop.permute.xlu0 %1009
      %vm1013 = vcmask 523520
      %1014 = vst.msk [vmem:[#allocation6] sm:$0xff] %vm1013, %v1008
      %vm1015 = vcmask 520448
      %1016 = vst.msk [vmem:[#allocation6 + $0x10] sm:$0x1f] %vm1015, %v1010
      %v1017 = vld [vmem:[#allocation4 + $0x2] sm:$0xff]
      %v1018 = vld [vmem:[#allocation4 + $0xa] sm:$0x1f]
      %1021 = vrot.lane.b32.xlu0 %v1017, 64
      %v1022 = vpop.permute.xlu0 %1021
      %1023 = vrot.lane.b32.xlu0 %v1018, 64
      %v1024 = vpop.permute.xlu0 %1023
      %vm1027 = vcmask 785920
      %1028 = vst.msk [vmem:[#allocation6] sm:$0xff] %vm1027, %v1022
      %vm1029 = vcmask 782848
      %1030 = vst.msk [vmem:[#allocation6 + $0x10] sm:$0x1f] %vm1029, %v1024
      %v1031 = vld [vmem:[#allocation4 + $0x3] sm:$0xff]
      %v1032 = vld [vmem:[#allocation4 + $0xb] sm:$0x1f]
      %1035 = vrot.lane.b32.xlu0 %v1031, 96
      %v1036 = vpop.permute.xlu0 %1035
      %1037 = vrot.lane.b32.xlu0 %v1032, 96
      %v1038 = vpop.permute.xlu0 %1037
      %vm1041 = vcmask 1048320
      %1042 = vst.msk [vmem:[#allocation6] sm:$0xff] %vm1041, %v1036
      %vm1043 = vcmask 1045248
      %1044 = vst.msk [vmem:[#allocation6 + $0x10] sm:$0x1f] %vm1043, %v1038
      %v1045 = vld [vmem:[#allocation4 + $0x4] sm:$0xff]
      %v1046 = vld [vmem:[#allocation4 + $0xc] sm:$0x1f]
      %1047 = vst.msk [vmem:[#allocation6 + $0x8] sm:$0xff] %vm994, %v1045
      %1048 = vst.msk [vmem:[#allocation6 + $0x18] sm:$0x1f] %vm1001, %v1046
      %v1049 = vld [vmem:[#allocation4 + $0x5] sm:$0xff]
      %v1050 = vld [vmem:[#allocation4 + $0xd] sm:$0x1f]
      %1053 = vrot.lane.b32.xlu0 %v1049, 32
      %v1054 = vpop.permute.xlu0 %1053
      %1055 = vrot.lane.b32.xlu0 %v1050, 32
      %v1056 = vpop.permute.xlu0 %1055
      %1059 = vst.msk [vmem:[#allocation6 + $0x8] sm:$0xff] %vm1013, %v1054
      %1060 = vst.msk [vmem:[#allocation6 + $0x18] sm:$0x1f] %vm1015, %v1056
      %v1061 = vld [vmem:[#allocation6] sm:$0xff]
      %v1062 = vld [vmem:[#allocation6 + $0x8] sm:$0xff]
      %v1063 = vld [vmem:[#allocation6 + $0x10] sm:$0x1f]
      %v1064 = vld [vmem:[#allocation6 + $0x18] sm:$0x1f]
      %v1065 = vld [vmem:[%s4] sm:$0xff]
      %v1066 = vld [vmem:[%s4 + $0x8] sm:$0xff]
      %v1067 = vld [vmem:[%s4 + $0x10] sm:$0xff]
      %v1068 = vld [vmem:[%s4 + $0x18] sm:$0xff]
      %v1069 = vld [vmem:[%s4 + $0x20] sm:$0xff]
      %v1070 = vld [vmem:[%s4 + $0x28] sm:$0xff]
      %v1071 = vld [vmem:[%s4 + $0x30] sm:$0xff]
      %v1072 = vld [vmem:[%s4 + $0x38] sm:$0xff]
      %v1073 = vld [vmem:[%s4 + $0x40] sm:$0xff]
      %v1074 = vld [vmem:[%s4 + $0x48] sm:$0xff]
      %v1075 = vld [vmem:[%s4 + $0x50] sm:$0xff]
      %v1076 = vld [vmem:[%s4 + $0x58] sm:$0xff]
      %v1077 = vld [vmem:[%s4 + $0x60] sm:$0xff]
      %v1078 = vld [vmem:[%s4 + $0x68] sm:$0xff]
      %v1079 = vld [vmem:[%s4 + $0x70] sm:$0xff]
      %v1080 = vld [vmem:[%s4 + $0x78] sm:$0xff]
      %v1081 = vld [vmem:[%s4 + $0x80] sm:$0xff]
      %v1082 = vld [vmem:[%s4 + $0x88] sm:$0xff]
      %v1083 = vld [vmem:[%s4 + $0x90] sm:$0xff]
      %v1084 = vld [vmem:[%s4 + $0x98] sm:$0xff]
      %v1085 = vld [vmem:[%s4 + $0xa0] sm:$0xff]
      %v1086 = vld [vmem:[%s4 + $0xa8] sm:$0xff]
      %v1087 = vld [vmem:[%s4 + $0xb0] sm:$0xff]
      %v1088 = vld [vmem:[%s4 + $0xb8] sm:$0xff]
      %v1089 = vld [vmem:[%s10 + $0x2] sm:$0x1]
      %v1090 = vlaneseq
      %v1091 = vshrl.u32 %v1090, 7
      %v1092 = vsub.s32 0, %v1091
      %v1093 = vrot.slane %v1089, %v1092
      %vm1094 = vcmask 523264
      %v1096 = vsel %vm1094, %v1062, 0
      %v1099 = vsel %vm1094, %v1064, 0
      %1101 = vmatprep.subr.mxu0 0.0
      %1102 = vmatpush1.msra.mxu0 %v1065
      %1103 = vmatprep.subr.mxu0 0.0
      %1104 = vmatpush1.msra.mxu0 %v1066
      %1105 = vmatprep.subr.mxu0 0.0
      %1106 = vmatpush1.msra.mxu0 %v1067
      %1107 = vmatprep.subr.mxu0 0.0
      %1108 = vmatpush1.msra.mxu0 %v1068
      %1109 = vmatprep.subr.mxu0 0.0
      %1110 = vmatpush1.msra.mxu0 %v1069
      %1111 = vmatprep.subr.mxu0 0.0
      %1112 = vmatpush1.msra.mxu0 %v1070
      %1113 = vmatprep.subr.mxu0 0.0
      %1114 = vmatpush1.msra.mxu0 %v1071
      %1115 = vmatprep.subr.mxu0 0.0
      %1116 = vmatpush1.msra.mxu0 %v1072
      %1117 = vmatprep.subr.mxu0 0.0
      %1118 = vmatpush1.msra.mxu0 %v1073
      %1119 = vmatprep.subr.mxu0 0.0
      %1120 = vmatpush1.msra.mxu0 %v1074
      %1121 = vmatprep.subr.mxu0 0.0
      %1122 = vmatpush1.msra.mxu0 %v1075
      %1123 = vmatprep.subr.mxu0 0.0
      %1124 = vmatpush1.msra.mxu0 %v1076
      %1125 = vmatprep.subr.mxu0 0.0
      %1126 = vmatpush1.msra.mxu0 %v1077
      %1127 = vmatprep.subr.mxu0 0.0
      %1128 = vmatpush1.msra.mxu0 %v1078
      %1129 = vmatprep.subr.mxu0 0.0
      %1130 = vmatpush1.msra.mxu0 %v1079
      %1131 = vmatprep.subr.mxu0 0.0
      %1132 = vmatpush1.msra.mxu0 %v1080
      %1133 = vmatprep.subr.mxu0 0.0
      %1134 = vmatpush1.msra.mxu0 %v1081
      %1135 = vmatprep.subr.mxu0 0.0
      %1136 = vmatpush1.msra.mxu0 %v1082
      %1137 = vmatprep.subr.mxu0 0.0
      %1138 = vmatpush1.msra.mxu0 %v1083
      %1139 = vmatprep.subr.mxu0 0.0
      %1140 = vmatpush1.msra.mxu0 %v1084
      %1141 = vmatprep.subr.mxu0 0.0
      %1142 = vmatpush1.msra.mxu0 %v1085
      %1143 = vmatprep.subr.mxu0 0.0
      %1144 = vmatpush1.msra.mxu0 %v1086
      %1145 = vmatprep.subr.mxu0 0.0
      %1146 = vmatpush1.msra.mxu0 %v1087
      %1147 = vmatprep.subr.mxu0 0.0
      %1148 = vmatpush1.msra.mxu0 %v1088
      %1149 = vmatprep.subr.mxu0 0.0
      %1150 = vmatpush1.msra.mxu0 0.0
      %1151 = vmatprep.subr.mxu0 0.0
      %1152 = vmatpush1.msra.mxu0 0.0
      %1153 = vmatprep.subr.mxu0 0.0
      %1154 = vmatpush1.msra.mxu0 0.0
      %1155 = vmatprep.subr.mxu0 0.0
      %1156 = vmatpush1.msra.mxu0 0.0
      %1157 = vmatprep.subr.mxu0 0.0
      %1158 = vmatpush1.msra.mxu0 0.0
      %1159 = vmatprep.subr.mxu0 0.0
      %1160 = vmatpush1.msra.mxu0 0.0
      %1161 = vmatprep.subr.mxu0 0.0
      %1162 = vmatpush1.msra.mxu0 0.0
      %1163 = vmatprep.subr.mxu0 0.0
      %1164 = vmatpush1.msra.mxu0 0.0
      %1165 = vmatprep.mubr.f32.mxu0 %v1096
      %1166 = vmatmul.mubr.f32.gmra.mrb[0].mxu0 %v1061
      %v1167 = vpop.f32.mrb[0].mxu0
      %v1168 = vadd.f32 %v1093, %v1167
      %v1169 = vpop.f32.mrb[0].mxu0
      %1170 = vmatprep.mubr.f32.mxu0 %v1099
      %1171 = vmatmul.mubr.f32.gmra.mrb[0].mxu0 %v1063
      %v1172 = vpop.f32.mrb[0].mxu0
      %v1173 = vadd.f32 %v1093, %v1172
      %v1174 = vpop.f32.mrb[0].mxu0
      %1175 = vdwg.mxu0
      %v1176 = vmax.f32 %v1168, 0.0
      %v1177 = vmax.f32 %v1173, 0.0
      %1178 = vst.msk [vmem:[#allocation5] sm:$0x3] %vm991, 0.0
      %1179 = vst.msk [vmem:[#allocation5 + $0xf] sm:$0x3] %vm991, 0.0
      %1180 = vst.msk [vmem:[#allocation5 + $0x2] sm:$0xff] %vm994, %v1176
      %1181 = vst.msk [vmem:[#allocation5 + $0xa] sm:$0x1f] %vm1001, %v1177
      %v1182 = vld [vmem:[#allocation5] sm:$0xff]
      %v1183 = vld [vmem:[#allocation5 + $0x8] sm:$0xf]
      %1184 = vst.msk [vmem:[#allocation6] sm:$0xff] %vm994, %v1182
      %vm1185 = vcmask 257024
      %1186 = vst.msk [vmem:[#allocation6 + $0x10] sm:$0xf] %vm1185, %v1183
      %v1187 = vld [vmem:[#allocation5 + $0x1] sm:$0xff]
      %v1188 = vld [vmem:[#allocation5 + $0x9] sm:$0xf]
      %1191 = vrot.lane.b32.xlu0 %v1187, 32
      %v1192 = vpop.permute.xlu0 %1191
      %1193 = vrot.lane.b32.xlu0 %v1188, 32
      %v1194 = vpop.permute.xlu0 %1193
      %1197 = vst.msk [vmem:[#allocation6] sm:$0xff] %vm1013, %v1192
      %vm1198 = vcmask 519424
      %1199 = vst.msk [vmem:[#allocation6 + $0x10] sm:$0xf] %vm1198, %v1194
      %v1200 = vld [vmem:[#allocation5 + $0x2] sm:$0xff]
      %v1201 = vld [vmem:[#allocation5 + $0xa] sm:$0xf]
      %1204 = vrot.lane.b32.xlu0 %v1200, 64
      %v1205 = vpop.permute.xlu0 %1204
      %1206 = vrot.lane.b32.xlu0 %v1201, 64
      %v1207 = vpop.permute.xlu0 %1206
      %1210 = vst.msk [vmem:[#allocation6] sm:$0xff] %vm1027, %v1205
      %vm1211 = vcmask 781824
      %1212 = vst.msk [vmem:[#allocation6 + $0x10] sm:$0xf] %vm1211, %v1207
      %v1213 = vld [vmem:[#allocation5 + $0x3] sm:$0xff]
      %v1214 = vld [vmem:[#allocation5 + $0xb] sm:$0xf]
      %1217 = vrot.lane.b32.xlu0 %v1213, 96
      %v1218 = vpop.permute.xlu0 %1217
      %1219 = vrot.lane.b32.xlu0 %v1214, 96
      %v1220 = vpop.permute.xlu0 %1219
      %1223 = vst.msk [vmem:[#allocation6] sm:$0xff] %vm1041, %v1218
      %vm1224 = vcmask 1044224
      %1225 = vst.msk [vmem:[#allocation6 + $0x10] sm:$0xf] %vm1224, %v1220
      %v1226 = vld [vmem:[#allocation5 + $0x4] sm:$0xff]
      %v1227 = vld [vmem:[#allocation5 + $0xc] sm:$0xf]
      %1228 = vst.msk [vmem:[#allocation6 + $0x8] sm:$0xff] %vm994, %v1226
      %1229 = vst.msk [vmem:[#allocation6 + $0x18] sm:$0xf] %vm1185, %v1227
      %v1230 = vld [vmem:[#allocation5 + $0x5] sm:$0xff]
      %v1231 = vld [vmem:[#allocation5 + $0xd] sm:$0xf]
      %1234 = vrot.lane.b32.xlu0 %v1230, 32
      %v1235 = vpop.permute.xlu0 %1234
      %1236 = vrot.lane.b32.xlu0 %v1231, 32
      %v1237 = vpop.permute.xlu0 %1236
      %1240 = vst.msk [vmem:[#allocation6 + $0x8] sm:$0xff] %vm1013, %v1235
      %1241 = vst.msk [vmem:[#allocation6 + $0x18] sm:$0xf] %vm1198, %v1237
      %v1242 = vld [vmem:[#allocation6] sm:$0xff]
      %v1243 = vld [vmem:[#allocation6 + $0x8] sm:$0xff]
      %v1244 = vld [vmem:[#allocation6 + $0x10] sm:$0xf]
      %v1245 = vld [vmem:[#allocation6 + $0x18] sm:$0xf]
      %v1246 = vld [vmem:[%s5] sm:$0xff]
      %v1247 = vld [vmem:[%s5 + $0x8] sm:$0xff]
      %v1248 = vld [vmem:[%s5 + $0x10] sm:$0xff]
      %v1249 = vld [vmem:[%s5 + $0x18] sm:$0xff]
      %v1250 = vld [vmem:[%s5 + $0x20] sm:$0xff]
      %v1251 = vld [vmem:[%s5 + $0x28] sm:$0xff]
      %v1252 = vld [vmem:[%s5 + $0x30] sm:$0xff]
      %v1253 = vld [vmem:[%s5 + $0x38] sm:$0xff]
      %v1254 = vld [vmem:[%s5 + $0x40] sm:$0xff]
      %v1255 = vld [vmem:[%s5 + $0x48] sm:$0xff]
      %v1256 = vld [vmem:[%s5 + $0x50] sm:$0xff]
      %v1257 = vld [vmem:[%s5 + $0x58] sm:$0xff]
      %v1258 = vld [vmem:[%s5 + $0x60] sm:$0xff]
      %v1259 = vld [vmem:[%s5 + $0x68] sm:$0xff]
      %v1260 = vld [vmem:[%s5 + $0x70] sm:$0xff]
      %v1261 = vld [vmem:[%s5 + $0x78] sm:$0xff]
      %v1262 = vld [vmem:[%s5 + $0x80] sm:$0xff]
      %v1263 = vld [vmem:[%s5 + $0x88] sm:$0xff]
      %v1264 = vld [vmem:[%s5 + $0x90] sm:$0xff]
      %v1265 = vld [vmem:[%s5 + $0x98] sm:$0xff]
      %v1266 = vld [vmem:[%s5 + $0xa0] sm:$0xff]
      %v1267 = vld [vmem:[%s5 + $0xa8] sm:$0xff]
      %v1268 = vld [vmem:[%s5 + $0xb0] sm:$0xff]
      %v1269 = vld [vmem:[%s5 + $0xb8] sm:$0xff]
      %v1270 = vld [vmem:[%s10 + $0x3] sm:$0x1]
      %v1271 = vlaneseq
      %v1272 = vshrl.u32 %v1271, 7
      %v1273 = vsub.s32 0, %v1272
      %v1274 = vrot.slane %v1270, %v1273
      %v1276 = vsel %vm1094, %v1243, 0
      %v1279 = vsel %vm1094, %v1245, 0
      %1281 = vmatprep.subr.mxu0 0.0
      %1282 = vmatpush1.msra.mxu0 %v1246
      %1283 = vmatprep.subr.mxu0 0.0
      %1284 = vmatpush1.msra.mxu0 %v1247
      %1285 = vmatprep.subr.mxu0 0.0
      %1286 = vmatpush1.msra.mxu0 %v1248
      %1287 = vmatprep.subr.mxu0 0.0
      %1288 = vmatpush1.msra.mxu0 %v1249
      %1289 = vmatprep.subr.mxu0 0.0
      %1290 = vmatpush1.msra.mxu0 %v1250
      %1291 = vmatprep.subr.mxu0 0.0
      %1292 = vmatpush1.msra.mxu0 %v1251
      %1293 = vmatprep.subr.mxu0 0.0
      %1294 = vmatpush1.msra.mxu0 %v1252
      %1295 = vmatprep.subr.mxu0 0.0
      %1296 = vmatpush1.msra.mxu0 %v1253
      %1297 = vmatprep.subr.mxu0 0.0
      %1298 = vmatpush1.msra.mxu0 %v1254
      %1299 = vmatprep.subr.mxu0 0.0
      %1300 = vmatpush1.msra.mxu0 %v1255
      %1301 = vmatprep.subr.mxu0 0.0
      %1302 = vmatpush1.msra.mxu0 %v1256
      %1303 = vmatprep.subr.mxu0 0.0
      %1304 = vmatpush1.msra.mxu0 %v1257
      %1305 = vmatprep.subr.mxu0 0.0
      %1306 = vmatpush1.msra.mxu0 %v1258
      %1307 = vmatprep.subr.mxu0 0.0
      %1308 = vmatpush1.msra.mxu0 %v1259
      %1309 = vmatprep.subr.mxu0 0.0
      %1310 = vmatpush1.msra.mxu0 %v1260
      %1311 = vmatprep.subr.mxu0 0.0
      %1312 = vmatpush1.msra.mxu0 %v1261
      %1313 = vmatprep.subr.mxu0 0.0
      %1314 = vmatpush1.msra.mxu0 %v1262
      %1315 = vmatprep.subr.mxu0 0.0
      %1316 = vmatpush1.msra.mxu0 %v1263
      %1317 = vmatprep.subr.mxu0 0.0
      %1318 = vmatpush1.msra.mxu0 %v1264
      %1319 = vmatprep.subr.mxu0 0.0
      %1320 = vmatpush1.msra.mxu0 %v1265
      %1321 = vmatprep.subr.mxu0 0.0
      %1322 = vmatpush1.msra.mxu0 %v1266
      %1323 = vmatprep.subr.mxu0 0.0
      %1324 = vmatpush1.msra.mxu0 %v1267
      %1325 = vmatprep.subr.mxu0 0.0
      %1326 = vmatpush1.msra.mxu0 %v1268
      %1327 = vmatprep.subr.mxu0 0.0
      %1328 = vmatpush1.msra.mxu0 %v1269
      %1329 = vmatprep.subr.mxu0 0.0
      %1330 = vmatpush1.msra.mxu0 0.0
      %1331 = vmatprep.subr.mxu0 0.0
      %1332 = vmatpush1.msra.mxu0 0.0
      %1333 = vmatprep.subr.mxu0 0.0
      %1334 = vmatpush1.msra.mxu0 0.0
      %1335 = vmatprep.subr.mxu0 0.0
      %1336 = vmatpush1.msra.mxu0 0.0
      %1337 = vmatprep.subr.mxu0 0.0
      %1338 = vmatpush1.msra.mxu0 0.0
      %1339 = vmatprep.subr.mxu0 0.0
      %1340 = vmatpush1.msra.mxu0 0.0
      %1341 = vmatprep.subr.mxu0 0.0
      %1342 = vmatpush1.msra.mxu0 0.0
      %1343 = vmatprep.subr.mxu0 0.0
      %1344 = vmatpush1.msra.mxu0 0.0
      %1345 = vmatprep.mubr.f32.mxu0 %v1276
      %1346 = vmatmul.mubr.f32.gmra.mrb[0].mxu0 %v1242
      %v1347 = vpop.f32.mrb[0].mxu0
      %v1348 = vadd.f32 %v1274, %v1347
      %v1349 = vpop.f32.mrb[0].mxu0
      %1350 = vmatprep.mubr.f32.mxu0 %v1279
      %1351 = vmatmul.mubr.f32.gmra.mrb[0].mxu0 %v1244
      %v1352 = vpop.f32.mrb[0].mxu0
      %v1353 = vadd.f32 %v1274, %v1352
      %v1354 = vpop.f32.mrb[0].mxu0
      %1355 = vdwg.mxu0
      %v1356 = vmax.f32 %v1348, 0.0
      %v1357 = vmax.f32 %v1353, 0.0
      %1358 = vst.msk [vmem:[%s441] sm:$0xff] %vm994, %v1356
      %1359 = vst.msk [vmem:[%s441 + $0x8] sm:$0xf] %vm1185, %v1357
      %v1360 = vld [vmem:[%s436] sm:$0xff]
      %v1361 = vld [vmem:[%s436 + $0x8] sm:$0xff]
      %v1362 = vld [vmem:[%s436 + $0x10] sm:$0xff]
      %v1363 = vld [vmem:[%s436 + $0x18] sm:$0xff]
      %v1364 = vld [vmem:[%s436 + $0x20] sm:$0xff]
      %v1365 = vld [vmem:[%s436 + $0x28] sm:$0xff]
      %v1366 = vld [vmem:[%s436 + $0x30] sm:$0xff]
      %v1367 = vld [vmem:[%s436 + $0x38] sm:$0xff]
      %v1368 = vld [vmem:[%s436 + $0x40] sm:$0xff]
      %v1369 = vld [vmem:[%s436 + $0x48] sm:$0xff]
      %v1370 = vld [vmem:[%s436 + $0x50] sm:$0xff]
      %v1371 = vld [vmem:[%s436 + $0x58] sm:$0xff]
      %v1372 = vld [vmem:[%s436 + $0x60] sm:$0xff]
      %v1373 = vld [vmem:[%s436 + $0x68] sm:$0xff]
      %v1374 = vld [vmem:[%s436 + $0x70] sm:$0xff]
      %v1375 = vld [vmem:[%s436 + $0x78] sm:$0xff]
      %v1376 = vld [vmem:[%s436 + $0x80] sm:$0xff]
      %v1377 = vld [vmem:[%s436 + $0x88] sm:$0xff]
      %v1378 = vld [vmem:[%s436 + $0x90] sm:$0xff]
      %v1379 = vld [vmem:[%s436 + $0x98] sm:$0xff]
      %v1380 = vld [vmem:[%s436 + $0xa0] sm:$0xff]
      %v1381 = vld [vmem:[%s436 + $0xa8] sm:$0xff]
      %v1382 = vld [vmem:[%s436 + $0xb0] sm:$0xff]
      %v1383 = vld [vmem:[%s436 + $0xb8] sm:$0xff]
      %v1384 = vld [vmem:[%s436 + $0xc0] sm:$0xff]
      %v1385 = vld [vmem:[%s436 + $0xc8] sm:$0xff]
      %v1386 = vld [vmem:[%s436 + $0xd0] sm:$0xff]
      %v1387 = vld [vmem:[%s436 + $0xd8] sm:$0xff]
      %v1388 = vld [vmem:[%s436 + $0xe0] sm:$0xff]
      %v1389 = vld [vmem:[%s436 + $0xe8] sm:$0xff]
      %v1390 = vld [vmem:[%s436 + $0xf0] sm:$0xff]
      %v1391 = vld [vmem:[%s436 + $0xf8] sm:$0xff]
      %v1392 = vld [vmem:[%s436 + $0x100] sm:$0xff]
      %v1393 = vld [vmem:[%s436 + $0x108] sm:$0xff]
      %v1394 = vld [vmem:[%s436 + $0x110] sm:$0xff]
      %v1395 = vld [vmem:[%s436 + $0x118] sm:$0xff]
      %v1396 = vld [vmem:[%s436 + $0x120] sm:$0xff]
      %v1397 = vld [vmem:[%s436 + $0x128] sm:$0xff]
      %v1398 = vld [vmem:[%s436 + $0x130] sm:$0xff]
      %v1399 = vld [vmem:[%s436 + $0x138] sm:$0xff]
      %v1400 = vld [vmem:[%s436 + $0x140] sm:$0xff]
      %v1401 = vld [vmem:[%s436 + $0x148] sm:$0xff]
      %v1402 = vld [vmem:[%s436 + $0x150] sm:$0xff]
      %v1403 = vld [vmem:[%s436 + $0x158] sm:$0xff]
      %v1404 = vld [vmem:[%s436 + $0x160] sm:$0xff]
      %v1405 = vld [vmem:[%s436 + $0x168] sm:$0xff]
      %v1406 = vld [vmem:[%s436 + $0x170] sm:$0xff]
      %v1407 = vld [vmem:[%s436 + $0x178] sm:$0xff]
      %v1408 = vld [vmem:[%s436 + $0x180] sm:$0xff]
      %v1409 = vld [vmem:[%s436 + $0x188] sm:$0xff]
      %v1410 = vld [vmem:[%s436 + $0x190] sm:$0xff]
      %v1411 = vld [vmem:[%s436 + $0x198] sm:$0xff]
      %v1412 = vld [vmem:[%s436 + $0x1a0] sm:$0xff]
      %v1413 = vld [vmem:[%s436 + $0x1a8] sm:$0xff]
      %v1414 = vld [vmem:[%s436 + $0x1b0] sm:$0xff]
      %v1415 = vld [vmem:[%s436 + $0x1b8] sm:$0xff]
      %v1416 = vld [vmem:[%s436 + $0x1c0] sm:$0xff]
      %v1417 = vld [vmem:[%s436 + $0x1c8] sm:$0xff]
      %v1418 = vld [vmem:[%s436 + $0x1d0] sm:$0xff]
      %v1419 = vld [vmem:[%s436 + $0x1d8] sm:$0xff]
      %v1420 = vld [vmem:[%s436 + $0x1e0] sm:$0xff]
      %v1421 = vld [vmem:[%s436 + $0x1e8] sm:$0xff]
      %v1422 = vld [vmem:[%s436 + $0x1f0] sm:$0xf]
      %v1423 = vld [vmem:[%s6] sm:$0xff]
      %v1424 = vld [vmem:[%s6 + $0x8] sm:$0xff]
      %v1425 = vld [vmem:[%s6 + $0x10] sm:$0xff]
      %v1426 = vld [vmem:[%s6 + $0x18] sm:$0xff]
      %v1427 = vld [vmem:[%s6 + $0x20] sm:$0xff]
      %v1428 = vld [vmem:[%s6 + $0x28] sm:$0xff]
      %v1429 = vld [vmem:[%s6 + $0x30] sm:$0x3f]
      %v1430 = vld [vmem:[%s10 + $0x4] sm:$0x1]
      %v1431 = vlaneseq
      %v1432 = vshrl.u32 %v1431, 7
      %v1433 = vsub.s32 0, %v1432
      %v1434 = vrot.slane %v1430, %v1433
      %vm1435 = vcmask 441344
      %v1437 = vsel %vm1435, %v1360, 0
      %v1440 = vsel %vm1435, %v1361, 0
      %v1443 = vsel %vm1435, %v1362, 0
      %v1446 = vsel %vm1435, %v1363, 0
      %v1449 = vsel %vm1435, %v1364, 0
      %v1452 = vsel %vm1435, %v1365, 0
      %v1455 = vsel %vm1435, %v1366, 0
      %v1458 = vsel %vm1435, %v1367, 0
      %v1461 = vsel %vm1435, %v1368, 0
      %v1464 = vsel %vm1435, %v1369, 0
      %v1467 = vsel %vm1435, %v1370, 0
      %v1470 = vsel %vm1435, %v1371, 0
      %v1473 = vsel %vm1435, %v1372, 0
      %v1476 = vsel %vm1435, %v1373, 0
      %v1479 = vsel %vm1435, %v1374, 0
      %v1482 = vsel %vm1435, %v1375, 0
      %v1485 = vsel %vm1435, %v1376, 0
      %v1488 = vsel %vm1435, %v1377, 0
      %v1491 = vsel %vm1435, %v1378, 0
      %v1494 = vsel %vm1435, %v1379, 0
      %v1497 = vsel %vm1435, %v1380, 0
      %v1500 = vsel %vm1435, %v1381, 0
      %v1503 = vsel %vm1435, %v1382, 0
      %v1506 = vsel %vm1435, %v1383, 0
      %v1509 = vsel %vm1435, %v1384, 0
      %v1512 = vsel %vm1435, %v1385, 0
      %v1515 = vsel %vm1435, %v1386, 0
      %v1518 = vsel %vm1435, %v1387, 0
      %v1521 = vsel %vm1435, %v1388, 0
      %v1524 = vsel %vm1435, %v1389, 0
      %v1527 = vsel %vm1435, %v1390, 0
      %v1530 = vsel %vm1435, %v1391, 0
      %v1533 = vsel %vm1435, %v1392, 0
      %v1536 = vsel %vm1435, %v1393, 0
      %v1539 = vsel %vm1435, %v1394, 0
      %v1542 = vsel %vm1435, %v1395, 0
      %v1545 = vsel %vm1435, %v1396, 0
      %v1548 = vsel %vm1435, %v1397, 0
      %v1551 = vsel %vm1435, %v1398, 0
      %v1554 = vsel %vm1435, %v1399, 0
      %v1557 = vsel %vm1435, %v1400, 0
      %v1560 = vsel %vm1435, %v1401, 0
      %v1563 = vsel %vm1435, %v1402, 0
      %v1566 = vsel %vm1435, %v1403, 0
      %v1569 = vsel %vm1435, %v1404, 0
      %v1572 = vsel %vm1435, %v1405, 0
      %v1575 = vsel %vm1435, %v1406, 0
      %v1578 = vsel %vm1435, %v1407, 0
      %v1581 = vsel %vm1435, %v1408, 0
      %v1584 = vsel %vm1435, %v1409, 0
      %v1587 = vsel %vm1435, %v1410, 0
      %v1590 = vsel %vm1435, %v1411, 0
      %v1593 = vsel %vm1435, %v1412, 0
      %v1596 = vsel %vm1435, %v1413, 0
      %v1599 = vsel %vm1435, %v1414, 0
      %v1602 = vsel %vm1435, %v1415, 0
      %v1605 = vsel %vm1435, %v1416, 0
      %v1608 = vsel %vm1435, %v1417, 0
      %v1611 = vsel %vm1435, %v1418, 0
      %v1614 = vsel %vm1435, %v1419, 0
      %v1617 = vsel %vm1435, %v1420, 0
      %v1620 = vsel %vm1435, %v1421, 0
      %v1623 = vsel %vm1435, %v1422, 0
      %vm1625 = vcmask 1045504
      %v1627 = vsel %vm1625, %v1429, 0
      %1629 = vmatprep.subr.mxu0 0.0
      %1630 = vmatpush1.msra.mxu0 %v1423
      %1631 = vmatprep.subr.mxu0 0.0
      %1632 = vmatpush1.msra.mxu0 %v1424
      %1633 = vmatprep.subr.mxu0 0.0
      %1634 = vmatpush1.msra.mxu0 %v1425
      %1635 = vmatprep.subr.mxu0 0.0
      %1636 = vmatpush1.msra.mxu0 %v1426
      %1637 = vmatprep.subr.mxu0 0.0
      %1638 = vmatpush1.msra.mxu0 %v1427
      %1639 = vmatprep.subr.mxu0 0.0
      %1640 = vmatpush1.msra.mxu0 %v1428
      %1641 = vmatprep.subr.mxu0 0.0
      %1642 = vmatpush1.msra.mxu0 %v1627
      %1643 = vmatprep.subr.mxu0 0.0
      %1644 = vmatpush1.msra.mxu0 0.0
      %1645 = vmatprep.subr.mxu0 0.0
      %1646 = vmatpush1.msra.mxu0 0.0
      %1647 = vmatprep.subr.mxu0 0.0
      %1648 = vmatpush1.msra.mxu0 0.0
      %1649 = vmatprep.subr.mxu0 0.0
      %1650 = vmatpush1.msra.mxu0 0.0
      %1651 = vmatprep.subr.mxu0 0.0
      %1652 = vmatpush1.msra.mxu0 0.0
      %1653 = vmatprep.subr.mxu0 0.0
      %1654 = vmatpush1.msra.mxu0 0.0
      %1655 = vmatprep.subr.mxu0 0.0
      %1656 = vmatpush1.msra.mxu0 0.0
      %1657 = vmatprep.subr.mxu0 0.0
      %1658 = vmatpush1.msra.mxu0 0.0
      %1659 = vmatprep.subr.mxu0 0.0
      %1660 = vmatpush1.msra.mxu0 0.0
      %1661 = vmatprep.subr.mxu0 0.0
      %1662 = vmatpush1.msra.mxu0 0.0
      %1663 = vmatprep.subr.mxu0 0.0
      %1664 = vmatpush1.msra.mxu0 0.0
      %1665 = vmatprep.subr.mxu0 0.0
      %1666 = vmatpush1.msra.mxu0 0.0
      %1667 = vmatprep.subr.mxu0 0.0
      %1668 = vmatpush1.msra.mxu0 0.0
      %1669 = vmatprep.subr.mxu0 0.0
      %1670 = vmatpush1.msra.mxu0 0.0
      %1671 = vmatprep.subr.mxu0 0.0
      %1672 = vmatpush1.msra.mxu0 0.0
      %1673 = vmatprep.subr.mxu0 0.0
      %1674 = vmatpush1.msra.mxu0 0.0
      %1675 = vmatprep.subr.mxu0 0.0
      %1676 = vmatpush1.msra.mxu0 0.0
      %1677 = vmatprep.subr.mxu0 0.0
      %1678 = vmatpush1.msra.mxu0 0.0
      %1679 = vmatprep.subr.mxu0 0.0
      %1680 = vmatpush1.msra.mxu0 0.0
      %1681 = vmatprep.subr.mxu0 0.0
      %1682 = vmatpush1.msra.mxu0 0.0
      %1683 = vmatprep.subr.mxu0 0.0
      %1684 = vmatpush1.msra.mxu0 0.0
      %1685 = vmatprep.subr.mxu0 0.0
      %1686 = vmatpush1.msra.mxu0 0.0
      %1687 = vmatprep.subr.mxu0 0.0
      %1688 = vmatpush1.msra.mxu0 0.0
      %1689 = vmatprep.subr.mxu0 0.0
      %1690 = vmatpush1.msra.mxu0 0.0
      %1691 = vmatprep.subr.mxu0 0.0
      %1692 = vmatpush1.msra.mxu0 0.0
      %1693 = vmatprep.mubr.f32.mxu0 0.0
      %1694 = vmatmul.mubr.f32.gmra.mrb[0].mxu0 %v1437
      %v1695 = vpop.f32.mrb[0].mxu0
      %v1696 = vadd.f32 %v1434, %v1695
      %v1697 = vpop.f32.mrb[0].mxu0
      %1698 = vmatprep.mubr.f32.mxu0 0.0
      %1699 = vmatmul.mubr.f32.gmra.mrb[0].mxu0 %v1440
      %v1700 = vpop.f32.mrb[0].mxu0
      %v1701 = vadd.f32 %v1434, %v1700
      %v1702 = vpop.f32.mrb[0].mxu0
      %1703 = vmatprep.mubr.f32.mxu0 0.0
      %1704 = vmatmul.mubr.f32.gmra.mrb[0].mxu0 %v1443
      %v1705 = vpop.f32.mrb[0].mxu0
      %v1706 = vadd.f32 %v1434, %v1705
      %v1707 = vpop.f32.mrb[0].mxu0
      %1708 = vmatprep.mubr.f32.mxu0 0.0
      %1709 = vmatmul.mubr.f32.gmra.mrb[0].mxu0 %v1446
      %v1710 = vpop.f32.mrb[0].mxu0
      %v1711 = vadd.f32 %v1434, %v1710
      %v1712 = vpop.f32.mrb[0].mxu0
      %1713 = vmatprep.mubr.f32.mxu0 0.0
      %1714 = vmatmul.mubr.f32.gmra.mrb[0].mxu0 %v1449
      %v1715 = vpop.f32.mrb[0].mxu0
      %v1716 = vadd.f32 %v1434, %v1715
      %v1717 = vpop.f32.mrb[0].mxu0
      %1718 = vmatprep.mubr.f32.mxu0 0.0
      %1719 = vmatmul.mubr.f32.gmra.mrb[0].mxu0 %v1452
      %v1720 = vpop.f32.mrb[0].mxu0
      %v1721 = vadd.f32 %v1434, %v1720
      %v1722 = vpop.f32.mrb[0].mxu0
      %1723 = vmatprep.mubr.f32.mxu0 0.0
      %1724 = vmatmul.mubr.f32.gmra.mrb[0].mxu0 %v1455
      %v1725 = vpop.f32.mrb[0].mxu0
      %v1726 = vadd.f32 %v1434, %v1725
      %v1727 = vpop.f32.mrb[0].mxu0
      %1728 = vmatprep.mubr.f32.mxu0 0.0
      %1729 = vmatmul.mubr.f32.gmra.mrb[0].mxu0 %v1458
      %v1730 = vpop.f32.mrb[0].mxu0
      %v1731 = vadd.f32 %v1434, %v1730
      %v1732 = vpop.f32.mrb[0].mxu0
      %1733 = vmatprep.mubr.f32.mxu0 0.0
      %1734 = vmatmul.mubr.f32.gmra.mrb[0].mxu0 %v1461
      %v1735 = vpop.f32.mrb[0].mxu0
      %v1736 = vadd.f32 %v1434, %v1735
      %v1737 = vpop.f32.mrb[0].mxu0
      %1738 = vmatprep.mubr.f32.mxu0 0.0
      %1739 = vmatmul.mubr.f32.gmra.mrb[0].mxu0 %v1464
      %v1740 = vpop.f32.mrb[0].mxu0
      %v1741 = vadd.f32 %v1434, %v1740
      %v1742 = vpop.f32.mrb[0].mxu0
      %1743 = vmatprep.mubr.f32.mxu0 0.0
      %1744 = vmatmul.mubr.f32.gmra.mrb[0].mxu0 %v1467
      %v1745 = vpop.f32.mrb[0].mxu0
      %v1746 = vadd.f32 %v1434, %v1745
      %v1747 = vpop.f32.mrb[0].mxu0
      %1748 = vmatprep.mubr.f32.mxu0 0.0
      %1749 = vmatmul.mubr.f32.gmra.mrb[0].mxu0 %v1470
      %v1750 = vpop.f32.mrb[0].mxu0
      %v1751 = vadd.f32 %v1434, %v1750
      %v1752 = vpop.f32.mrb[0].mxu0
      %1753 = vmatprep.mubr.f32.mxu0 0.0
      %1754 = vmatmul.mubr.f32.gmra.mrb[0].mxu0 %v1473
      %v1755 = vpop.f32.mrb[0].mxu0
      %v1756 = vadd.f32 %v1434, %v1755
      %v1757 = vpop.f32.mrb[0].mxu0
      %1758 = vmatprep.mubr.f32.mxu0 0.0
      %1759 = vmatmul.mubr.f32.gmra.mrb[0].mxu0 %v1476
      %v1760 = vpop.f32.mrb[0].mxu0
      %v1761 = vadd.f32 %v1434, %v1760
      %v1762 = vpop.f32.mrb[0].mxu0
      %1763 = vmatprep.mubr.f32.mxu0 0.0
      %1764 = vmatmul.mubr.f32.gmra.mrb[0].mxu0 %v1479
      %v1765 = vpop.f32.mrb[0].mxu0
      %v1766 = vadd.f32 %v1434, %v1765
      %v1767 = vpop.f32.mrb[0].mxu0
      %1768 = vmatprep.mubr.f32.mxu0 0.0
      %1769 = vmatmul.mubr.f32.gmra.mrb[0].mxu0 %v1482
      %v1770 = vpop.f32.mrb[0].mxu0
      %v1771 = vadd.f32 %v1434, %v1770
      %v1772 = vpop.f32.mrb[0].mxu0
      %1773 = vmatprep.mubr.f32.mxu0 0.0
      %1774 = vmatmul.mubr.f32.gmra.mrb[0].mxu0 %v1485
      %v1775 = vpop.f32.mrb[0].mxu0
      %v1776 = vadd.f32 %v1434, %v1775
      %v1777 = vpop.f32.mrb[0].mxu0
      %1778 = vmatprep.mubr.f32.mxu0 0.0
      %1779 = vmatmul.mubr.f32.gmra.mrb[0].mxu0 %v1488
      %v1780 = vpop.f32.mrb[0].mxu0
      %v1781 = vadd.f32 %v1434, %v1780
      %v1782 = vpop.f32.mrb[0].mxu0
      %1783 = vmatprep.mubr.f32.mxu0 0.0
      %1784 = vmatmul.mubr.f32.gmra.mrb[0].mxu0 %v1491
      %v1785 = vpop.f32.mrb[0].mxu0
      %v1786 = vadd.f32 %v1434, %v1785
      %v1787 = vpop.f32.mrb[0].mxu0
      %1788 = vmatprep.mubr.f32.mxu0 0.0
      %1789 = vmatmul.mubr.f32.gmra.mrb[0].mxu0 %v1494
      %v1790 = vpop.f32.mrb[0].mxu0
      %v1791 = vadd.f32 %v1434, %v1790
      %v1792 = vpop.f32.mrb[0].mxu0
      %1793 = vmatprep.mubr.f32.mxu0 0.0
      %1794 = vmatmul.mubr.f32.gmra.mrb[0].mxu0 %v1497
      %v1795 = vpop.f32.mrb[0].mxu0
      %v1796 = vadd.f32 %v1434, %v1795
      %v1797 = vpop.f32.mrb[0].mxu0
      %1798 = vmatprep.mubr.f32.mxu0 0.0
      %1799 = vmatmul.mubr.f32.gmra.mrb[0].mxu0 %v1500
      %v1800 = vpop.f32.mrb[0].mxu0
      %v1801 = vadd.f32 %v1434, %v1800
      %v1802 = vpop.f32.mrb[0].mxu0
      %1803 = vmatprep.mubr.f32.mxu0 0.0
      %1804 = vmatmul.mubr.f32.gmra.mrb[0].mxu0 %v1503
      %v1805 = vpop.f32.mrb[0].mxu0
      %v1806 = vadd.f32 %v1434, %v1805
      %v1807 = vpop.f32.mrb[0].mxu0
      %1808 = vmatprep.mubr.f32.mxu0 0.0
      %1809 = vmatmul.mubr.f32.gmra.mrb[0].mxu0 %v1506
      %v1810 = vpop.f32.mrb[0].mxu0
      %v1811 = vadd.f32 %v1434, %v1810
      %v1812 = vpop.f32.mrb[0].mxu0
      %1813 = vmatprep.mubr.f32.mxu0 0.0
      %1814 = vmatmul.mubr.f32.gmra.mrb[0].mxu0 %v1509
      %v1815 = vpop.f32.mrb[0].mxu0
      %v1816 = vadd.f32 %v1434, %v1815
      %v1817 = vpop.f32.mrb[0].mxu0
      %1818 = vmatprep.mubr.f32.mxu0 0.0
      %1819 = vmatmul.mubr.f32.gmra.mrb[0].mxu0 %v1512
      %v1820 = vpop.f32.mrb[0].mxu0
      %v1821 = vadd.f32 %v1434, %v1820
      %v1822 = vpop.f32.mrb[0].mxu0
      %1823 = vmatprep.mubr.f32.mxu0 0.0
      %1824 = vmatmul.mubr.f32.gmra.mrb[0].mxu0 %v1515
      %v1825 = vpop.f32.mrb[0].mxu0
      %v1826 = vadd.f32 %v1434, %v1825
      %v1827 = vpop.f32.mrb[0].mxu0
      %1828 = vmatprep.mubr.f32.mxu0 0.0
      %1829 = vmatmul.mubr.f32.gmra.mrb[0].mxu0 %v1518
      %v1830 = vpop.f32.mrb[0].mxu0
      %v1831 = vadd.f32 %v1434, %v1830
      %v1832 = vpop.f32.mrb[0].mxu0
      %1833 = vmatprep.mubr.f32.mxu0 0.0
      %1834 = vmatmul.mubr.f32.gmra.mrb[0].mxu0 %v1521
      %v1835 = vpop.f32.mrb[0].mxu0
      %v1836 = vadd.f32 %v1434, %v1835
      %v1837 = vpop.f32.mrb[0].mxu0
      %1838 = vmatprep.mubr.f32.mxu0 0.0
      %1839 = vmatmul.mubr.f32.gmra.mrb[0].mxu0 %v1524
      %v1840 = vpop.f32.mrb[0].mxu0
      %v1841 = vadd.f32 %v1434, %v1840
      %v1842 = vpop.f32.mrb[0].mxu0
      %1843 = vmatprep.mubr.f32.mxu0 0.0
      %1844 = vmatmul.mubr.f32.gmra.mrb[0].mxu0 %v1527
      %v1845 = vpop.f32.mrb[0].mxu0
      %v1846 = vadd.f32 %v1434, %v1845
      %v1847 = vpop.f32.mrb[0].mxu0
      %1848 = vmatprep.mubr.f32.mxu0 0.0
      %1849 = vmatmul.mubr.f32.gmra.mrb[0].mxu0 %v1530
      %v1850 = vpop.f32.mrb[0].mxu0
      %v1851 = vadd.f32 %v1434, %v1850
      %v1852 = vpop.f32.mrb[0].mxu0
      %1853 = vmatprep.mubr.f32.mxu0 0.0
      %1854 = vmatmul.mubr.f32.gmra.mrb[0].mxu0 %v1533
      %v1855 = vpop.f32.mrb[0].mxu0
      %v1856 = vadd.f32 %v1434, %v1855
      %v1857 = vpop.f32.mrb[0].mxu0
      %1858 = vmatprep.mubr.f32.mxu0 0.0
      %1859 = vmatmul.mubr.f32.gmra.mrb[0].mxu0 %v1536
      %v1860 = vpop.f32.mrb[0].mxu0
      %v1861 = vadd.f32 %v1434, %v1860
      %v1862 = vpop.f32.mrb[0].mxu0
      %1863 = vmatprep.mubr.f32.mxu0 0.0
      %1864 = vmatmul.mubr.f32.gmra.mrb[0].mxu0 %v1539
      %v1865 = vpop.f32.mrb[0].mxu0
      %v1866 = vadd.f32 %v1434, %v1865
      %v1867 = vpop.f32.mrb[0].mxu0
      %1868 = vmatprep.mubr.f32.mxu0 0.0
      %1869 = vmatmul.mubr.f32.gmra.mrb[0].mxu0 %v1542
      %v1870 = vpop.f32.mrb[0].mxu0
      %v1871 = vadd.f32 %v1434, %v1870
      %v1872 = vpop.f32.mrb[0].mxu0
      %1873 = vmatprep.mubr.f32.mxu0 0.0
      %1874 = vmatmul.mubr.f32.gmra.mrb[0].mxu0 %v1545
      %v1875 = vpop.f32.mrb[0].mxu0
      %v1876 = vadd.f32 %v1434, %v1875
      %v1877 = vpop.f32.mrb[0].mxu0
      %1878 = vmatprep.mubr.f32.mxu0 0.0
      %1879 = vmatmul.mubr.f32.gmra.mrb[0].mxu0 %v1548
      %v1880 = vpop.f32.mrb[0].mxu0
      %v1881 = vadd.f32 %v1434, %v1880
      %v1882 = vpop.f32.mrb[0].mxu0
      %1883 = vmatprep.mubr.f32.mxu0 0.0
      %1884 = vmatmul.mubr.f32.gmra.mrb[0].mxu0 %v1551
      %v1885 = vpop.f32.mrb[0].mxu0
      %v1886 = vadd.f32 %v1434, %v1885
      %v1887 = vpop.f32.mrb[0].mxu0
      %1888 = vmatprep.mubr.f32.mxu0 0.0
      %1889 = vmatmul.mubr.f32.gmra.mrb[0].mxu0 %v1554
      %v1890 = vpop.f32.mrb[0].mxu0
      %v1891 = vadd.f32 %v1434, %v1890
      %v1892 = vpop.f32.mrb[0].mxu0
      %1893 = vmatprep.mubr.f32.mxu0 0.0
      %1894 = vmatmul.mubr.f32.gmra.mrb[0].mxu0 %v1557
      %v1895 = vpop.f32.mrb[0].mxu0
      %v1896 = vadd.f32 %v1434, %v1895
      %v1897 = vpop.f32.mrb[0].mxu0
      %1898 = vmatprep.mubr.f32.mxu0 0.0
      %1899 = vmatmul.mubr.f32.gmra.mrb[0].mxu0 %v1560
      %v1900 = vpop.f32.mrb[0].mxu0
      %v1901 = vadd.f32 %v1434, %v1900
      %v1902 = vpop.f32.mrb[0].mxu0
      %1903 = vmatprep.mubr.f32.mxu0 0.0
      %1904 = vmatmul.mubr.f32.gmra.mrb[0].mxu0 %v1563
      %v1905 = vpop.f32.mrb[0].mxu0
      %v1906 = vadd.f32 %v1434, %v1905
      %v1907 = vpop.f32.mrb[0].mxu0
      %1908 = vmatprep.mubr.f32.mxu0 0.0
      %1909 = vmatmul.mubr.f32.gmra.mrb[0].mxu0 %v1566
      %v1910 = vpop.f32.mrb[0].mxu0
      %v1911 = vadd.f32 %v1434, %v1910
      %v1912 = vpop.f32.mrb[0].mxu0
      %1913 = vmatprep.mubr.f32.mxu0 0.0
      %1914 = vmatmul.mubr.f32.gmra.mrb[0].mxu0 %v1569
      %v1915 = vpop.f32.mrb[0].mxu0
      %v1916 = vadd.f32 %v1434, %v1915
      %v1917 = vpop.f32.mrb[0].mxu0
      %1918 = vmatprep.mubr.f32.mxu0 0.0
      %1919 = vmatmul.mubr.f32.gmra.mrb[0].mxu0 %v1572
      %v1920 = vpop.f32.mrb[0].mxu0
      %v1921 = vadd.f32 %v1434, %v1920
      %v1922 = vpop.f32.mrb[0].mxu0
      %1923 = vmatprep.mubr.f32.mxu0 0.0
      %1924 = vmatmul.mubr.f32.gmra.mrb[0].mxu0 %v1575
      %v1925 = vpop.f32.mrb[0].mxu0
      %v1926 = vadd.f32 %v1434, %v1925
      %v1927 = vpop.f32.mrb[0].mxu0
      %1928 = vmatprep.mubr.f32.mxu0 0.0
      %1929 = vmatmul.mubr.f32.gmra.mrb[0].mxu0 %v1578
      %v1930 = vpop.f32.mrb[0].mxu0
      %v1931 = vadd.f32 %v1434, %v1930
      %v1932 = vpop.f32.mrb[0].mxu0
      %1933 = vmatprep.mubr.f32.mxu0 0.0
      %1934 = vmatmul.mubr.f32.gmra.mrb[0].mxu0 %v1581
      %v1935 = vpop.f32.mrb[0].mxu0
      %v1936 = vadd.f32 %v1434, %v1935
      %v1937 = vpop.f32.mrb[0].mxu0
      %1938 = vmatprep.mubr.f32.mxu0 0.0
      %1939 = vmatmul.mubr.f32.gmra.mrb[0].mxu0 %v1584
      %v1940 = vpop.f32.mrb[0].mxu0
      %v1941 = vadd.f32 %v1434, %v1940
      %v1942 = vpop.f32.mrb[0].mxu0
      %1943 = vmatprep.mubr.f32.mxu0 0.0
      %1944 = vmatmul.mubr.f32.gmra.mrb[0].mxu0 %v1587
      %v1945 = vpop.f32.mrb[0].mxu0
      %v1946 = vadd.f32 %v1434, %v1945
      %v1947 = vpop.f32.mrb[0].mxu0
      %1948 = vmatprep.mubr.f32.mxu0 0.0
      %1949 = vmatmul.mubr.f32.gmra.mrb[0].mxu0 %v1590
      %v1950 = vpop.f32.mrb[0].mxu0
      %v1951 = vadd.f32 %v1434, %v1950
      %v1952 = vpop.f32.mrb[0].mxu0
      %1953 = vmatprep.mubr.f32.mxu0 0.0
      %1954 = vmatmul.mubr.f32.gmra.mrb[0].mxu0 %v1593
      %v1955 = vpop.f32.mrb[0].mxu0
      %v1956 = vadd.f32 %v1434, %v1955
      %v1957 = vpop.f32.mrb[0].mxu0
      %1958 = vmatprep.mubr.f32.mxu0 0.0
      %1959 = vmatmul.mubr.f32.gmra.mrb[0].mxu0 %v1596
      %v1960 = vpop.f32.mrb[0].mxu0
      %v1961 = vadd.f32 %v1434, %v1960
      %v1962 = vpop.f32.mrb[0].mxu0
      %1963 = vmatprep.mubr.f32.mxu0 0.0
      %1964 = vmatmul.mubr.f32.gmra.mrb[0].mxu0 %v1599
      %v1965 = vpop.f32.mrb[0].mxu0
      %v1966 = vadd.f32 %v1434, %v1965
      %v1967 = vpop.f32.mrb[0].mxu0
      %1968 = vmatprep.mubr.f32.mxu0 0.0
      %1969 = vmatmul.mubr.f32.gmra.mrb[0].mxu0 %v1602
      %v1970 = vpop.f32.mrb[0].mxu0
      %v1971 = vadd.f32 %v1434, %v1970
      %v1972 = vpop.f32.mrb[0].mxu0
      %1973 = vmatprep.mubr.f32.mxu0 0.0
      %1974 = vmatmul.mubr.f32.gmra.mrb[0].mxu0 %v1605
      %v1975 = vpop.f32.mrb[0].mxu0
      %v1976 = vadd.f32 %v1434, %v1975
      %v1977 = vpop.f32.mrb[0].mxu0
      %1978 = vmatprep.mubr.f32.mxu0 0.0
      %1979 = vmatmul.mubr.f32.gmra.mrb[0].mxu0 %v1608
      %v1980 = vpop.f32.mrb[0].mxu0
      %v1981 = vadd.f32 %v1434, %v1980
      %v1982 = vpop.f32.mrb[0].mxu0
      %1983 = vmatprep.mubr.f32.mxu0 0.0
      %1984 = vmatmul.mubr.f32.gmra.mrb[0].mxu0 %v1611
      %v1985 = vpop.f32.mrb[0].mxu0
      %v1986 = vadd.f32 %v1434, %v1985
      %v1987 = vpop.f32.mrb[0].mxu0
      %1988 = vmatprep.mubr.f32.mxu0 0.0
      %1989 = vmatmul.mubr.f32.gmra.mrb[0].mxu0 %v1614
      %v1990 = vpop.f32.mrb[0].mxu0
      %v1991 = vadd.f32 %v1434, %v1990
      %v1992 = vpop.f32.mrb[0].mxu0
      %1993 = vmatprep.mubr.f32.mxu0 0.0
      %1994 = vmatmul.mubr.f32.gmra.mrb[0].mxu0 %v1617
      %v1995 = vpop.f32.mrb[0].mxu0
      %v1996 = vadd.f32 %v1434, %v1995
      %v1997 = vpop.f32.mrb[0].mxu0
      %1998 = vmatprep.mubr.f32.mxu0 0.0
      %1999 = vmatmul.mubr.f32.gmra.mrb[0].mxu0 %v1620
      %v2000 = vpop.f32.mrb[0].mxu0
      %v2001 = vadd.f32 %v1434, %v2000
      %v2002 = vpop.f32.mrb[0].mxu0
      %2003 = vmatprep.mubr.f32.mxu0 0.0
      %2004 = vmatmul.mubr.f32.gmra.mrb[0].mxu0 %v1623
      %v2005 = vpop.f32.mrb[0].mxu0
      %v2006 = vadd.f32 %v1434, %v2005
      %v2007 = vpop.f32.mrb[0].mxu0
      %2008 = vdwg.mxu0
      %v2009 = vmax.f32 %v1696, 0.0
      %v2010 = vmax.f32 %v1701, 0.0
      %v2011 = vmax.f32 %v1706, 0.0
      %v2012 = vmax.f32 %v1711, 0.0
      %v2013 = vmax.f32 %v1716, 0.0
      %v2014 = vmax.f32 %v1721, 0.0
      %v2015 = vmax.f32 %v1726, 0.0
      %v2016 = vmax.f32 %v1731, 0.0
      %v2017 = vmax.f32 %v1736, 0.0
      %v2018 = vmax.f32 %v1741, 0.0
      %v2019 = vmax.f32 %v1746, 0.0
      %v2020 = vmax.f32 %v1751, 0.0
      %v2021 = vmax.f32 %v1756, 0.0
      %v2022 = vmax.f32 %v1761, 0.0
      %v2023 = vmax.f32 %v1766, 0.0
      %v2024 = vmax.f32 %v1771, 0.0
      %v2025 = vmax.f32 %v1776, 0.0
      %v2026 = vmax.f32 %v1781, 0.0
      %v2027 = vmax.f32 %v1786, 0.0
      %v2028 = vmax.f32 %v1791, 0.0
      %v2029 = vmax.f32 %v1796, 0.0
      %v2030 = vmax.f32 %v1801, 0.0
      %v2031 = vmax.f32 %v1806, 0.0
      %v2032 = vmax.f32 %v1811, 0.0
      %v2033 = vmax.f32 %v1816, 0.0
      %v2034 = vmax.f32 %v1821, 0.0
      %v2035 = vmax.f32 %v1826, 0.0
      %v2036 = vmax.f32 %v1831, 0.0
      %v2037 = vmax.f32 %v1836, 0.0
      %v2038 = vmax.f32 %v1841, 0.0
      %v2039 = vmax.f32 %v1846, 0.0
      %v2040 = vmax.f32 %v1851, 0.0
      %v2041 = vmax.f32 %v1856, 0.0
      %v2042 = vmax.f32 %v1861, 0.0
      %v2043 = vmax.f32 %v1866, 0.0
      %v2044 = vmax.f32 %v1871, 0.0
      %v2045 = vmax.f32 %v1876, 0.0
      %v2046 = vmax.f32 %v1881, 0.0
      %v2047 = vmax.f32 %v1886, 0.0
      %v2048 = vmax.f32 %v1891, 0.0
      %v2049 = vmax.f32 %v1896, 0.0
      %v2050 = vmax.f32 %v1901, 0.0
      %v2051 = vmax.f32 %v1906, 0.0
      %v2052 = vmax.f32 %v1911, 0.0
      %v2053 = vmax.f32 %v1916, 0.0
      %v2054 = vmax.f32 %v1921, 0.0
      %v2055 = vmax.f32 %v1926, 0.0
      %v2056 = vmax.f32 %v1931, 0.0
      %v2057 = vmax.f32 %v1936, 0.0
      %v2058 = vmax.f32 %v1941, 0.0
      %v2059 = vmax.f32 %v1946, 0.0
      %v2060 = vmax.f32 %v1951, 0.0
      %v2061 = vmax.f32 %v1956, 0.0
      %v2062 = vmax.f32 %v1961, 0.0
      %v2063 = vmax.f32 %v1966, 0.0
      %v2064 = vmax.f32 %v1971, 0.0
      %v2065 = vmax.f32 %v1976, 0.0
      %v2066 = vmax.f32 %v1981, 0.0
      %v2067 = vmax.f32 %v1986, 0.0
      %v2068 = vmax.f32 %v1991, 0.0
      %v2069 = vmax.f32 %v1996, 0.0
      %v2070 = vmax.f32 %v2001, 0.0
      %v2071 = vmax.f32 %v2006, 0.0
      %2072 = vst.msk [vmem:[#allocation7] sm:$0xff] %vm534, %v2009
      %2073 = vst.msk [vmem:[#allocation7 + $0x8] sm:$0xff] %vm534, %v2010
      %2074 = vst.msk [vmem:[#allocation7 + $0x10] sm:$0xff] %vm534, %v2011
      %2075 = vst.msk [vmem:[#allocation7 + $0x18] sm:$0xff] %vm534, %v2012
      %2076 = vst.msk [vmem:[#allocation7 + $0x20] sm:$0xff] %vm534, %v2013
      %2077 = vst.msk [vmem:[#allocation7 + $0x28] sm:$0xff] %vm534, %v2014
      %2078 = vst.msk [vmem:[#allocation7 + $0x30] sm:$0xff] %vm534, %v2015
      %2079 = vst.msk [vmem:[#allocation7 + $0x38] sm:$0xff] %vm534, %v2016
      %2080 = vst.msk [vmem:[#allocation7 + $0x40] sm:$0xff] %vm534, %v2017
      %2081 = vst.msk [vmem:[#allocation7 + $0x48] sm:$0xff] %vm534, %v2018
      %2082 = vst.msk [vmem:[#allocation7 + $0x50] sm:$0xff] %vm534, %v2019
      %2083 = vst.msk [vmem:[#allocation7 + $0x58] sm:$0xff] %vm534, %v2020
      %2084 = vst.msk [vmem:[#allocation7 + $0x60] sm:$0xff] %vm534, %v2021
      %2085 = vst.msk [vmem:[#allocation7 + $0x68] sm:$0xff] %vm534, %v2022
      %2086 = vst.msk [vmem:[#allocation7 + $0x70] sm:$0xff] %vm534, %v2023
      %2087 = vst.msk [vmem:[#allocation7 + $0x78] sm:$0xff] %vm534, %v2024
      %2088 = vst.msk [vmem:[#allocation7 + $0x80] sm:$0xff] %vm534, %v2025
      %2089 = vst.msk [vmem:[#allocation7 + $0x88] sm:$0xff] %vm534, %v2026
      %2090 = vst.msk [vmem:[#allocation7 + $0x90] sm:$0xff] %vm534, %v2027
      %2091 = vst.msk [vmem:[#allocation7 + $0x98] sm:$0xff] %vm534, %v2028
      %2092 = vst.msk [vmem:[#allocation7 + $0xa0] sm:$0xff] %vm534, %v2029
      %2093 = vst.msk [vmem:[#allocation7 + $0xa8] sm:$0xff] %vm534, %v2030
      %2094 = vst.msk [vmem:[#allocation7 + $0xb0] sm:$0xff] %vm534, %v2031
      %2095 = vst.msk [vmem:[#allocation7 + $0xb8] sm:$0xff] %vm534, %v2032
      %2096 = vst.msk [vmem:[#allocation7 + $0xc0] sm:$0xff] %vm534, %v2033
      %2097 = vst.msk [vmem:[#allocation7 + $0xc8] sm:$0xff] %vm534, %v2034
      %2098 = vst.msk [vmem:[#allocation7 + $0xd0] sm:$0xff] %vm534, %v2035
      %2099 = vst.msk [vmem:[#allocation7 + $0xd8] sm:$0xff] %vm534, %v2036
      %2100 = vst.msk [vmem:[#allocation7 + $0xe0] sm:$0xff] %vm534, %v2037
      %2101 = vst.msk [vmem:[#allocation7 + $0xe8] sm:$0xff] %vm534, %v2038
      %2102 = vst.msk [vmem:[#allocation7 + $0xf0] sm:$0xff] %vm534, %v2039
      %2103 = vst.msk [vmem:[#allocation7 + $0xf8] sm:$0xff] %vm534, %v2040
      %2104 = vst.msk [vmem:[#allocation7 + $0x100] sm:$0xff] %vm534, %v2041
      %2105 = vst.msk [vmem:[#allocation7 + $0x108] sm:$0xff] %vm534, %v2042
      %2106 = vst.msk [vmem:[#allocation7 + $0x110] sm:$0xff] %vm534, %v2043
      %2107 = vst.msk [vmem:[#allocation7 + $0x118] sm:$0xff] %vm534, %v2044
      %2108 = vst.msk [vmem:[#allocation7 + $0x120] sm:$0xff] %vm534, %v2045
      %2109 = vst.msk [vmem:[#allocation7 + $0x128] sm:$0xff] %vm534, %v2046
      %2110 = vst.msk [vmem:[#allocation7 + $0x130] sm:$0xff] %vm534, %v2047
      %2111 = vst.msk [vmem:[#allocation7 + $0x138] sm:$0xff] %vm534, %v2048
      %2112 = vst.msk [vmem:[#allocation7 + $0x140] sm:$0xff] %vm534, %v2049
      %2113 = vst.msk [vmem:[#allocation7 + $0x148] sm:$0xff] %vm534, %v2050
      %2114 = vst.msk [vmem:[#allocation7 + $0x150] sm:$0xff] %vm534, %v2051
      %2115 = vst.msk [vmem:[#allocation7 + $0x158] sm:$0xff] %vm534, %v2052
      %2116 = vst.msk [vmem:[#allocation7 + $0x160] sm:$0xff] %vm534, %v2053
      %2117 = vst.msk [vmem:[#allocation7 + $0x168] sm:$0xff] %vm534, %v2054
      %2118 = vst.msk [vmem:[#allocation7 + $0x170] sm:$0xff] %vm534, %v2055
      %2119 = vst.msk [vmem:[#allocation7 + $0x178] sm:$0xff] %vm534, %v2056
      %2120 = vst.msk [vmem:[#allocation7 + $0x180] sm:$0xff] %vm534, %v2057
      %2121 = vst.msk [vmem:[#allocation7 + $0x188] sm:$0xff] %vm534, %v2058
      %2122 = vst.msk [vmem:[#allocation7 + $0x190] sm:$0xff] %vm534, %v2059
      %2123 = vst.msk [vmem:[#allocation7 + $0x198] sm:$0xff] %vm534, %v2060
      %2124 = vst.msk [vmem:[#allocation7 + $0x1a0] sm:$0xff] %vm534, %v2061
      %2125 = vst.msk [vmem:[#allocation7 + $0x1a8] sm:$0xff] %vm534, %v2062
      %2126 = vst.msk [vmem:[#allocation7 + $0x1b0] sm:$0xff] %vm534, %v2063
      %2127 = vst.msk [vmem:[#allocation7 + $0x1b8] sm:$0xff] %vm534, %v2064
      %2128 = vst.msk [vmem:[#allocation7 + $0x1c0] sm:$0xff] %vm534, %v2065
      %2129 = vst.msk [vmem:[#allocation7 + $0x1c8] sm:$0xff] %vm534, %v2066
      %2130 = vst.msk [vmem:[#allocation7 + $0x1d0] sm:$0xff] %vm534, %v2067
      %2131 = vst.msk [vmem:[#allocation7 + $0x1d8] sm:$0xff] %vm534, %v2068
      %2132 = vst.msk [vmem:[#allocation7 + $0x1e0] sm:$0xff] %vm534, %v2069
      %2133 = vst.msk [vmem:[#allocation7 + $0x1e8] sm:$0xff] %vm534, %v2070
      %2134 = vst.msk [vmem:[#allocation7 + $0x1f0] sm:$0xf] %vm784, %v2071
      %v2135 = vld [vmem:[#allocation7] ss:$8 sm:$0xf]
      %v2136 = vld [vmem:[#allocation7] ss:$8 sm:$0xf0]
      %v2137 = vor.u32 %v2135, %v2136
      %s2138 = scalar_lea.vmem [#allocation7], 64
      %v2139 = vld [vmem:[%s2138] ss:$8 sm:$0xf]
      %v2140 = vld [vmem:[%s2138] ss:$8 sm:$0xf0]
      %v2141 = vor.u32 %v2139, %v2140
      %s2142 = scalar_lea.vmem [#allocation7], 128
      %v2143 = vld [vmem:[%s2142] ss:$8 sm:$0xf]
      %v2144 = vld [vmem:[%s2142] ss:$8 sm:$0xf0]
      %v2145 = vor.u32 %v2143, %v2144
      %s2146 = scalar_lea.vmem [#allocation7], 192
      %v2147 = vld [vmem:[%s2146] ss:$8 sm:$0xf]
      %v2148 = vld [vmem:[%s2146] ss:$8 sm:$0xf0]
      %v2149 = vor.u32 %v2147, %v2148
      %s2150 = scalar_lea.vmem [#allocation7], 256
      %v2151 = vld [vmem:[%s2150] ss:$8 sm:$0xf]
      %v2152 = vld [vmem:[%s2150] ss:$8 sm:$0xf0]
      %v2153 = vor.u32 %v2151, %v2152
      %s2154 = scalar_lea.vmem [#allocation7], 320
      %v2155 = vld [vmem:[%s2154] ss:$8 sm:$0xf]
      %v2156 = vld [vmem:[%s2154] ss:$8 sm:$0xf0]
      %v2157 = vor.u32 %v2155, %v2156
      %s2158 = scalar_lea.vmem [#allocation7], 384
      %v2159 = vld [vmem:[%s2158] ss:$8 sm:$0xf]
      %v2160 = vld [vmem:[%s2158] ss:$8 sm:$0xf0]
      %v2161 = vor.u32 %v2159, %v2160
      %s2162 = scalar_lea.vmem [#allocation7], 448
      %v2163 = vld [vmem:[%s2162] ss:$8 sm:$0xf]
      %v2164 = vld [vmem:[%s2162] ss:$8 sm:$0x30]
      %v2165 = vor.u32 %v2163, %v2164
      %s2166 = scalar_lea.vmem [#allocation7], 1
      %v2167 = vld [vmem:[%s2166] ss:$8 sm:$0xf]
      %v2168 = vld [vmem:[%s2166] ss:$8 sm:$0xf0]
      %v2169 = vor.u32 %v2167, %v2168
      %s2170 = scalar_lea.vmem [#allocation7], 65
      %v2171 = vld [vmem:[%s2170] ss:$8 sm:$0xf]
      %v2172 = vld [vmem:[%s2170] ss:$8 sm:$0xf0]
      %v2173 = vor.u32 %v2171, %v2172
      %s2174 = scalar_lea.vmem [#allocation7], 129
      %v2175 = vld [vmem:[%s2174] ss:$8 sm:$0xf]
      %v2176 = vld [vmem:[%s2174] ss:$8 sm:$0xf0]
      %v2177 = vor.u32 %v2175, %v2176
      %s2178 = scalar_lea.vmem [#allocation7], 193
      %v2179 = vld [vmem:[%s2178] ss:$8 sm:$0xf]
      %v2180 = vld [vmem:[%s2178] ss:$8 sm:$0xf0]
      %v2181 = vor.u32 %v2179, %v2180
      %s2182 = scalar_lea.vmem [#allocation7], 257
      %v2183 = vld [vmem:[%s2182] ss:$8 sm:$0xf]
      %v2184 = vld [vmem:[%s2182] ss:$8 sm:$0xf0]
      %v2185 = vor.u32 %v2183, %v2184
      %s2186 = scalar_lea.vmem [#allocation7], 321
      %v2187 = vld [vmem:[%s2186] ss:$8 sm:$0xf]
      %v2188 = vld [vmem:[%s2186] ss:$8 sm:$0xf0]
      %v2189 = vor.u32 %v2187, %v2188
      %s2190 = scalar_lea.vmem [#allocation7], 385
      %v2191 = vld [vmem:[%s2190] ss:$8 sm:$0xf]
      %v2192 = vld [vmem:[%s2190] ss:$8 sm:$0xf0]
      %v2193 = vor.u32 %v2191, %v2192
      %s2194 = scalar_lea.vmem [#allocation7], 449
      %v2195 = vld [vmem:[%s2194] ss:$8 sm:$0xf]
      %v2196 = vld [vmem:[%s2194] ss:$8 sm:$0x30]
      %v2197 = vor.u32 %v2195, %v2196
      %v2198 = vmax.f32 %v2137, %v2169
      %v2199 = vmax.f32 %v2141, %v2173
      %v2200 = vmax.f32 %v2145, %v2177
      %v2201 = vmax.f32 %v2149, %v2181
      %v2202 = vmax.f32 %v2153, %v2185
      %v2203 = vmax.f32 %v2157, %v2189
      %v2204 = vmax.f32 %v2161, %v2193
      %v2205 = vmax.f32 %v2165, %v2197
      %s2206 = scalar_lea.vmem [#allocation7], 2
      %v2207 = vld [vmem:[%s2206] ss:$8 sm:$0xf]
      %v2208 = vld [vmem:[%s2206] ss:$8 sm:$0xf0]
      %v2209 = vor.u32 %v2207, %v2208
      %s2210 = scalar_lea.vmem [#allocation7], 66
      %v2211 = vld [vmem:[%s2210] ss:$8 sm:$0xf]
      %v2212 = vld [vmem:[%s2210] ss:$8 sm:$0xf0]
      %v2213 = vor.u32 %v2211, %v2212
      %s2214 = scalar_lea.vmem [#allocation7], 130
      %v2215 = vld [vmem:[%s2214] ss:$8 sm:$0xf]
      %v2216 = vld [vmem:[%s2214] ss:$8 sm:$0xf0]
      %v2217 = vor.u32 %v2215, %v2216
      %s2218 = scalar_lea.vmem [#allocation7], 194
      %v2219 = vld [vmem:[%s2218] ss:$8 sm:$0xf]
      %v2220 = vld [vmem:[%s2218] ss:$8 sm:$0xf0]
      %v2221 = vor.u32 %v2219, %v2220
      %s2222 = scalar_lea.vmem [#allocation7], 258
      %v2223 = vld [vmem:[%s2222] ss:$8 sm:$0xf]
      %v2224 = vld [vmem:[%s2222] ss:$8 sm:$0xf0]
      %v2225 = vor.u32 %v2223, %v2224
      %s2226 = scalar_lea.vmem [#allocation7], 322
      %v2227 = vld [vmem:[%s2226] ss:$8 sm:$0xf]
      %v2228 = vld [vmem:[%s2226] ss:$8 sm:$0xf0]
      %v2229 = vor.u32 %v2227, %v2228
      %s2230 = scalar_lea.vmem [#allocation7], 386
      %v2231 = vld [vmem:[%s2230] ss:$8 sm:$0xf]
      %v2232 = vld [vmem:[%s2230] ss:$8 sm:$0xf0]
      %v2233 = vor.u32 %v2231, %v2232
      %s2234 = scalar_lea.vmem [#allocation7], 450
      %v2235 = vld [vmem:[%s2234] ss:$8 sm:$0xf]
      %v2236 = vld [vmem:[%s2234] ss:$8 sm:$0x30]
      %v2237 = vor.u32 %v2235, %v2236
      %v2238 = vmax.f32 %v2198, %v2209
      %v2239 = vmax.f32 %v2199, %v2213
      %v2240 = vmax.f32 %v2200, %v2217
      %v2241 = vmax.f32 %v2201, %v2221
      %v2242 = vmax.f32 %v2202, %v2225
      %v2243 = vmax.f32 %v2203, %v2229
      %v2244 = vmax.f32 %v2204, %v2233
      %v2245 = vmax.f32 %v2205, %v2237
      %s2246 = scalar_lea.vmem [#allocation7], 3
      %v2247 = vld [vmem:[%s2246] ss:$8 sm:$0xf]
      %v2248 = vld [vmem:[%s2246] ss:$8 sm:$0xf0]
      %v2249 = vor.u32 %v2247, %v2248
      %s2250 = scalar_lea.vmem [#allocation7], 67
      %v2251 = vld [vmem:[%s2250] ss:$8 sm:$0xf]
      %v2252 = vld [vmem:[%s2250] ss:$8 sm:$0xf0]
      %v2253 = vor.u32 %v2251, %v2252
      %s2254 = scalar_lea.vmem [#allocation7], 131
      %v2255 = vld [vmem:[%s2254] ss:$8 sm:$0xf]
      %v2256 = vld [vmem:[%s2254] ss:$8 sm:$0xf0]
      %v2257 = vor.u32 %v2255, %v2256
      %s2258 = scalar_lea.vmem [#allocation7], 195
      %v2259 = vld [vmem:[%s2258] ss:$8 sm:$0xf]
      %v2260 = vld [vmem:[%s2258] ss:$8 sm:$0xf0]
      %v2261 = vor.u32 %v2259, %v2260
      %s2262 = scalar_lea.vmem [#allocation7], 259
      %v2263 = vld [vmem:[%s2262] ss:$8 sm:$0xf]
      %v2264 = vld [vmem:[%s2262] ss:$8 sm:$0xf0]
      %v2265 = vor.u32 %v2263, %v2264
      %s2266 = scalar_lea.vmem [#allocation7], 323
      %v2267 = vld [vmem:[%s2266] ss:$8 sm:$0xf]
      %v2268 = vld [vmem:[%s2266] ss:$8 sm:$0xf0]
      %v2269 = vor.u32 %v2267, %v2268
      %s2270 = scalar_lea.vmem [#allocation7], 387
      %v2271 = vld [vmem:[%s2270] ss:$8 sm:$0xf]
      %v2272 = vld [vmem:[%s2270] ss:$8 sm:$0xf0]
      %v2273 = vor.u32 %v2271, %v2272
      %s2274 = scalar_lea.vmem [#allocation7], 451
      %v2275 = vld [vmem:[%s2274] ss:$8 sm:$0xf]
      %v2276 = vld [vmem:[%s2274] ss:$8 sm:$0x30]
      %v2277 = vor.u32 %v2275, %v2276
      %v2278 = vmax.f32 %v2238, %v2249
      %v2279 = vmax.f32 %v2239, %v2253
      %v2280 = vmax.f32 %v2240, %v2257
      %v2281 = vmax.f32 %v2241, %v2261
      %v2282 = vmax.f32 %v2242, %v2265
      %v2283 = vmax.f32 %v2243, %v2269
      %v2284 = vmax.f32 %v2244, %v2273
      %v2285 = vmax.f32 %v2245, %v2277
      %s2286 = scalar_lea.vmem [#allocation7], 4
      %v2287 = vld [vmem:[%s2286] ss:$8 sm:$0xf]
      %v2288 = vld [vmem:[%s2286] ss:$8 sm:$0xf0]
      %v2289 = vor.u32 %v2287, %v2288
      %s2290 = scalar_lea.vmem [#allocation7], 68
      %v2291 = vld [vmem:[%s2290] ss:$8 sm:$0xf]
      %v2292 = vld [vmem:[%s2290] ss:$8 sm:$0xf0]
      %v2293 = vor.u32 %v2291, %v2292
      %s2294 = scalar_lea.vmem [#allocation7], 132
      %v2295 = vld [vmem:[%s2294] ss:$8 sm:$0xf]
      %v2296 = vld [vmem:[%s2294] ss:$8 sm:$0xf0]
      %v2297 = vor.u32 %v2295, %v2296
      %s2298 = scalar_lea.vmem [#allocation7], 196
      %v2299 = vld [vmem:[%s2298] ss:$8 sm:$0xf]
      %v2300 = vld [vmem:[%s2298] ss:$8 sm:$0xf0]
      %v2301 = vor.u32 %v2299, %v2300
      %s2302 = scalar_lea.vmem [#allocation7], 260
      %v2303 = vld [vmem:[%s2302] ss:$8 sm:$0xf]
      %v2304 = vld [vmem:[%s2302] ss:$8 sm:$0xf0]
      %v2305 = vor.u32 %v2303, %v2304
      %s2306 = scalar_lea.vmem [#allocation7], 324
      %v2307 = vld [vmem:[%s2306] ss:$8 sm:$0xf]
      %v2308 = vld [vmem:[%s2306] ss:$8 sm:$0xf0]
      %v2309 = vor.u32 %v2307, %v2308
      %s2310 = scalar_lea.vmem [#allocation7], 388
      %v2311 = vld [vmem:[%s2310] ss:$8 sm:$0xf]
      %v2312 = vld [vmem:[%s2310] ss:$8 sm:$0xf0]
      %v2313 = vor.u32 %v2311, %v2312
      %s2314 = scalar_lea.vmem [#allocation7], 452
      %v2315 = vld [vmem:[%s2314] ss:$8 sm:$0xf]
      %v2316 = vld [vmem:[%s2314] ss:$8 sm:$0x30]
      %v2317 = vor.u32 %v2315, %v2316
      %v2318 = vmax.f32 %v2278, %v2289
      %v2319 = vmax.f32 %v2279, %v2293
      %v2320 = vmax.f32 %v2280, %v2297
      %v2321 = vmax.f32 %v2281, %v2301
      %v2322 = vmax.f32 %v2282, %v2305
      %v2323 = vmax.f32 %v2283, %v2309
      %v2324 = vmax.f32 %v2284, %v2313
      %v2325 = vmax.f32 %v2285, %v2317
      %s2326 = scalar_lea.vmem [#allocation7], 5
      %v2327 = vld [vmem:[%s2326] ss:$8 sm:$0xf]
      %v2328 = vld [vmem:[%s2326] ss:$8 sm:$0xf0]
      %v2329 = vor.u32 %v2327, %v2328
      %s2330 = scalar_lea.vmem [#allocation7], 69
      %v2331 = vld [vmem:[%s2330] ss:$8 sm:$0xf]
      %v2332 = vld [vmem:[%s2330] ss:$8 sm:$0xf0]
      %v2333 = vor.u32 %v2331, %v2332
      %s2334 = scalar_lea.vmem [#allocation7], 133
      %v2335 = vld [vmem:[%s2334] ss:$8 sm:$0xf]
      %v2336 = vld [vmem:[%s2334] ss:$8 sm:$0xf0]
      %v2337 = vor.u32 %v2335, %v2336
      %s2338 = scalar_lea.vmem [#allocation7], 197
      %v2339 = vld [vmem:[%s2338] ss:$8 sm:$0xf]
      %v2340 = vld [vmem:[%s2338] ss:$8 sm:$0xf0]
      %v2341 = vor.u32 %v2339, %v2340
      %s2342 = scalar_lea.vmem [#allocation7], 261
      %v2343 = vld [vmem:[%s2342] ss:$8 sm:$0xf]
      %v2344 = vld [vmem:[%s2342] ss:$8 sm:$0xf0]
      %v2345 = vor.u32 %v2343, %v2344
      %s2346 = scalar_lea.vmem [#allocation7], 325
      %v2347 = vld [vmem:[%s2346] ss:$8 sm:$0xf]
      %v2348 = vld [vmem:[%s2346] ss:$8 sm:$0xf0]
      %v2349 = vor.u32 %v2347, %v2348
      %s2350 = scalar_lea.vmem [#allocation7], 389
      %v2351 = vld [vmem:[%s2350] ss:$8 sm:$0xf]
      %v2352 = vld [vmem:[%s2350] ss:$8 sm:$0xf0]
      %v2353 = vor.u32 %v2351, %v2352
      %s2354 = scalar_lea.vmem [#allocation7], 453
      %v2355 = vld [vmem:[%s2354] ss:$8 sm:$0xf]
      %v2356 = vld [vmem:[%s2354] ss:$8 sm:$0x30]
      %v2357 = vor.u32 %v2355, %v2356
      %v2358 = vmax.f32 %v2318, %v2329
      %v2359 = vmax.f32 %v2319, %v2333
      %v2360 = vmax.f32 %v2320, %v2337
      %v2361 = vmax.f32 %v2321, %v2341
      %v2362 = vmax.f32 %v2322, %v2345
      %v2363 = vmax.f32 %v2323, %v2349
      %v2364 = vmax.f32 %v2324, %v2353
      %v2365 = vmax.f32 %v2325, %v2357
      %s2366 = scalar_lea.vmem [#allocation7], 6
      %v2367 = vld [vmem:[%s2366] ss:$8 sm:$0xf]
      %v2368 = vld [vmem:[%s2366] ss:$8 sm:$0xf0]
      %v2369 = vor.u32 %v2367, %v2368
      %s2370 = scalar_lea.vmem [#allocation7], 70
      %v2371 = vld [vmem:[%s2370] ss:$8 sm:$0xf]
      %v2372 = vld [vmem:[%s2370] ss:$8 sm:$0xf0]
      %v2373 = vor.u32 %v2371, %v2372
      %s2374 = scalar_lea.vmem [#allocation7], 134
      %v2375 = vld [vmem:[%s2374] ss:$8 sm:$0xf]
      %v2376 = vld [vmem:[%s2374] ss:$8 sm:$0xf0]
      %v2377 = vor.u32 %v2375, %v2376
      %s2378 = scalar_lea.vmem [#allocation7], 198
      %v2379 = vld [vmem:[%s2378] ss:$8 sm:$0xf]
      %v2380 = vld [vmem:[%s2378] ss:$8 sm:$0xf0]
      %v2381 = vor.u32 %v2379, %v2380
      %s2382 = scalar_lea.vmem [#allocation7], 262
      %v2383 = vld [vmem:[%s2382] ss:$8 sm:$0xf]
      %v2384 = vld [vmem:[%s2382] ss:$8 sm:$0xf0]
      %v2385 = vor.u32 %v2383, %v2384
      %s2386 = scalar_lea.vmem [#allocation7], 326
      %v2387 = vld [vmem:[%s2386] ss:$8 sm:$0xf]
      %v2388 = vld [vmem:[%s2386] ss:$8 sm:$0xf0]
      %v2389 = vor.u32 %v2387, %v2388
      %s2390 = scalar_lea.vmem [#allocation7], 390
      %v2391 = vld [vmem:[%s2390] ss:$8 sm:$0xf]
      %v2392 = vld [vmem:[%s2390] ss:$8 sm:$0xf0]
      %v2393 = vor.u32 %v2391, %v2392
      %s2394 = scalar_lea.vmem [#allocation7], 454
      %v2395 = vld [vmem:[%s2394] ss:$8 sm:$0xf]
      %v2396 = vld [vmem:[%s2394] ss:$8 sm:$0x30]
      %v2397 = vor.u32 %v2395, %v2396
      %v2398 = vmax.f32 %v2358, %v2369
      %v2399 = vmax.f32 %v2359, %v2373
      %v2400 = vmax.f32 %v2360, %v2377
      %v2401 = vmax.f32 %v2361, %v2381
      %v2402 = vmax.f32 %v2362, %v2385
      %v2403 = vmax.f32 %v2363, %v2389
      %v2404 = vmax.f32 %v2364, %v2393
      %v2405 = vmax.f32 %v2365, %v2397
      %s2406 = scalar_lea.vmem [#allocation7], 7
      %v2407 = vld [vmem:[%s2406] ss:$8 sm:$0xf]
      %v2408 = vld [vmem:[%s2406] ss:$8 sm:$0xf0]
      %v2409 = vor.u32 %v2407, %v2408
      %s2410 = scalar_lea.vmem [#allocation7], 71
      %v2411 = vld [vmem:[%s2410] ss:$8 sm:$0xf]
      %v2412 = vld [vmem:[%s2410] ss:$8 sm:$0xf0]
      %v2413 = vor.u32 %v2411, %v2412
      %s2414 = scalar_lea.vmem [#allocation7], 135
      %v2415 = vld [vmem:[%s2414] ss:$8 sm:$0xf]
      %v2416 = vld [vmem:[%s2414] ss:$8 sm:$0xf0]
      %v2417 = vor.u32 %v2415, %v2416
      %s2418 = scalar_lea.vmem [#allocation7], 199
      %v2419 = vld [vmem:[%s2418] ss:$8 sm:$0xf]
      %v2420 = vld [vmem:[%s2418] ss:$8 sm:$0xf0]
      %v2421 = vor.u32 %v2419, %v2420
      %s2422 = scalar_lea.vmem [#allocation7], 263
      %v2423 = vld [vmem:[%s2422] ss:$8 sm:$0xf]
      %v2424 = vld [vmem:[%s2422] ss:$8 sm:$0xf0]
      %v2425 = vor.u32 %v2423, %v2424
      %s2426 = scalar_lea.vmem [#allocation7], 327
      %v2427 = vld [vmem:[%s2426] ss:$8 sm:$0xf]
      %v2428 = vld [vmem:[%s2426] ss:$8 sm:$0xf0]
      %v2429 = vor.u32 %v2427, %v2428
      %s2430 = scalar_lea.vmem [#allocation7], 391
      %v2431 = vld [vmem:[%s2430] ss:$8 sm:$0xf]
      %v2432 = vld [vmem:[%s2430] ss:$8 sm:$0xf0]
      %v2433 = vor.u32 %v2431, %v2432
      %s2434 = scalar_lea.vmem [#allocation7], 455
      %v2435 = vld [vmem:[%s2434] ss:$8 sm:$0xf]
      %v2436 = vld [vmem:[%s2434] ss:$8 sm:$0x30]
      %v2437 = vor.u32 %v2435, %v2436
      %v2438 = vmax.f32 %v2398, %v2409
      %v2439 = vmax.f32 %v2399, %v2413
      %v2440 = vmax.f32 %v2400, %v2417
      %v2441 = vmax.f32 %v2401, %v2421
      %v2442 = vmax.f32 %v2402, %v2425
      %v2443 = vmax.f32 %v2403, %v2429
      %v2444 = vmax.f32 %v2404, %v2433
      %v2445 = vmax.f32 %v2405, %v2437
      %vm2446 = vcmask 124928
      %2447 = vst.msk [vmem:[#allocation8] sm:$0x7] %vm2446, 0.0
      %2448 = vst.msk [vmem:[#allocation8 + $0x41] sm:$0x7] %vm2446, 0.0
      %2449 = vst.msk [vmem:[#allocation8 + $0x3] sm:$0xff] %vm534, %v2438
      %2450 = vst.msk [vmem:[#allocation8 + $0xb] sm:$0xff] %vm534, %v2439
      %2451 = vst.msk [vmem:[#allocation8 + $0x13] sm:$0xff] %vm534, %v2440
      %2452 = vst.msk [vmem:[#allocation8 + $0x1b] sm:$0xff] %vm534, %v2441
      %2453 = vst.msk [vmem:[#allocation8 + $0x23] sm:$0xff] %vm534, %v2442
      %2454 = vst.msk [vmem:[#allocation8 + $0x2b] sm:$0xff] %vm534, %v2443
      %2455 = vst.msk [vmem:[#allocation8 + $0x33] sm:$0xff] %vm534, %v2444
      %2456 = vst.msk [vmem:[#allocation8 + $0x3b] sm:$0x3f] %vm816, %v2445
      %v2457 = vld [vmem:[#allocation8] sm:$0xff]
      %v2458 = vld [vmem:[#allocation8 + $0x8] sm:$0xff]
      %v2459 = vld [vmem:[#allocation8 + $0x10] sm:$0xff]
      %v2460 = vld [vmem:[#allocation8 + $0x18] sm:$0xff]
      %v2461 = vld [vmem:[#allocation8 + $0x20] sm:$0xff]
      %v2462 = vld [vmem:[#allocation8 + $0x28] sm:$0xff]
      %v2463 = vld [vmem:[#allocation8 + $0x30] sm:$0xff]
      %v2464 = vld [vmem:[#allocation8 + $0x38] sm:$0x1f]
      %2465 = vst.msk [vmem:[#allocation11] sm:$0xff] %vm534, %v2457
      %2466 = vst.msk [vmem:[#allocation11 + $0x10] sm:$0xff] %vm534, %v2458
      %2467 = vst.msk [vmem:[#allocation11 + $0x20] sm:$0xff] %vm534, %v2459
      %2468 = vst.msk [vmem:[#allocation11 + $0x30] sm:$0xff] %vm534, %v2460
      %2469 = vst.msk [vmem:[#allocation11 + $0x40] sm:$0xff] %vm534, %v2461
      %2470 = vst.msk [vmem:[#allocation11 + $0x50] sm:$0xff] %vm534, %v2462
      %2471 = vst.msk [vmem:[#allocation11 + $0x60] sm:$0xff] %vm534, %v2463
      %vm2472 = vcmask 126976
      %2473 = vst.msk [vmem:[#allocation11 + $0x70] sm:$0x1f] %vm2472, %v2464
      %v2474 = vld [vmem:[#allocation8 + $0x1] sm:$0xff]
      %v2475 = vld [vmem:[#allocation8 + $0x9] sm:$0xff]
      %v2476 = vld [vmem:[#allocation8 + $0x11] sm:$0xff]
      %v2477 = vld [vmem:[#allocation8 + $0x19] sm:$0xff]
      %v2478 = vld [vmem:[#allocation8 + $0x21] sm:$0xff]
      %v2479 = vld [vmem:[#allocation8 + $0x29] sm:$0xff]
      %v2480 = vld [vmem:[#allocation8 + $0x31] sm:$0xff]
      %v2481 = vld [vmem:[#allocation8 + $0x39] sm:$0x1f]
      %2490 = vrot.lane.b32.xlu0 %v2474, 16
      %v2491 = vpop.permute.xlu0 %2490
      %2492 = vrot.lane.b32.xlu0 %v2475, 16
      %v2493 = vpop.permute.xlu0 %2492
      %2494 = vrot.lane.b32.xlu0 %v2476, 16
      %v2495 = vpop.permute.xlu0 %2494
      %2496 = vrot.lane.b32.xlu0 %v2477, 16
      %v2497 = vpop.permute.xlu0 %2496
      %2498 = vrot.lane.b32.xlu0 %v2478, 16
      %v2499 = vpop.permute.xlu0 %2498
      %2500 = vrot.lane.b32.xlu0 %v2479, 16
      %v2501 = vpop.permute.xlu0 %2500
      %2502 = vrot.lane.b32.xlu0 %v2480, 16
      %v2503 = vpop.permute.xlu0 %2502
      %2504 = vrot.lane.b32.xlu0 %v2481, 16
      %v2505 = vpop.permute.xlu0 %2504
      %2514 = vst.msk [vmem:[#allocation11] sm:$0xff] %vm828, %v2491
      %2515 = vst.msk [vmem:[#allocation11 + $0x10] sm:$0xff] %vm828, %v2493
      %2516 = vst.msk [vmem:[#allocation11 + $0x20] sm:$0xff] %vm828, %v2495
      %2517 = vst.msk [vmem:[#allocation11 + $0x30] sm:$0xff] %vm828, %v2497
      %2518 = vst.msk [vmem:[#allocation11 + $0x40] sm:$0xff] %vm828, %v2499
      %2519 = vst.msk [vmem:[#allocation11 + $0x50] sm:$0xff] %vm828, %v2501
      %2520 = vst.msk [vmem:[#allocation11 + $0x60] sm:$0xff] %vm828, %v2503
      %vm2521 = vcmask 258176
      %2522 = vst.msk [vmem:[#allocation11 + $0x70] sm:$0x1f] %vm2521, %v2505
      %v2523 = vld [vmem:[#allocation8 + $0x2] sm:$0xff]
      %v2524 = vld [vmem:[#allocation8 + $0xa] sm:$0xff]
      %v2525 = vld [vmem:[#allocation8 + $0x12] sm:$0xff]
      %v2526 = vld [vmem:[#allocation8 + $0x1a] sm:$0xff]
      %v2527 = vld [vmem:[#allocation8 + $0x22] sm:$0xff]
      %v2528 = vld [vmem:[#allocation8 + $0x2a] sm:$0xff]
      %v2529 = vld [vmem:[#allocation8 + $0x32] sm:$0xff]
      %v2530 = vld [vmem:[#allocation8 + $0x3a] sm:$0x1f]
      %2539 = vrot.lane.b32.xlu0 %v2523, 32
      %v2540 = vpop.permute.xlu0 %2539
      %2541 = vrot.lane.b32.xlu0 %v2524, 32
      %v2542 = vpop.permute.xlu0 %2541
      %2543 = vrot.lane.b32.xlu0 %v2525, 32
      %v2544 = vpop.permute.xlu0 %2543
      %2545 = vrot.lane.b32.xlu0 %v2526, 32
      %v2546 = vpop.permute.xlu0 %2545
      %2547 = vrot.lane.b32.xlu0 %v2527, 32
      %v2548 = vpop.permute.xlu0 %2547
      %2549 = vrot.lane.b32.xlu0 %v2528, 32
      %v2550 = vpop.permute.xlu0 %2549
      %2551 = vrot.lane.b32.xlu0 %v2529, 32
      %v2552 = vpop.permute.xlu0 %2551
      %2553 = vrot.lane.b32.xlu0 %v2530, 32
      %v2554 = vpop.permute.xlu0 %2553
      %2563 = vst.msk [vmem:[#allocation11] sm:$0xff] %vm842, %v2540
      %2564 = vst.msk [vmem:[#allocation11 + $0x10] sm:$0xff] %vm842, %v2542
      %2565 = vst.msk [vmem:[#allocation11 + $0x20] sm:$0xff] %vm842, %v2544
      %2566 = vst.msk [vmem:[#allocation11 + $0x30] sm:$0xff] %vm842, %v2546
      %2567 = vst.msk [vmem:[#allocation11 + $0x40] sm:$0xff] %vm842, %v2548
      %2568 = vst.msk [vmem:[#allocation11 + $0x50] sm:$0xff] %vm842, %v2550
      %2569 = vst.msk [vmem:[#allocation11 + $0x60] sm:$0xff] %vm842, %v2552
      %vm2570 = vcmask 389376
      %2571 = vst.msk [vmem:[#allocation11 + $0x70] sm:$0x1f] %vm2570, %v2554
      %v2572 = vld [vmem:[#allocation8 + $0x3] sm:$0xff]
      %v2573 = vld [vmem:[#allocation8 + $0xb] sm:$0xff]
      %v2574 = vld [vmem:[#allocation8 + $0x13] sm:$0xff]
      %v2575 = vld [vmem:[#allocation8 + $0x1b] sm:$0xff]
      %v2576 = vld [vmem:[#allocation8 + $0x23] sm:$0xff]
      %v2577 = vld [vmem:[#allocation8 + $0x2b] sm:$0xff]
      %v2578 = vld [vmem:[#allocation8 + $0x33] sm:$0xff]
      %v2579 = vld [vmem:[#allocation8 + $0x3b] sm:$0x1f]
      %2588 = vrot.lane.b32.xlu0 %v2572, 48
      %v2589 = vpop.permute.xlu0 %2588
      %2590 = vrot.lane.b32.xlu0 %v2573, 48
      %v2591 = vpop.permute.xlu0 %2590
      %2592 = vrot.lane.b32.xlu0 %v2574, 48
      %v2593 = vpop.permute.xlu0 %2592
      %2594 = vrot.lane.b32.xlu0 %v2575, 48
      %v2595 = vpop.permute.xlu0 %2594
      %2596 = vrot.lane.b32.xlu0 %v2576, 48
      %v2597 = vpop.permute.xlu0 %2596
      %2598 = vrot.lane.b32.xlu0 %v2577, 48
      %v2599 = vpop.permute.xlu0 %2598
      %2600 = vrot.lane.b32.xlu0 %v2578, 48
      %v2601 = vpop.permute.xlu0 %2600
      %2602 = vrot.lane.b32.xlu0 %v2579, 48
      %v2603 = vpop.permute.xlu0 %2602
      %2612 = vst.msk [vmem:[#allocation11] sm:$0xff] %vm856, %v2589
      %2613 = vst.msk [vmem:[#allocation11 + $0x10] sm:$0xff] %vm856, %v2591
      %2614 = vst.msk [vmem:[#allocation11 + $0x20] sm:$0xff] %vm856, %v2593
      %2615 = vst.msk [vmem:[#allocation11 + $0x30] sm:$0xff] %vm856, %v2595
      %2616 = vst.msk [vmem:[#allocation11 + $0x40] sm:$0xff] %vm856, %v2597
      %2617 = vst.msk [vmem:[#allocation11 + $0x50] sm:$0xff] %vm856, %v2599
      %2618 = vst.msk [vmem:[#allocation11 + $0x60] sm:$0xff] %vm856, %v2601
      %vm2619 = vcmask 520576
      %2620 = vst.msk [vmem:[#allocation11 + $0x70] sm:$0x1f] %vm2619, %v2603
      %v2621 = vld [vmem:[#allocation8 + $0x4] sm:$0xff]
      %v2622 = vld [vmem:[#allocation8 + $0xc] sm:$0xff]
      %v2623 = vld [vmem:[#allocation8 + $0x14] sm:$0xff]
      %v2624 = vld [vmem:[#allocation8 + $0x1c] sm:$0xff]
      %v2625 = vld [vmem:[#allocation8 + $0x24] sm:$0xff]
      %v2626 = vld [vmem:[#allocation8 + $0x2c] sm:$0xff]
      %v2627 = vld [vmem:[#allocation8 + $0x34] sm:$0xff]
      %v2628 = vld [vmem:[#allocation8 + $0x3c] sm:$0x1f]
      %2637 = vrot.lane.b32.xlu0 %v2621, 64
      %v2638 = vpop.permute.xlu0 %2637
      %2639 = vrot.lane.b32.xlu0 %v2622, 64
      %v2640 = vpop.permute.xlu0 %2639
      %2641 = vrot.lane.b32.xlu0 %v2623, 64
      %v2642 = vpop.permute.xlu0 %2641
      %2643 = vrot.lane.b32.xlu0 %v2624, 64
      %v2644 = vpop.permute.xlu0 %2643
      %2645 = vrot.lane.b32.xlu0 %v2625, 64
      %v2646 = vpop.permute.xlu0 %2645
      %2647 = vrot.lane.b32.xlu0 %v2626, 64
      %v2648 = vpop.permute.xlu0 %2647
      %2649 = vrot.lane.b32.xlu0 %v2627, 64
      %v2650 = vpop.permute.xlu0 %2649
      %2651 = vrot.lane.b32.xlu0 %v2628, 64
      %v2652 = vpop.permute.xlu0 %2651
      %2661 = vst.msk [vmem:[#allocation11] sm:$0xff] %vm870, %v2638
      %2662 = vst.msk [vmem:[#allocation11 + $0x10] sm:$0xff] %vm870, %v2640
      %2663 = vst.msk [vmem:[#allocation11 + $0x20] sm:$0xff] %vm870, %v2642
      %2664 = vst.msk [vmem:[#allocation11 + $0x30] sm:$0xff] %vm870, %v2644
      %2665 = vst.msk [vmem:[#allocation11 + $0x40] sm:$0xff] %vm870, %v2646
      %2666 = vst.msk [vmem:[#allocation11 + $0x50] sm:$0xff] %vm870, %v2648
      %2667 = vst.msk [vmem:[#allocation11 + $0x60] sm:$0xff] %vm870, %v2650
      %vm2668 = vcmask 651776
      %2669 = vst.msk [vmem:[#allocation11 + $0x70] sm:$0x1f] %vm2668, %v2652
      %v2670 = vld [vmem:[#allocation8 + $0x5] sm:$0xff]
      %v2671 = vld [vmem:[#allocation8 + $0xd] sm:$0xff]
      %v2672 = vld [vmem:[#allocation8 + $0x15] sm:$0xff]
      %v2673 = vld [vmem:[#allocation8 + $0x1d] sm:$0xff]
      %v2674 = vld [vmem:[#allocation8 + $0x25] sm:$0xff]
      %v2675 = vld [vmem:[#allocation8 + $0x2d] sm:$0xff]
      %v2676 = vld [vmem:[#allocation8 + $0x35] sm:$0xff]
      %v2677 = vld [vmem:[#allocation8 + $0x3d] sm:$0x1f]
      %2686 = vrot.lane.b32.xlu0 %v2670, 80
      %v2687 = vpop.permute.xlu0 %2686
      %2688 = vrot.lane.b32.xlu0 %v2671, 80
      %v2689 = vpop.permute.xlu0 %2688
      %2690 = vrot.lane.b32.xlu0 %v2672, 80
      %v2691 = vpop.permute.xlu0 %2690
      %2692 = vrot.lane.b32.xlu0 %v2673, 80
      %v2693 = vpop.permute.xlu0 %2692
      %2694 = vrot.lane.b32.xlu0 %v2674, 80
      %v2695 = vpop.permute.xlu0 %2694
      %2696 = vrot.lane.b32.xlu0 %v2675, 80
      %v2697 = vpop.permute.xlu0 %2696
      %2698 = vrot.lane.b32.xlu0 %v2676, 80
      %v2699 = vpop.permute.xlu0 %2698
      %2700 = vrot.lane.b32.xlu0 %v2677, 80
      %v2701 = vpop.permute.xlu0 %2700
      %2710 = vst.msk [vmem:[#allocation11] sm:$0xff] %vm884, %v2687
      %2711 = vst.msk [vmem:[#allocation11 + $0x10] sm:$0xff] %vm884, %v2689
      %2712 = vst.msk [vmem:[#allocation11 + $0x20] sm:$0xff] %vm884, %v2691
      %2713 = vst.msk [vmem:[#allocation11 + $0x30] sm:$0xff] %vm884, %v2693
      %2714 = vst.msk [vmem:[#allocation11 + $0x40] sm:$0xff] %vm884, %v2695
      %2715 = vst.msk [vmem:[#allocation11 + $0x50] sm:$0xff] %vm884, %v2697
      %2716 = vst.msk [vmem:[#allocation11 + $0x60] sm:$0xff] %vm884, %v2699
      %vm2717 = vcmask 782976
      %2718 = vst.msk [vmem:[#allocation11 + $0x70] sm:$0x1f] %vm2717, %v2701
      %v2719 = vld [vmem:[#allocation8 + $0x6] sm:$0xff]
      %v2720 = vld [vmem:[#allocation8 + $0xe] sm:$0xff]
      %v2721 = vld [vmem:[#allocation8 + $0x16] sm:$0xff]
      %v2722 = vld [vmem:[#allocation8 + $0x1e] sm:$0xff]
      %v2723 = vld [vmem:[#allocation8 + $0x26] sm:$0xff]
      %v2724 = vld [vmem:[#allocation8 + $0x2e] sm:$0xff]
      %v2725 = vld [vmem:[#allocation8 + $0x36] sm:$0xff]
      %v2726 = vld [vmem:[#allocation8 + $0x3e] sm:$0x1f]
      %2735 = vrot.lane.b32.xlu0 %v2719, 96
      %v2736 = vpop.permute.xlu0 %2735
      %2737 = vrot.lane.b32.xlu0 %v2720, 96
      %v2738 = vpop.permute.xlu0 %2737
      %2739 = vrot.lane.b32.xlu0 %v2721, 96
      %v2740 = vpop.permute.xlu0 %2739
      %2741 = vrot.lane.b32.xlu0 %v2722, 96
      %v2742 = vpop.permute.xlu0 %2741
      %2743 = vrot.lane.b32.xlu0 %v2723, 96
      %v2744 = vpop.permute.xlu0 %2743
      %2745 = vrot.lane.b32.xlu0 %v2724, 96
      %v2746 = vpop.permute.xlu0 %2745
      %2747 = vrot.lane.b32.xlu0 %v2725, 96
      %v2748 = vpop.permute.xlu0 %2747
      %2749 = vrot.lane.b32.xlu0 %v2726, 96
      %v2750 = vpop.permute.xlu0 %2749
      %vm2759 = vcmask 917248
      %2760 = vst.msk [vmem:[#allocation11] sm:$0xff] %vm2759, %v2736
      %2761 = vst.msk [vmem:[#allocation11 + $0x10] sm:$0xff] %vm2759, %v2738
      %2762 = vst.msk [vmem:[#allocation11 + $0x20] sm:$0xff] %vm2759, %v2740
      %2763 = vst.msk [vmem:[#allocation11 + $0x30] sm:$0xff] %vm2759, %v2742
      %2764 = vst.msk [vmem:[#allocation11 + $0x40] sm:$0xff] %vm2759, %v2744
      %2765 = vst.msk [vmem:[#allocation11 + $0x50] sm:$0xff] %vm2759, %v2746
      %2766 = vst.msk [vmem:[#allocation11 + $0x60] sm:$0xff] %vm2759, %v2748
      %vm2767 = vcmask 914176
      %2768 = vst.msk [vmem:[#allocation11 + $0x70] sm:$0x1f] %vm2767, %v2750
      %v2769 = vld [vmem:[#allocation8 + $0x7] sm:$0xff]
      %v2770 = vld [vmem:[#allocation8 + $0xf] sm:$0xff]
      %v2771 = vld [vmem:[#allocation8 + $0x17] sm:$0xff]
      %v2772 = vld [vmem:[#allocation8 + $0x1f] sm:$0xff]
      %v2773 = vld [vmem:[#allocation8 + $0x27] sm:$0xff]
      %v2774 = vld [vmem:[#allocation8 + $0x2f] sm:$0xff]
      %v2775 = vld [vmem:[#allocation8 + $0x37] sm:$0xff]
      %v2776 = vld [vmem:[#allocation8 + $0x3f] sm:$0x1f]
      %2785 = vrot.lane.b32.xlu0 %v2769, 112
      %v2786 = vpop.permute.xlu0 %2785
      %2787 = vrot.lane.b32.xlu0 %v2770, 112
      %v2788 = vpop.permute.xlu0 %2787
      %2789 = vrot.lane.b32.xlu0 %v2771, 112
      %v2790 = vpop.permute.xlu0 %2789
      %2791 = vrot.lane.b32.xlu0 %v2772, 112
      %v2792 = vpop.permute.xlu0 %2791
      %2793 = vrot.lane.b32.xlu0 %v2773, 112
      %v2794 = vpop.permute.xlu0 %2793
      %2795 = vrot.lane.b32.xlu0 %v2774, 112
      %v2796 = vpop.permute.xlu0 %2795
      %2797 = vrot.lane.b32.xlu0 %v2775, 112
      %v2798 = vpop.permute.xlu0 %2797
      %2799 = vrot.lane.b32.xlu0 %v2776, 112
      %v2800 = vpop.permute.xlu0 %2799
      %vm2809 = vcmask 1048448
      %2810 = vst.msk [vmem:[#allocation11] sm:$0xff] %vm2809, %v2786
      %2811 = vst.msk [vmem:[#allocation11 + $0x10] sm:$0xff] %vm2809, %v2788
      %2812 = vst.msk [vmem:[#allocation11 + $0x20] sm:$0xff] %vm2809, %v2790
      %2813 = vst.msk [vmem:[#allocation11 + $0x30] sm:$0xff] %vm2809, %v2792
      %2814 = vst.msk [vmem:[#allocation11 + $0x40] sm:$0xff] %vm2809, %v2794
      %2815 = vst.msk [vmem:[#allocation11 + $0x50] sm:$0xff] %vm2809, %v2796
      %2816 = vst.msk [vmem:[#allocation11 + $0x60] sm:$0xff] %vm2809, %v2798
      %vm2817 = vcmask 1045376
      %2818 = vst.msk [vmem:[#allocation11 + $0x70] sm:$0x1f] %vm2817, %v2800
      %v2819 = vld [vmem:[#allocation11] sm:$0xff]
      %v2820 = vld [vmem:[#allocation11 + $0x10] sm:$0xff]
      %v2821 = vld [vmem:[#allocation11 + $0x20] sm:$0xff]
      %v2822 = vld [vmem:[#allocation11 + $0x30] sm:$0xff]
      %v2823 = vld [vmem:[#allocation11 + $0x40] sm:$0xff]
      %v2824 = vld [vmem:[#allocation11 + $0x50] sm:$0xff]
      %v2825 = vld [vmem:[#allocation11 + $0x60] sm:$0xff]
      %v2826 = vld [vmem:[#allocation11 + $0x70] sm:$0x1f]
      %v2827 = vld [vmem:[%s7] sm:$0xff]
      %v2828 = vld [vmem:[%s7 + $0x8] sm:$0xff]
      %v2829 = vld [vmem:[%s7 + $0x10] sm:$0xff]
      %v2830 = vld [vmem:[%s7 + $0x18] sm:$0xff]
      %v2831 = vld [vmem:[%s7 + $0x20] sm:$0xff]
      %v2832 = vld [vmem:[%s7 + $0x28] sm:$0xff]
      %v2833 = vld [vmem:[%s7 + $0x30] sm:$0xff]
      %v2834 = vld [vmem:[%s7 + $0x38] sm:$0xff]
      %v2835 = vld [vmem:[%s7 + $0x40] sm:$0xff]
      %v2836 = vld [vmem:[%s7 + $0x48] sm:$0xff]
      %v2837 = vld [vmem:[%s7 + $0x50] sm:$0xff]
      %v2838 = vld [vmem:[%s7 + $0x58] sm:$0xff]
      %v2839 = vld [vmem:[%s7 + $0x60] sm:$0xff]
      %v2840 = vld [vmem:[%s7 + $0x68] sm:$0xff]
      %v2841 = vld [vmem:[%s7 + $0x70] sm:$0xff]
      %v2842 = vld [vmem:[%s7 + $0x78] sm:$0xff]
      %v2843 = vld [vmem:[%s10 + $0x5] sm:$0x1]
      %v2844 = vlaneseq
      %v2845 = vshrl.u32 %v2844, 7
      %v2846 = vsub.s32 0, %v2845
      %v2847 = vrot.slane %v2843, %v2846
      %2848 = vmatprep.subr.mxu0 0.0
      %2849 = vmatpush1.msra.mxu0 %v2827
      %2850 = vmatprep.subr.mxu0 0.0
      %2851 = vmatpush1.msra.mxu0 %v2828
      %2852 = vmatprep.subr.mxu0 0.0
      %2853 = vmatpush1.msra.mxu0 %v2829
      %2854 = vmatprep.subr.mxu0 0.0
      %2855 = vmatpush1.msra.mxu0 %v2830
      %2856 = vmatprep.subr.mxu0 0.0
      %2857 = vmatpush1.msra.mxu0 %v2831
      %2858 = vmatprep.subr.mxu0 0.0
      %2859 = vmatpush1.msra.mxu0 %v2832
      %2860 = vmatprep.subr.mxu0 0.0
      %2861 = vmatpush1.msra.mxu0 %v2833
      %2862 = vmatprep.subr.mxu0 0.0
      %2863 = vmatpush1.msra.mxu0 %v2834
      %2864 = vmatprep.subr.mxu0 0.0
      %2865 = vmatpush1.msra.mxu0 %v2835
      %2866 = vmatprep.subr.mxu0 0.0
      %2867 = vmatpush1.msra.mxu0 %v2836
      %2868 = vmatprep.subr.mxu0 0.0
      %2869 = vmatpush1.msra.mxu0 %v2837
      %2870 = vmatprep.subr.mxu0 0.0
      %2871 = vmatpush1.msra.mxu0 %v2838
      %2872 = vmatprep.subr.mxu0 0.0
      %2873 = vmatpush1.msra.mxu0 %v2839
      %2874 = vmatprep.subr.mxu0 0.0
      %2875 = vmatpush1.msra.mxu0 %v2840
      %2876 = vmatprep.subr.mxu0 0.0
      %2877 = vmatpush1.msra.mxu0 %v2841
      %2878 = vmatprep.subr.mxu0 0.0
      %2879 = vmatpush1.msra.mxu0 %v2842
      %2880 = vmatprep.subr.mxu0 0.0
      %2881 = vmatpush1.msra.mxu0 0.0
      %2882 = vmatprep.subr.mxu0 0.0
      %2883 = vmatpush1.msra.mxu0 0.0
      %2884 = vmatprep.subr.mxu0 0.0
      %2885 = vmatpush1.msra.mxu0 0.0
      %2886 = vmatprep.subr.mxu0 0.0
      %2887 = vmatpush1.msra.mxu0 0.0
      %2888 = vmatprep.subr.mxu0 0.0
      %2889 = vmatpush1.msra.mxu0 0.0
      %2890 = vmatprep.subr.mxu0 0.0
      %2891 = vmatpush1.msra.mxu0 0.0
      %2892 = vmatprep.subr.mxu0 0.0
      %2893 = vmatpush1.msra.mxu0 0.0
      %2894 = vmatprep.subr.mxu0 0.0
      %2895 = vmatpush1.msra.mxu0 0.0
      %2896 = vmatprep.subr.mxu0 0.0
      %2897 = vmatpush1.msra.mxu0 0.0
      %2898 = vmatprep.subr.mxu0 0.0
      %2899 = vmatpush1.msra.mxu0 0.0
      %2900 = vmatprep.subr.mxu0 0.0
      %2901 = vmatpush1.msra.mxu0 0.0
      %2902 = vmatprep.subr.mxu0 0.0
      %2903 = vmatpush1.msra.mxu0 0.0
      %2904 = vmatprep.subr.mxu0 0.0
      %2905 = vmatpush1.msra.mxu0 0.0
      %2906 = vmatprep.subr.mxu0 0.0
      %2907 = vmatpush1.msra.mxu0 0.0
      %2908 = vmatprep.subr.mxu0 0.0
      %2909 = vmatpush1.msra.mxu0 0.0
      %2910 = vmatprep.subr.mxu0 0.0
      %2911 = vmatpush1.msra.mxu0 0.0
      %2912 = vmatprep.mubr.f32.mxu0 0.0
      %2913 = vmatmul.mubr.f32.gmra.mrb[0].mxu0 %v2819
      %v2914 = vpop.f32.mrb[0].mxu0
      %v2915 = vadd.f32 %v2847, %v2914
      %v2916 = vpop.f32.mrb[0].mxu0
      %2917 = vmatprep.mubr.f32.mxu0 0.0
      %2918 = vmatmul.mubr.f32.gmra.mrb[0].mxu0 %v2820
      %v2919 = vpop.f32.mrb[0].mxu0
      %v2920 = vadd.f32 %v2847, %v2919
      %v2921 = vpop.f32.mrb[0].mxu0
      %2922 = vmatprep.mubr.f32.mxu0 0.0
      %2923 = vmatmul.mubr.f32.gmra.mrb[0].mxu0 %v2821
      %v2924 = vpop.f32.mrb[0].mxu0
      %v2925 = vadd.f32 %v2847, %v2924
      %v2926 = vpop.f32.mrb[0].mxu0
      %2927 = vmatprep.mubr.f32.mxu0 0.0
      %2928 = vmatmul.mubr.f32.gmra.mrb[0].mxu0 %v2822
      %v2929 = vpop.f32.mrb[0].mxu0
      %v2930 = vadd.f32 %v2847, %v2929
      %v2931 = vpop.f32.mrb[0].mxu0
      %2932 = vmatprep.mubr.f32.mxu0 0.0
      %2933 = vmatmul.mubr.f32.gmra.mrb[0].mxu0 %v2823
      %v2934 = vpop.f32.mrb[0].mxu0
      %v2935 = vadd.f32 %v2847, %v2934
      %v2936 = vpop.f32.mrb[0].mxu0
      %2937 = vmatprep.mubr.f32.mxu0 0.0
      %2938 = vmatmul.mubr.f32.gmra.mrb[0].mxu0 %v2824
      %v2939 = vpop.f32.mrb[0].mxu0
      %v2940 = vadd.f32 %v2847, %v2939
      %v2941 = vpop.f32.mrb[0].mxu0
      %2942 = vmatprep.mubr.f32.mxu0 0.0
      %2943 = vmatmul.mubr.f32.gmra.mrb[0].mxu0 %v2825
      %v2944 = vpop.f32.mrb[0].mxu0
      %v2945 = vadd.f32 %v2847, %v2944
      %v2946 = vpop.f32.mrb[0].mxu0
      %2947 = vmatprep.mubr.f32.mxu0 0.0
      %2948 = vmatmul.mubr.f32.gmra.mrb[0].mxu0 %v2826
      %v2949 = vpop.f32.mrb[0].mxu0
      %v2950 = vadd.f32 %v2847, %v2949
      %v2951 = vpop.f32.mrb[0].mxu0
      %2952 = vdwg.mxu0
      %v2953 = vmax.f32 %v2915, 0.0
      %v2954 = vmax.f32 %v2920, 0.0
      %v2955 = vmax.f32 %v2925, 0.0
      %v2956 = vmax.f32 %v2930, 0.0
      %v2957 = vmax.f32 %v2935, 0.0
      %v2958 = vmax.f32 %v2940, 0.0
      %v2959 = vmax.f32 %v2945, 0.0
      %v2960 = vmax.f32 %v2950, 0.0
      %vm2961 = vcmask 256000
      %2962 = vst.msk [vmem:[#allocation9] sm:$0x7] %vm2961, 0.0
      %2963 = vst.msk [vmem:[#allocation9 + $0x40] sm:$0x7] %vm2961, 0.0
      %2964 = vst.msk [vmem:[#allocation9 + $0x3] sm:$0xff] %vm994, %v2953
      %2965 = vst.msk [vmem:[#allocation9 + $0xb] sm:$0xff] %vm994, %v2954
      %2966 = vst.msk [vmem:[#allocation9 + $0x13] sm:$0xff] %vm994, %v2955
      %2967 = vst.msk [vmem:[#allocation9 + $0x1b] sm:$0xff] %vm994, %v2956
      %2968 = vst.msk [vmem:[#allocation9 + $0x23] sm:$0xff] %vm994, %v2957
      %2969 = vst.msk [vmem:[#allocation9 + $0x2b] sm:$0xff] %vm994, %v2958
      %2970 = vst.msk [vmem:[#allocation9 + $0x33] sm:$0xff] %vm994, %v2959
      %2971 = vst.msk [vmem:[#allocation9 + $0x3b] sm:$0x1f] %vm1001, %v2960
      %v2972 = vld [vmem:[#allocation9] sm:$0xff]
      %v2973 = vld [vmem:[#allocation9 + $0x8] sm:$0xff]
      %v2974 = vld [vmem:[#allocation9 + $0x10] sm:$0xff]
      %v2975 = vld [vmem:[#allocation9 + $0x18] sm:$0xff]
      %v2976 = vld [vmem:[#allocation9 + $0x20] sm:$0xff]
      %v2977 = vld [vmem:[#allocation9 + $0x28] sm:$0xff]
      %v2978 = vld [vmem:[#allocation9 + $0x30] sm:$0xff]
      %v2979 = vld [vmem:[#allocation9 + $0x38] sm:$0xf]
      %2980 = vst.msk [vmem:[#allocation11] sm:$0xff] %vm994, %v2972
      %2981 = vst.msk [vmem:[#allocation11 + $0x10] sm:$0xff] %vm994, %v2973
      %2982 = vst.msk [vmem:[#allocation11 + $0x20] sm:$0xff] %vm994, %v2974
      %2983 = vst.msk [vmem:[#allocation11 + $0x30] sm:$0xff] %vm994, %v2975
      %2984 = vst.msk [vmem:[#allocation11 + $0x40] sm:$0xff] %vm994, %v2976
      %2985 = vst.msk [vmem:[#allocation11 + $0x50] sm:$0xff] %vm994, %v2977
      %2986 = vst.msk [vmem:[#allocation11 + $0x60] sm:$0xff] %vm994, %v2978
      %2987 = vst.msk [vmem:[#allocation11 + $0x70] sm:$0xf] %vm1185, %v2979
      %v2988 = vld [vmem:[#allocation9 + $0x1] sm:$0xff]
      %v2989 = vld [vmem:[#allocation9 + $0x9] sm:$0xff]
      %v2990 = vld [vmem:[#allocation9 + $0x11] sm:$0xff]
      %v2991 = vld [vmem:[#allocation9 + $0x19] sm:$0xff]
      %v2992 = vld [vmem:[#allocation9 + $0x21] sm:$0xff]
      %v2993 = vld [vmem:[#allocation9 + $0x29] sm:$0xff]
      %v2994 = vld [vmem:[#allocation9 + $0x31] sm:$0xff]
      %v2995 = vld [vmem:[#allocation9 + $0x39] sm:$0xf]
      %3004 = vrot.lane.b32.xlu0 %v2988, 32
      %v3005 = vpop.permute.xlu0 %3004
      %3006 = vrot.lane.b32.xlu0 %v2989, 32
      %v3007 = vpop.permute.xlu0 %3006
      %3008 = vrot.lane.b32.xlu0 %v2990, 32
      %v3009 = vpop.permute.xlu0 %3008
      %3010 = vrot.lane.b32.xlu0 %v2991, 32
      %v3011 = vpop.permute.xlu0 %3010
      %3012 = vrot.lane.b32.xlu0 %v2992, 32
      %v3013 = vpop.permute.xlu0 %3012
      %3014 = vrot.lane.b32.xlu0 %v2993, 32
      %v3015 = vpop.permute.xlu0 %3014
      %3016 = vrot.lane.b32.xlu0 %v2994, 32
      %v3017 = vpop.permute.xlu0 %3016
      %3018 = vrot.lane.b32.xlu0 %v2995, 32
      %v3019 = vpop.permute.xlu0 %3018
      %3028 = vst.msk [vmem:[#allocation11] sm:$0xff] %vm1013, %v3005
      %3029 = vst.msk [vmem:[#allocation11 + $0x10] sm:$0xff] %vm1013, %v3007
      %3030 = vst.msk [vmem:[#allocation11 + $0x20] sm:$0xff] %vm1013, %v3009
      %3031 = vst.msk [vmem:[#allocation11 + $0x30] sm:$0xff] %vm1013, %v3011
      %3032 = vst.msk [vmem:[#allocation11 + $0x40] sm:$0xff] %vm1013, %v3013
      %3033 = vst.msk [vmem:[#allocation11 + $0x50] sm:$0xff] %vm1013, %v3015
      %3034 = vst.msk [vmem:[#allocation11 + $0x60] sm:$0xff] %vm1013, %v3017
      %3035 = vst.msk [vmem:[#allocation11 + $0x70] sm:$0xf] %vm1198, %v3019
      %v3036 = vld [vmem:[#allocation9 + $0x2] sm:$0xff]
      %v3037 = vld [vmem:[#allocation9 + $0xa] sm:$0xff]
      %v3038 = vld [vmem:[#allocation9 + $0x12] sm:$0xff]
      %v3039 = vld [vmem:[#allocation9 + $0x1a] sm:$0xff]
      %v3040 = vld [vmem:[#allocation9 + $0x22] sm:$0xff]
      %v3041 = vld [vmem:[#allocation9 + $0x2a] sm:$0xff]
      %v3042 = vld [vmem:[#allocation9 + $0x32] sm:$0xff]
      %v3043 = vld [vmem:[#allocation9 + $0x3a] sm:$0xf]
      %3052 = vrot.lane.b32.xlu0 %v3036, 64
      %v3053 = vpop.permute.xlu0 %3052
      %3054 = vrot.lane.b32.xlu0 %v3037, 64
      %v3055 = vpop.permute.xlu0 %3054
      %3056 = vrot.lane.b32.xlu0 %v3038, 64
      %v3057 = vpop.permute.xlu0 %3056
      %3058 = vrot.lane.b32.xlu0 %v3039, 64
      %v3059 = vpop.permute.xlu0 %3058
      %3060 = vrot.lane.b32.xlu0 %v3040, 64
      %v3061 = vpop.permute.xlu0 %3060
      %3062 = vrot.lane.b32.xlu0 %v3041, 64
      %v3063 = vpop.permute.xlu0 %3062
      %3064 = vrot.lane.b32.xlu0 %v3042, 64
      %v3065 = vpop.permute.xlu0 %3064
      %3066 = vrot.lane.b32.xlu0 %v3043, 64
      %v3067 = vpop.permute.xlu0 %3066
      %3076 = vst.msk [vmem:[#allocation11] sm:$0xff] %vm1027, %v3053
      %3077 = vst.msk [vmem:[#allocation11 + $0x10] sm:$0xff] %vm1027, %v3055
      %3078 = vst.msk [vmem:[#allocation11 + $0x20] sm:$0xff] %vm1027, %v3057
      %3079 = vst.msk [vmem:[#allocation11 + $0x30] sm:$0xff] %vm1027, %v3059
      %3080 = vst.msk [vmem:[#allocation11 + $0x40] sm:$0xff] %vm1027, %v3061
      %3081 = vst.msk [vmem:[#allocation11 + $0x50] sm:$0xff] %vm1027, %v3063
      %3082 = vst.msk [vmem:[#allocation11 + $0x60] sm:$0xff] %vm1027, %v3065
      %3083 = vst.msk [vmem:[#allocation11 + $0x70] sm:$0xf] %vm1211, %v3067
      %v3084 = vld [vmem:[#allocation9 + $0x3] sm:$0xff]
      %v3085 = vld [vmem:[#allocation9 + $0xb] sm:$0xff]
      %v3086 = vld [vmem:[#allocation9 + $0x13] sm:$0xff]
      %v3087 = vld [vmem:[#allocation9 + $0x1b] sm:$0xff]
      %v3088 = vld [vmem:[#allocation9 + $0x23] sm:$0xff]
      %v3089 = vld [vmem:[#allocation9 + $0x2b] sm:$0xff]
      %v3090 = vld [vmem:[#allocation9 + $0x33] sm:$0xff]
      %v3091 = vld [vmem:[#allocation9 + $0x3b] sm:$0xf]
      %3100 = vrot.lane.b32.xlu0 %v3084, 96
      %v3101 = vpop.permute.xlu0 %3100
      %3102 = vrot.lane.b32.xlu0 %v3085, 96
      %v3103 = vpop.permute.xlu0 %3102
      %3104 = vrot.lane.b32.xlu0 %v3086, 96
      %v3105 = vpop.permute.xlu0 %3104
      %3106 = vrot.lane.b32.xlu0 %v3087, 96
      %v3107 = vpop.permute.xlu0 %3106
      %3108 = vrot.lane.b32.xlu0 %v3088, 96
      %v3109 = vpop.permute.xlu0 %3108
      %3110 = vrot.lane.b32.xlu0 %v3089, 96
      %v3111 = vpop.permute.xlu0 %3110
      %3112 = vrot.lane.b32.xlu0 %v3090, 96
      %v3113 = vpop.permute.xlu0 %3112
      %3114 = vrot.lane.b32.xlu0 %v3091, 96
      %v3115 = vpop.permute.xlu0 %3114
      %3124 = vst.msk [vmem:[#allocation11] sm:$0xff] %vm1041, %v3101
      %3125 = vst.msk [vmem:[#allocation11 + $0x10] sm:$0xff] %vm1041, %v3103
      %3126 = vst.msk [vmem:[#allocation11 + $0x20] sm:$0xff] %vm1041, %v3105
      %3127 = vst.msk [vmem:[#allocation11 + $0x30] sm:$0xff] %vm1041, %v3107
      %3128 = vst.msk [vmem:[#allocation11 + $0x40] sm:$0xff] %vm1041, %v3109
      %3129 = vst.msk [vmem:[#allocation11 + $0x50] sm:$0xff] %vm1041, %v3111
      %3130 = vst.msk [vmem:[#allocation11 + $0x60] sm:$0xff] %vm1041, %v3113
      %3131 = vst.msk [vmem:[#allocation11 + $0x70] sm:$0xf] %vm1224, %v3115
      %v3132 = vld [vmem:[#allocation9 + $0x4] sm:$0xff]
      %v3133 = vld [vmem:[#allocation9 + $0xc] sm:$0xff]
      %v3134 = vld [vmem:[#allocation9 + $0x14] sm:$0xff]
      %v3135 = vld [vmem:[#allocation9 + $0x1c] sm:$0xff]
      %v3136 = vld [vmem:[#allocation9 + $0x24] sm:$0xff]
      %v3137 = vld [vmem:[#allocation9 + $0x2c] sm:$0xff]
      %v3138 = vld [vmem:[#allocation9 + $0x34] sm:$0xff]
      %v3139 = vld [vmem:[#allocation9 + $0x3c] sm:$0xf]
      %3140 = vst.msk [vmem:[#allocation11 + $0x8] sm:$0xff] %vm994, %v3132
      %3141 = vst.msk [vmem:[#allocation11 + $0x18] sm:$0xff] %vm994, %v3133
      %3142 = vst.msk [vmem:[#allocation11 + $0x28] sm:$0xff] %vm994, %v3134
      %3143 = vst.msk [vmem:[#allocation11 + $0x38] sm:$0xff] %vm994, %v3135
      %3144 = vst.msk [vmem:[#allocation11 + $0x48] sm:$0xff] %vm994, %v3136
      %3145 = vst.msk [vmem:[#allocation11 + $0x58] sm:$0xff] %vm994, %v3137
      %3146 = vst.msk [vmem:[#allocation11 + $0x68] sm:$0xff] %vm994, %v3138
      %3147 = vst.msk [vmem:[#allocation11 + $0x78] sm:$0xf] %vm1185, %v3139
      %v3148 = vld [vmem:[#allocation9 + $0x5] sm:$0xff]
      %v3149 = vld [vmem:[#allocation9 + $0xd] sm:$0xff]
      %v3150 = vld [vmem:[#allocation9 + $0x15] sm:$0xff]
      %v3151 = vld [vmem:[#allocation9 + $0x1d] sm:$0xff]
      %v3152 = vld [vmem:[#allocation9 + $0x25] sm:$0xff]
      %v3153 = vld [vmem:[#allocation9 + $0x2d] sm:$0xff]
      %v3154 = vld [vmem:[#allocation9 + $0x35] sm:$0xff]
      %v3155 = vld [vmem:[#allocation9 + $0x3d] sm:$0xf]
      %3164 = vrot.lane.b32.xlu0 %v3148, 32
      %v3165 = vpop.permute.xlu0 %3164
      %3166 = vrot.lane.b32.xlu0 %v3149, 32
      %v3167 = vpop.permute.xlu0 %3166
      %3168 = vrot.lane.b32.xlu0 %v3150, 32
      %v3169 = vpop.permute.xlu0 %3168
      %3170 = vrot.lane.b32.xlu0 %v3151, 32
      %v3171 = vpop.permute.xlu0 %3170
      %3172 = vrot.lane.b32.xlu0 %v3152, 32
      %v3173 = vpop.permute.xlu0 %3172
      %3174 = vrot.lane.b32.xlu0 %v3153, 32
      %v3175 = vpop.permute.xlu0 %3174
      %3176 = vrot.lane.b32.xlu0 %v3154, 32
      %v3177 = vpop.permute.xlu0 %3176
      %3178 = vrot.lane.b32.xlu0 %v3155, 32
      %v3179 = vpop.permute.xlu0 %3178
      %3188 = vst.msk [vmem:[#allocation11 + $0x8] sm:$0xff] %vm1013, %v3165
      %3189 = vst.msk [vmem:[#allocation11 + $0x18] sm:$0xff] %vm1013, %v3167
      %3190 = vst.msk [vmem:[#allocation11 + $0x28] sm:$0xff] %vm1013, %v3169
      %3191 = vst.msk [vmem:[#allocation11 + $0x38] sm:$0xff] %vm1013, %v3171
      %3192 = vst.msk [vmem:[#allocation11 + $0x48] sm:$0xff] %vm1013, %v3173
      %3193 = vst.msk [vmem:[#allocation11 + $0x58] sm:$0xff] %vm1013, %v3175
      %3194 = vst.msk [vmem:[#allocation11 + $0x68] sm:$0xff] %vm1013, %v3177
      %3195 = vst.msk [vmem:[#allocation11 + $0x78] sm:$0xf] %vm1198, %v3179
      %v3196 = vld [vmem:[#allocation9 + $0x6] sm:$0xff]
      %v3197 = vld [vmem:[#allocation9 + $0xe] sm:$0xff]
      %v3198 = vld [vmem:[#allocation9 + $0x16] sm:$0xff]
      %v3199 = vld [vmem:[#allocation9 + $0x1e] sm:$0xff]
      %v3200 = vld [vmem:[#allocation9 + $0x26] sm:$0xff]
      %v3201 = vld [vmem:[#allocation9 + $0x2e] sm:$0xff]
      %v3202 = vld [vmem:[#allocation9 + $0x36] sm:$0xff]
      %v3203 = vld [vmem:[#allocation9 + $0x3e] sm:$0xf]
      %3212 = vrot.lane.b32.xlu0 %v3196, 64
      %v3213 = vpop.permute.xlu0 %3212
      %3214 = vrot.lane.b32.xlu0 %v3197, 64
      %v3215 = vpop.permute.xlu0 %3214
      %3216 = vrot.lane.b32.xlu0 %v3198, 64
      %v3217 = vpop.permute.xlu0 %3216
      %3218 = vrot.lane.b32.xlu0 %v3199, 64
      %v3219 = vpop.permute.xlu0 %3218
      %3220 = vrot.lane.b32.xlu0 %v3200, 64
      %v3221 = vpop.permute.xlu0 %3220
      %3222 = vrot.lane.b32.xlu0 %v3201, 64
      %v3223 = vpop.permute.xlu0 %3222
      %3224 = vrot.lane.b32.xlu0 %v3202, 64
      %v3225 = vpop.permute.xlu0 %3224
      %3226 = vrot.lane.b32.xlu0 %v3203, 64
      %v3227 = vpop.permute.xlu0 %3226
      %3236 = vst.msk [vmem:[#allocation11 + $0x8] sm:$0xff] %vm1027, %v3213
      %3237 = vst.msk [vmem:[#allocation11 + $0x18] sm:$0xff] %vm1027, %v3215
      %3238 = vst.msk [vmem:[#allocation11 + $0x28] sm:$0xff] %vm1027, %v3217
      %3239 = vst.msk [vmem:[#allocation11 + $0x38] sm:$0xff] %vm1027, %v3219
      %3240 = vst.msk [vmem:[#allocation11 + $0x48] sm:$0xff] %vm1027, %v3221
      %3241 = vst.msk [vmem:[#allocation11 + $0x58] sm:$0xff] %vm1027, %v3223
      %3242 = vst.msk [vmem:[#allocation11 + $0x68] sm:$0xff] %vm1027, %v3225
      %3243 = vst.msk [vmem:[#allocation11 + $0x78] sm:$0xf] %vm1211, %v3227
      %v3244 = vld [vmem:[#allocation9 + $0x7] sm:$0xff]
      %v3245 = vld [vmem:[#allocation9 + $0xf] sm:$0xff]
      %v3246 = vld [vmem:[#allocation9 + $0x17] sm:$0xff]
      %v3247 = vld [vmem:[#allocation9 + $0x1f] sm:$0xff]
      %v3248 = vld [vmem:[#allocation9 + $0x27] sm:$0xff]
      %v3249 = vld [vmem:[#allocation9 + $0x2f] sm:$0xff]
      %v3250 = vld [vmem:[#allocation9 + $0x37] sm:$0xff]
      %v3251 = vld [vmem:[#allocation9 + $0x3f] sm:$0xf]
      %3260 = vrot.lane.b32.xlu0 %v3244, 96
      %v3261 = vpop.permute.xlu0 %3260
      %3262 = vrot.lane.b32.xlu0 %v3245, 96
      %v3263 = vpop.permute.xlu0 %3262
      %3264 = vrot.lane.b32.xlu0 %v3246, 96
      %v3265 = vpop.permute.xlu0 %3264
      %3266 = vrot.lane.b32.xlu0 %v3247, 96
      %v3267 = vpop.permute.xlu0 %3266
      %3268 = vrot.lane.b32.xlu0 %v3248, 96
      %v3269 = vpop.permute.xlu0 %3268
      %3270 = vrot.lane.b32.xlu0 %v3249, 96
      %v3271 = vpop.permute.xlu0 %3270
      %3272 = vrot.lane.b32.xlu0 %v3250, 96
      %v3273 = vpop.permute.xlu0 %3272
      %3274 = vrot.lane.b32.xlu0 %v3251, 96
      %v3275 = vpop.permute.xlu0 %3274
      %3284 = vst.msk [vmem:[#allocation11 + $0x8] sm:$0xff] %vm1041, %v3261
      %3285 = vst.msk [vmem:[#allocation11 + $0x18] sm:$0xff] %vm1041, %v3263
      %3286 = vst.msk [vmem:[#allocation11 + $0x28] sm:$0xff] %vm1041, %v3265
      %3287 = vst.msk [vmem:[#allocation11 + $0x38] sm:$0xff] %vm1041, %v3267
      %3288 = vst.msk [vmem:[#allocation11 + $0x48] sm:$0xff] %vm1041, %v3269
      %3289 = vst.msk [vmem:[#allocation11 + $0x58] sm:$0xff] %vm1041, %v3271
      %3290 = vst.msk [vmem:[#allocation11 + $0x68] sm:$0xff] %vm1041, %v3273
      %3291 = vst.msk [vmem:[#allocation11 + $0x78] sm:$0xf] %vm1224, %v3275
      %v3292 = vld [vmem:[#allocation11] sm:$0xff]
      %v3293 = vld [vmem:[#allocation11 + $0x8] sm:$0xff]
      %v3294 = vld [vmem:[#allocation11 + $0x10] sm:$0xff]
      %v3295 = vld [vmem:[#allocation11 + $0x18] sm:$0xff]
      %v3296 = vld [vmem:[#allocation11 + $0x20] sm:$0xff]
      %v3297 = vld [vmem:[#allocation11 + $0x28] sm:$0xff]
      %v3298 = vld [vmem:[#allocation11 + $0x30] sm:$0xff]
      %v3299 = vld [vmem:[#allocation11 + $0x38] sm:$0xff]
      %v3300 = vld [vmem:[#allocation11 + $0x40] sm:$0xff]
      %v3301 = vld [vmem:[#allocation11 + $0x48] sm:$0xff]
      %v3302 = vld [vmem:[#allocation11 + $0x50] sm:$0xff]
      %v3303 = vld [vmem:[#allocation11 + $0x58] sm:$0xff]
      %v3304 = vld [vmem:[#allocation11 + $0x60] sm:$0xff]
      %v3305 = vld [vmem:[#allocation11 + $0x68] sm:$0xff]
      %v3306 = vld [vmem:[#allocation11 + $0x70] sm:$0xf]
      %v3307 = vld [vmem:[#allocation11 + $0x78] sm:$0xf]
      %v3308 = vld [vmem:[%s8] sm:$0xff]
      %v3309 = vld [vmem:[%s8 + $0x8] sm:$0xff]
      %v3310 = vld [vmem:[%s8 + $0x10] sm:$0xff]
      %v3311 = vld [vmem:[%s8 + $0x18] sm:$0xff]
      %v3312 = vld [vmem:[%s8 + $0x20] sm:$0xff]
      %v3313 = vld [vmem:[%s8 + $0x28] sm:$0xff]
      %v3314 = vld [vmem:[%s8 + $0x30] sm:$0xff]
      %v3315 = vld [vmem:[%s8 + $0x38] sm:$0xff]
      %v3316 = vld [vmem:[%s8 + $0x40] sm:$0xff]
      %v3317 = vld [vmem:[%s8 + $0x48] sm:$0xff]
      %v3318 = vld [vmem:[%s8 + $0x50] sm:$0xff]
      %v3319 = vld [vmem:[%s8 + $0x58] sm:$0xff]
      %v3320 = vld [vmem:[%s8 + $0x60] sm:$0xff]
      %v3321 = vld [vmem:[%s8 + $0x68] sm:$0xff]
      %v3322 = vld [vmem:[%s8 + $0x70] sm:$0xff]
      %v3323 = vld [vmem:[%s8 + $0x78] sm:$0xff]
      %v3324 = vld [vmem:[%s8 + $0x80] sm:$0xff]
      %v3325 = vld [vmem:[%s8 + $0x88] sm:$0xff]
      %v3326 = vld [vmem:[%s8 + $0x90] sm:$0xff]
      %v3327 = vld [vmem:[%s8 + $0x98] sm:$0xff]
      %v3328 = vld [vmem:[%s8 + $0xa0] sm:$0xff]
      %v3329 = vld [vmem:[%s8 + $0xa8] sm:$0xff]
      %v3330 = vld [vmem:[%s8 + $0xb0] sm:$0xff]
      %v3331 = vld [vmem:[%s8 + $0xb8] sm:$0xff]
      %v3332 = vld [vmem:[%s8 + $0xc0] sm:$0xff]
      %v3333 = vld [vmem:[%s8 + $0xc8] sm:$0xff]
      %v3334 = vld [vmem:[%s8 + $0xd0] sm:$0xff]
      %v3335 = vld [vmem:[%s8 + $0xd8] sm:$0xff]
      %v3336 = vld [vmem:[%s8 + $0xe0] sm:$0xff]
      %v3337 = vld [vmem:[%s8 + $0xe8] sm:$0xff]
      %v3338 = vld [vmem:[%s8 + $0xf0] sm:$0xff]
      %v3339 = vld [vmem:[%s8 + $0xf8] sm:$0xff]
      %v3340 = vld [vmem:[%s10 + $0x6] sm:$0x1]
      %v3341 = vlaneseq
      %v3342 = vshrl.u32 %v3341, 7
      %v3343 = vsub.s32 0, %v3342
      %v3344 = vrot.slane %v3340, %v3343
      %3345 = vmatprep.subr.mxu0 0.0
      %3346 = vmatpush1.msra.mxu0 %v3308
      %3347 = vmatprep.subr.mxu0 0.0
      %3348 = vmatpush1.msra.mxu0 %v3309
      %3349 = vmatprep.subr.mxu0 0.0
      %3350 = vmatpush1.msra.mxu0 %v3310
      %3351 = vmatprep.subr.mxu0 0.0
      %3352 = vmatpush1.msra.mxu0 %v3311
      %3353 = vmatprep.subr.mxu0 0.0
      %3354 = vmatpush1.msra.mxu0 %v3312
      %3355 = vmatprep.subr.mxu0 0.0
      %3356 = vmatpush1.msra.mxu0 %v3313
      %3357 = vmatprep.subr.mxu0 0.0
      %3358 = vmatpush1.msra.mxu0 %v3314
      %3359 = vmatprep.subr.mxu0 0.0
      %3360 = vmatpush1.msra.mxu0 %v3315
      %3361 = vmatprep.subr.mxu0 0.0
      %3362 = vmatpush1.msra.mxu0 %v3316
      %3363 = vmatprep.subr.mxu0 0.0
      %3364 = vmatpush1.msra.mxu0 %v3317
      %3365 = vmatprep.subr.mxu0 0.0
      %3366 = vmatpush1.msra.mxu0 %v3318
      %3367 = vmatprep.subr.mxu0 0.0
      %3368 = vmatpush1.msra.mxu0 %v3319
      %3369 = vmatprep.subr.mxu0 0.0
      %3370 = vmatpush1.msra.mxu0 %v3320
      %3371 = vmatprep.subr.mxu0 0.0
      %3372 = vmatpush1.msra.mxu0 %v3321
      %3373 = vmatprep.subr.mxu0 0.0
      %3374 = vmatpush1.msra.mxu0 %v3322
      %3375 = vmatprep.subr.mxu0 0.0
      %3376 = vmatpush1.msra.mxu0 %v3323
      %3377 = vmatprep.subr.mxu0 0.0
      %3378 = vmatpush1.msra.mxu0 %v3324
      %3379 = vmatprep.subr.mxu0 0.0
      %3380 = vmatpush1.msra.mxu0 %v3325
      %3381 = vmatprep.subr.mxu0 0.0
      %3382 = vmatpush1.msra.mxu0 %v3326
      %3383 = vmatprep.subr.mxu0 0.0
      %3384 = vmatpush1.msra.mxu0 %v3327
      %3385 = vmatprep.subr.mxu0 0.0
      %3386 = vmatpush1.msra.mxu0 %v3328
      %3387 = vmatprep.subr.mxu0 0.0
      %3388 = vmatpush1.msra.mxu0 %v3329
      %3389 = vmatprep.subr.mxu0 0.0
      %3390 = vmatpush1.msra.mxu0 %v3330
      %3391 = vmatprep.subr.mxu0 0.0
      %3392 = vmatpush1.msra.mxu0 %v3331
      %3393 = vmatprep.subr.mxu0 0.0
      %3394 = vmatpush1.msra.mxu0 %v3332
      %3395 = vmatprep.subr.mxu0 0.0
      %3396 = vmatpush1.msra.mxu0 %v3333
      %3397 = vmatprep.subr.mxu0 0.0
      %3398 = vmatpush1.msra.mxu0 %v3334
      %3399 = vmatprep.subr.mxu0 0.0
      %3400 = vmatpush1.msra.mxu0 %v3335
      %3401 = vmatprep.subr.mxu0 0.0
      %3402 = vmatpush1.msra.mxu0 %v3336
      %3403 = vmatprep.subr.mxu0 0.0
      %3404 = vmatpush1.msra.mxu0 %v3337
      %3405 = vmatprep.subr.mxu0 0.0
      %3406 = vmatpush1.msra.mxu0 %v3338
      %3407 = vmatprep.subr.mxu0 0.0
      %3408 = vmatpush1.msra.mxu0 %v3339
      %3409 = vmatprep.mubr.f32.mxu0 %v3293
      %3410 = vmatmul.mubr.f32.gmra.mrb[0].mxu0 %v3292
      %v3411 = vpop.f32.mrb[0].mxu0
      %v3412 = vadd.f32 %v3344, %v3411
      %v3413 = vpop.f32.mrb[0].mxu0
      %3414 = vmatprep.mubr.f32.mxu0 %v3295
      %3415 = vmatmul.mubr.f32.gmra.mrb[0].mxu0 %v3294
      %v3416 = vpop.f32.mrb[0].mxu0
      %v3417 = vadd.f32 %v3344, %v3416
      %v3418 = vpop.f32.mrb[0].mxu0
      %3419 = vmatprep.mubr.f32.mxu0 %v3297
      %3420 = vmatmul.mubr.f32.gmra.mrb[0].mxu0 %v3296
      %v3421 = vpop.f32.mrb[0].mxu0
      %v3422 = vadd.f32 %v3344, %v3421
      %v3423 = vpop.f32.mrb[0].mxu0
      %3424 = vmatprep.mubr.f32.mxu0 %v3299
      %3425 = vmatmul.mubr.f32.gmra.mrb[0].mxu0 %v3298
      %v3426 = vpop.f32.mrb[0].mxu0
      %v3427 = vadd.f32 %v3344, %v3426
      %v3428 = vpop.f32.mrb[0].mxu0
      %3429 = vmatprep.mubr.f32.mxu0 %v3301
      %3430 = vmatmul.mubr.f32.gmra.mrb[0].mxu0 %v3300
      %v3431 = vpop.f32.mrb[0].mxu0
      %v3432 = vadd.f32 %v3344, %v3431
      %v3433 = vpop.f32.mrb[0].mxu0
      %3434 = vmatprep.mubr.f32.mxu0 %v3303
      %3435 = vmatmul.mubr.f32.gmra.mrb[0].mxu0 %v3302
      %v3436 = vpop.f32.mrb[0].mxu0
      %v3437 = vadd.f32 %v3344, %v3436
      %v3438 = vpop.f32.mrb[0].mxu0
      %3439 = vmatprep.mubr.f32.mxu0 %v3305
      %3440 = vmatmul.mubr.f32.gmra.mrb[0].mxu0 %v3304
      %v3441 = vpop.f32.mrb[0].mxu0
      %v3442 = vadd.f32 %v3344, %v3441
      %v3443 = vpop.f32.mrb[0].mxu0
      %3444 = vmatprep.mubr.f32.mxu0 %v3307
      %3445 = vmatmul.mubr.f32.gmra.mrb[0].mxu0 %v3306
      %v3446 = vpop.f32.mrb[0].mxu0
      %v3447 = vadd.f32 %v3344, %v3446
      %v3448 = vpop.f32.mrb[0].mxu0
      %3449 = vdwg.mxu0
      %v3450 = vmax.f32 %v3412, 0.0
      %v3451 = vmax.f32 %v3417, 0.0
      %v3452 = vmax.f32 %v3422, 0.0
      %v3453 = vmax.f32 %v3427, 0.0
      %v3454 = vmax.f32 %v3432, 0.0
      %v3455 = vmax.f32 %v3437, 0.0
      %v3456 = vmax.f32 %v3442, 0.0
      %v3457 = vmax.f32 %v3447, 0.0
      %3458 = vst.msk [vmem:[#allocation10] sm:$0x7] %vm2961, 0.0
      %3459 = vst.msk [vmem:[#allocation10 + $0x3f] sm:$0x7] %vm2961, 0.0
      %3460 = vst.msk [vmem:[#allocation10 + $0x3] sm:$0xff] %vm994, %v3450
      %3461 = vst.msk [vmem:[#allocation10 + $0xb] sm:$0xff] %vm994, %v3451
      %3462 = vst.msk [vmem:[#allocation10 + $0x13] sm:$0xff] %vm994, %v3452
      %3463 = vst.msk [vmem:[#allocation10 + $0x1b] sm:$0xff] %vm994, %v3453
      %3464 = vst.msk [vmem:[#allocation10 + $0x23] sm:$0xff] %vm994, %v3454
      %3465 = vst.msk [vmem:[#allocation10 + $0x2b] sm:$0xff] %vm994, %v3455
      %3466 = vst.msk [vmem:[#allocation10 + $0x33] sm:$0xff] %vm994, %v3456
      %3467 = vst.msk [vmem:[#allocation10 + $0x3b] sm:$0xf] %vm1185, %v3457
      %v3468 = vld [vmem:[#allocation10] sm:$0xff]
      %v3469 = vld [vmem:[#allocation10 + $0x8] sm:$0xff]
      %v3470 = vld [vmem:[#allocation10 + $0x10] sm:$0xff]
      %v3471 = vld [vmem:[#allocation10 + $0x18] sm:$0xff]
      %v3472 = vld [vmem:[#allocation10 + $0x20] sm:$0xff]
      %v3473 = vld [vmem:[#allocation10 + $0x28] sm:$0xff]
      %v3474 = vld [vmem:[#allocation10 + $0x30] sm:$0xff]
      %v3475 = vld [vmem:[#allocation10 + $0x38] sm:$0x7]
      %3476 = vst.msk [vmem:[#allocation11] sm:$0xff] %vm994, %v3468
      %3477 = vst.msk [vmem:[#allocation11 + $0x10] sm:$0xff] %vm994, %v3469
      %3478 = vst.msk [vmem:[#allocation11 + $0x20] sm:$0xff] %vm994, %v3470
      %3479 = vst.msk [vmem:[#allocation11 + $0x30] sm:$0xff] %vm994, %v3471
      %3480 = vst.msk [vmem:[#allocation11 + $0x40] sm:$0xff] %vm994, %v3472
      %3481 = vst.msk [vmem:[#allocation11 + $0x50] sm:$0xff] %vm994, %v3473
      %3482 = vst.msk [vmem:[#allocation11 + $0x60] sm:$0xff] %vm994, %v3474
      %3483 = vst.msk [vmem:[#allocation11 + $0x70] sm:$0x7] %vm2961, %v3475
      %v3484 = vld [vmem:[#allocation10 + $0x1] sm:$0xff]
      %v3485 = vld [vmem:[#allocation10 + $0x9] sm:$0xff]
      %v3486 = vld [vmem:[#allocation10 + $0x11] sm:$0xff]
      %v3487 = vld [vmem:[#allocation10 + $0x19] sm:$0xff]
      %v3488 = vld [vmem:[#allocation10 + $0x21] sm:$0xff]
      %v3489 = vld [vmem:[#allocation10 + $0x29] sm:$0xff]
      %v3490 = vld [vmem:[#allocation10 + $0x31] sm:$0xff]
      %v3491 = vld [vmem:[#allocation10 + $0x39] sm:$0x7]
      %3500 = vrot.lane.b32.xlu0 %v3484, 32
      %v3501 = vpop.permute.xlu0 %3500
      %3502 = vrot.lane.b32.xlu0 %v3485, 32
      %v3503 = vpop.permute.xlu0 %3502
      %3504 = vrot.lane.b32.xlu0 %v3486, 32
      %v3505 = vpop.permute.xlu0 %3504
      %3506 = vrot.lane.b32.xlu0 %v3487, 32
      %v3507 = vpop.permute.xlu0 %3506
      %3508 = vrot.lane.b32.xlu0 %v3488, 32
      %v3509 = vpop.permute.xlu0 %3508
      %3510 = vrot.lane.b32.xlu0 %v3489, 32
      %v3511 = vpop.permute.xlu0 %3510
      %3512 = vrot.lane.b32.xlu0 %v3490, 32
      %v3513 = vpop.permute.xlu0 %3512
      %3514 = vrot.lane.b32.xlu0 %v3491, 32
      %v3515 = vpop.permute.xlu0 %3514
      %3524 = vst.msk [vmem:[#allocation11] sm:$0xff] %vm1013, %v3501
      %3525 = vst.msk [vmem:[#allocation11 + $0x10] sm:$0xff] %vm1013, %v3503
      %3526 = vst.msk [vmem:[#allocation11 + $0x20] sm:$0xff] %vm1013, %v3505
      %3527 = vst.msk [vmem:[#allocation11 + $0x30] sm:$0xff] %vm1013, %v3507
      %3528 = vst.msk [vmem:[#allocation11 + $0x40] sm:$0xff] %vm1013, %v3509
      %3529 = vst.msk [vmem:[#allocation11 + $0x50] sm:$0xff] %vm1013, %v3511
      %3530 = vst.msk [vmem:[#allocation11 + $0x60] sm:$0xff] %vm1013, %v3513
      %vm3531 = vcmask 518400
      %3532 = vst.msk [vmem:[#allocation11 + $0x70] sm:$0x7] %vm3531, %v3515
      %v3533 = vld [vmem:[#allocation10 + $0x2] sm:$0xff]
      %v3534 = vld [vmem:[#allocation10 + $0xa] sm:$0xff]
      %v3535 = vld [vmem:[#allocation10 + $0x12] sm:$0xff]
      %v3536 = vld [vmem:[#allocation10 + $0x1a] sm:$0xff]
      %v3537 = vld [vmem:[#allocation10 + $0x22] sm:$0xff]
      %v3538 = vld [vmem:[#allocation10 + $0x2a] sm:$0xff]
      %v3539 = vld [vmem:[#allocation10 + $0x32] sm:$0xff]
      %v3540 = vld [vmem:[#allocation10 + $0x3a] sm:$0x7]
      %3549 = vrot.lane.b32.xlu0 %v3533, 64
      %v3550 = vpop.permute.xlu0 %3549
      %3551 = vrot.lane.b32.xlu0 %v3534, 64
      %v3552 = vpop.permute.xlu0 %3551
      %3553 = vrot.lane.b32.xlu0 %v3535, 64
      %v3554 = vpop.permute.xlu0 %3553
      %3555 = vrot.lane.b32.xlu0 %v3536, 64
      %v3556 = vpop.permute.xlu0 %3555
      %3557 = vrot.lane.b32.xlu0 %v3537, 64
      %v3558 = vpop.permute.xlu0 %3557
      %3559 = vrot.lane.b32.xlu0 %v3538, 64
      %v3560 = vpop.permute.xlu0 %3559
      %3561 = vrot.lane.b32.xlu0 %v3539, 64
      %v3562 = vpop.permute.xlu0 %3561
      %3563 = vrot.lane.b32.xlu0 %v3540, 64
      %v3564 = vpop.permute.xlu0 %3563
      %3573 = vst.msk [vmem:[#allocation11] sm:$0xff] %vm1027, %v3550
      %3574 = vst.msk [vmem:[#allocation11 + $0x10] sm:$0xff] %vm1027, %v3552
      %3575 = vst.msk [vmem:[#allocation11 + $0x20] sm:$0xff] %vm1027, %v3554
      %3576 = vst.msk [vmem:[#allocation11 + $0x30] sm:$0xff] %vm1027, %v3556
      %3577 = vst.msk [vmem:[#allocation11 + $0x40] sm:$0xff] %vm1027, %v3558
      %3578 = vst.msk [vmem:[#allocation11 + $0x50] sm:$0xff] %vm1027, %v3560
      %3579 = vst.msk [vmem:[#allocation11 + $0x60] sm:$0xff] %vm1027, %v3562
      %vm3580 = vcmask 780800
      %3581 = vst.msk [vmem:[#allocation11 + $0x70] sm:$0x7] %vm3580, %v3564
      %v3582 = vld [vmem:[#allocation10 + $0x3] sm:$0xff]
      %v3583 = vld [vmem:[#allocation10 + $0xb] sm:$0xff]
      %v3584 = vld [vmem:[#allocation10 + $0x13] sm:$0xff]
      %v3585 = vld [vmem:[#allocation10 + $0x1b] sm:$0xff]
      %v3586 = vld [vmem:[#allocation10 + $0x23] sm:$0xff]
      %v3587 = vld [vmem:[#allocation10 + $0x2b] sm:$0xff]
      %v3588 = vld [vmem:[#allocation10 + $0x33] sm:$0xff]
      %v3589 = vld [vmem:[#allocation10 + $0x3b] sm:$0x7]
      %3598 = vrot.lane.b32.xlu0 %v3582, 96
      %v3599 = vpop.permute.xlu0 %3598
      %3600 = vrot.lane.b32.xlu0 %v3583, 96
      %v3601 = vpop.permute.xlu0 %3600
      %3602 = vrot.lane.b32.xlu0 %v3584, 96
      %v3603 = vpop.permute.xlu0 %3602
      %3604 = vrot.lane.b32.xlu0 %v3585, 96
      %v3605 = vpop.permute.xlu0 %3604
      %3606 = vrot.lane.b32.xlu0 %v3586, 96
      %v3607 = vpop.permute.xlu0 %3606
      %3608 = vrot.lane.b32.xlu0 %v3587, 96
      %v3609 = vpop.permute.xlu0 %3608
      %3610 = vrot.lane.b32.xlu0 %v3588, 96
      %v3611 = vpop.permute.xlu0 %3610
      %3612 = vrot.lane.b32.xlu0 %v3589, 96
      %v3613 = vpop.permute.xlu0 %3612
      %3622 = vst.msk [vmem:[#allocation11] sm:$0xff] %vm1041, %v3599
      %3623 = vst.msk [vmem:[#allocation11 + $0x10] sm:$0xff] %vm1041, %v3601
      %3624 = vst.msk [vmem:[#allocation11 + $0x20] sm:$0xff] %vm1041, %v3603
      %3625 = vst.msk [vmem:[#allocation11 + $0x30] sm:$0xff] %vm1041, %v3605
      %3626 = vst.msk [vmem:[#allocation11 + $0x40] sm:$0xff] %vm1041, %v3607
      %3627 = vst.msk [vmem:[#allocation11 + $0x50] sm:$0xff] %vm1041, %v3609
      %3628 = vst.msk [vmem:[#allocation11 + $0x60] sm:$0xff] %vm1041, %v3611
      %vm3629 = vcmask 1043200
      %3630 = vst.msk [vmem:[#allocation11 + $0x70] sm:$0x7] %vm3629, %v3613
      %v3631 = vld [vmem:[#allocation10 + $0x4] sm:$0xff]
      %v3632 = vld [vmem:[#allocation10 + $0xc] sm:$0xff]
      %v3633 = vld [vmem:[#allocation10 + $0x14] sm:$0xff]
      %v3634 = vld [vmem:[#allocation10 + $0x1c] sm:$0xff]
      %v3635 = vld [vmem:[#allocation10 + $0x24] sm:$0xff]
      %v3636 = vld [vmem:[#allocation10 + $0x2c] sm:$0xff]
      %v3637 = vld [vmem:[#allocation10 + $0x34] sm:$0xff]
      %v3638 = vld [vmem:[#allocation10 + $0x3c] sm:$0x7]
      %3639 = vst.msk [vmem:[#allocation11 + $0x8] sm:$0xff] %vm994, %v3631
      %3640 = vst.msk [vmem:[#allocation11 + $0x18] sm:$0xff] %vm994, %v3632
      %3641 = vst.msk [vmem:[#allocation11 + $0x28] sm:$0xff] %vm994, %v3633
      %3642 = vst.msk [vmem:[#allocation11 + $0x38] sm:$0xff] %vm994, %v3634
      %3643 = vst.msk [vmem:[#allocation11 + $0x48] sm:$0xff] %vm994, %v3635
      %3644 = vst.msk [vmem:[#allocation11 + $0x58] sm:$0xff] %vm994, %v3636
      %3645 = vst.msk [vmem:[#allocation11 + $0x68] sm:$0xff] %vm994, %v3637
      %3646 = vst.msk [vmem:[#allocation11 + $0x78] sm:$0x7] %vm2961, %v3638
      %v3647 = vld [vmem:[#allocation10 + $0x5] sm:$0xff]
      %v3648 = vld [vmem:[#allocation10 + $0xd] sm:$0xff]
      %v3649 = vld [vmem:[#allocation10 + $0x15] sm:$0xff]
      %v3650 = vld [vmem:[#allocation10 + $0x1d] sm:$0xff]
      %v3651 = vld [vmem:[#allocation10 + $0x25] sm:$0xff]
      %v3652 = vld [vmem:[#allocation10 + $0x2d] sm:$0xff]
      %v3653 = vld [vmem:[#allocation10 + $0x35] sm:$0xff]
      %v3654 = vld [vmem:[#allocation10 + $0x3d] sm:$0x7]
      %3663 = vrot.lane.b32.xlu0 %v3647, 32
      %v3664 = vpop.permute.xlu0 %3663
      %3665 = vrot.lane.b32.xlu0 %v3648, 32
      %v3666 = vpop.permute.xlu0 %3665
      %3667 = vrot.lane.b32.xlu0 %v3649, 32
      %v3668 = vpop.permute.xlu0 %3667
      %3669 = vrot.lane.b32.xlu0 %v3650, 32
      %v3670 = vpop.permute.xlu0 %3669
      %3671 = vrot.lane.b32.xlu0 %v3651, 32
      %v3672 = vpop.permute.xlu0 %3671
      %3673 = vrot.lane.b32.xlu0 %v3652, 32
      %v3674 = vpop.permute.xlu0 %3673
      %3675 = vrot.lane.b32.xlu0 %v3653, 32
      %v3676 = vpop.permute.xlu0 %3675
      %3677 = vrot.lane.b32.xlu0 %v3654, 32
      %v3678 = vpop.permute.xlu0 %3677
      %3687 = vst.msk [vmem:[#allocation11 + $0x8] sm:$0xff] %vm1013, %v3664
      %3688 = vst.msk [vmem:[#allocation11 + $0x18] sm:$0xff] %vm1013, %v3666
      %3689 = vst.msk [vmem:[#allocation11 + $0x28] sm:$0xff] %vm1013, %v3668
      %3690 = vst.msk [vmem:[#allocation11 + $0x38] sm:$0xff] %vm1013, %v3670
      %3691 = vst.msk [vmem:[#allocation11 + $0x48] sm:$0xff] %vm1013, %v3672
      %3692 = vst.msk [vmem:[#allocation11 + $0x58] sm:$0xff] %vm1013, %v3674
      %3693 = vst.msk [vmem:[#allocation11 + $0x68] sm:$0xff] %vm1013, %v3676
      %3694 = vst.msk [vmem:[#allocation11 + $0x78] sm:$0x7] %vm3531, %v3678
      %v3695 = vld [vmem:[#allocation10 + $0x6] sm:$0xff]
      %v3696 = vld [vmem:[#allocation10 + $0xe] sm:$0xff]
      %v3697 = vld [vmem:[#allocation10 + $0x16] sm:$0xff]
      %v3698 = vld [vmem:[#allocation10 + $0x1e] sm:$0xff]
      %v3699 = vld [vmem:[#allocation10 + $0x26] sm:$0xff]
      %v3700 = vld [vmem:[#allocation10 + $0x2e] sm:$0xff]
      %v3701 = vld [vmem:[#allocation10 + $0x36] sm:$0xff]
      %v3702 = vld [vmem:[#allocation10 + $0x3e] sm:$0x7]
      %3711 = vrot.lane.b32.xlu0 %v3695, 64
      %v3712 = vpop.permute.xlu0 %3711
      %3713 = vrot.lane.b32.xlu0 %v3696, 64
      %v3714 = vpop.permute.xlu0 %3713
      %3715 = vrot.lane.b32.xlu0 %v3697, 64
      %v3716 = vpop.permute.xlu0 %3715
      %3717 = vrot.lane.b32.xlu0 %v3698, 64
      %v3718 = vpop.permute.xlu0 %3717
      %3719 = vrot.lane.b32.xlu0 %v3699, 64
      %v3720 = vpop.permute.xlu0 %3719
      %3721 = vrot.lane.b32.xlu0 %v3700, 64
      %v3722 = vpop.permute.xlu0 %3721
      %3723 = vrot.lane.b32.xlu0 %v3701, 64
      %v3724 = vpop.permute.xlu0 %3723
      %3725 = vrot.lane.b32.xlu0 %v3702, 64
      %v3726 = vpop.permute.xlu0 %3725
      %3735 = vst.msk [vmem:[#allocation11 + $0x8] sm:$0xff] %vm1027, %v3712
      %3736 = vst.msk [vmem:[#allocation11 + $0x18] sm:$0xff] %vm1027, %v3714
      %3737 = vst.msk [vmem:[#allocation11 + $0x28] sm:$0xff] %vm1027, %v3716
      %3738 = vst.msk [vmem:[#allocation11 + $0x38] sm:$0xff] %vm1027, %v3718
      %3739 = vst.msk [vmem:[#allocation11 + $0x48] sm:$0xff] %vm1027, %v3720
      %3740 = vst.msk [vmem:[#allocation11 + $0x58] sm:$0xff] %vm1027, %v3722
      %3741 = vst.msk [vmem:[#allocation11 + $0x68] sm:$0xff] %vm1027, %v3724
      %3742 = vst.msk [vmem:[#allocation11 + $0x78] sm:$0x7] %vm3580, %v3726
      %v3743 = vld [vmem:[#allocation10 + $0x7] sm:$0xff]
      %v3744 = vld [vmem:[#allocation10 + $0xf] sm:$0xff]
      %v3745 = vld [vmem:[#allocation10 + $0x17] sm:$0xff]
      %v3746 = vld [vmem:[#allocation10 + $0x1f] sm:$0xff]
      %v3747 = vld [vmem:[#allocation10 + $0x27] sm:$0xff]
      %v3748 = vld [vmem:[#allocation10 + $0x2f] sm:$0xff]
      %v3749 = vld [vmem:[#allocation10 + $0x37] sm:$0xff]
      %v3750 = vld [vmem:[#allocation10 + $0x3f] sm:$0x7]
      %3759 = vrot.lane.b32.xlu0 %v3743, 96
      %v3760 = vpop.permute.xlu0 %3759
      %3761 = vrot.lane.b32.xlu0 %v3744, 96
      %v3762 = vpop.permute.xlu0 %3761
      %3763 = vrot.lane.b32.xlu0 %v3745, 96
      %v3764 = vpop.permute.xlu0 %3763
      %3765 = vrot.lane.b32.xlu0 %v3746, 96
      %v3766 = vpop.permute.xlu0 %3765
      %3767 = vrot.lane.b32.xlu0 %v3747, 96
      %v3768 = vpop.permute.xlu0 %3767
      %3769 = vrot.lane.b32.xlu0 %v3748, 96
      %v3770 = vpop.permute.xlu0 %3769
      %3771 = vrot.lane.b32.xlu0 %v3749, 96
      %v3772 = vpop.permute.xlu0 %3771
      %3773 = vrot.lane.b32.xlu0 %v3750, 96
      %v3774 = vpop.permute.xlu0 %3773
      %3783 = vst.msk [vmem:[#allocation11 + $0x8] sm:$0xff] %vm1041, %v3760
      %3784 = vst.msk [vmem:[#allocation11 + $0x18] sm:$0xff] %vm1041, %v3762
      %3785 = vst.msk [vmem:[#allocation11 + $0x28] sm:$0xff] %vm1041, %v3764
      %3786 = vst.msk [vmem:[#allocation11 + $0x38] sm:$0xff] %vm1041, %v3766
      %3787 = vst.msk [vmem:[#allocation11 + $0x48] sm:$0xff] %vm1041, %v3768
      %3788 = vst.msk [vmem:[#allocation11 + $0x58] sm:$0xff] %vm1041, %v3770
      %3789 = vst.msk [vmem:[#allocation11 + $0x68] sm:$0xff] %vm1041, %v3772
      %3790 = vst.msk [vmem:[#allocation11 + $0x78] sm:$0x7] %vm3629, %v3774
      %v3791 = vld [vmem:[#allocation11] sm:$0xff]
      %v3792 = vld [vmem:[#allocation11 + $0x8] sm:$0xff]
      %v3793 = vld [vmem:[#allocation11 + $0x10] sm:$0xff]
      %v3794 = vld [vmem:[#allocation11 + $0x18] sm:$0xff]
      %v3795 = vld [vmem:[#allocation11 + $0x20] sm:$0xff]
      %v3796 = vld [vmem:[#allocation11 + $0x28] sm:$0xff]
      %v3797 = vld [vmem:[#allocation11 + $0x30] sm:$0xff]
      %v3798 = vld [vmem:[#allocation11 + $0x38] sm:$0xff]
      %v3799 = vld [vmem:[#allocation11 + $0x40] sm:$0xff]
      %v3800 = vld [vmem:[#allocation11 + $0x48] sm:$0xff]
      %v3801 = vld [vmem:[#allocation11 + $0x50] sm:$0xff]
      %v3802 = vld [vmem:[#allocation11 + $0x58] sm:$0xff]
      %v3803 = vld [vmem:[#allocation11 + $0x60] sm:$0xff]
      %v3804 = vld [vmem:[#allocation11 + $0x68] sm:$0xff]
      %v3805 = vld [vmem:[#allocation11 + $0x70] sm:$0x7]
      %v3806 = vld [vmem:[#allocation11 + $0x78] sm:$0x7]
      %v3807 = vld [vmem:[%s9] sm:$0xff]
      %v3808 = vld [vmem:[%s9 + $0x8] sm:$0xff]
      %v3809 = vld [vmem:[%s9 + $0x10] sm:$0xff]
      %v3810 = vld [vmem:[%s9 + $0x18] sm:$0xff]
      %v3811 = vld [vmem:[%s9 + $0x20] sm:$0xff]
      %v3812 = vld [vmem:[%s9 + $0x28] sm:$0xff]
      %v3813 = vld [vmem:[%s9 + $0x30] sm:$0xff]
      %v3814 = vld [vmem:[%s9 + $0x38] sm:$0xff]
      %v3815 = vld [vmem:[%s9 + $0x40] sm:$0xff]
      %v3816 = vld [vmem:[%s9 + $0x48] sm:$0xff]
      %v3817 = vld [vmem:[%s9 + $0x50] sm:$0xff]
      %v3818 = vld [vmem:[%s9 + $0x58] sm:$0xff]
      %v3819 = vld [vmem:[%s9 + $0x60] sm:$0xff]
      %v3820 = vld [vmem:[%s9 + $0x68] sm:$0xff]
      %v3821 = vld [vmem:[%s9 + $0x70] sm:$0xff]
      %v3822 = vld [vmem:[%s9 + $0x78] sm:$0xff]
      %v3823 = vld [vmem:[%s9 + $0x80] sm:$0xff]
      %v3824 = vld [vmem:[%s9 + $0x88] sm:$0xff]
      %v3825 = vld [vmem:[%s9 + $0x90] sm:$0xff]
      %v3826 = vld [vmem:[%s9 + $0x98] sm:$0xff]
      %v3827 = vld [vmem:[%s9 + $0xa0] sm:$0xff]
      %v3828 = vld [vmem:[%s9 + $0xa8] sm:$0xff]
      %v3829 = vld [vmem:[%s9 + $0xb0] sm:$0xff]
      %v3830 = vld [vmem:[%s9 + $0xb8] sm:$0xff]
      %v3831 = vld [vmem:[%s9 + $0xc0] sm:$0xff]
      %v3832 = vld [vmem:[%s9 + $0xc8] sm:$0xff]
      %v3833 = vld [vmem:[%s9 + $0xd0] sm:$0xff]
      %v3834 = vld [vmem:[%s9 + $0xd8] sm:$0xff]
      %v3835 = vld [vmem:[%s9 + $0xe0] sm:$0xff]
      %v3836 = vld [vmem:[%s9 + $0xe8] sm:$0xff]
      %v3837 = vld [vmem:[%s9 + $0xf0] sm:$0xff]
      %v3838 = vld [vmem:[%s9 + $0xf8] sm:$0xff]
      %v3839 = vld [vmem:[%s10 + $0x7] sm:$0x1]
      %v3840 = vlaneseq
      %v3841 = vshrl.u32 %v3840, 7
      %v3842 = vsub.s32 0, %v3841
      %v3843 = vrot.slane %v3839, %v3842
      %3844 = vmatprep.subr.mxu0 0.0
      %3845 = vmatpush1.msra.mxu0 %v3807
      %3846 = vmatprep.subr.mxu0 0.0
      %3847 = vmatpush1.msra.mxu0 %v3808
      %3848 = vmatprep.subr.mxu0 0.0
      %3849 = vmatpush1.msra.mxu0 %v3809
      %3850 = vmatprep.subr.mxu0 0.0
      %3851 = vmatpush1.msra.mxu0 %v3810
      %3852 = vmatprep.subr.mxu0 0.0
      %3853 = vmatpush1.msra.mxu0 %v3811
      %3854 = vmatprep.subr.mxu0 0.0
      %3855 = vmatpush1.msra.mxu0 %v3812
      %3856 = vmatprep.subr.mxu0 0.0
      %3857 = vmatpush1.msra.mxu0 %v3813
      %3858 = vmatprep.subr.mxu0 0.0
      %3859 = vmatpush1.msra.mxu0 %v3814
      %3860 = vmatprep.subr.mxu0 0.0
      %3861 = vmatpush1.msra.mxu0 %v3815
      %3862 = vmatprep.subr.mxu0 0.0
      %3863 = vmatpush1.msra.mxu0 %v3816
      %3864 = vmatprep.subr.mxu0 0.0
      %3865 = vmatpush1.msra.mxu0 %v3817
      %3866 = vmatprep.subr.mxu0 0.0
      %3867 = vmatpush1.msra.mxu0 %v3818
      %3868 = vmatprep.subr.mxu0 0.0
      %3869 = vmatpush1.msra.mxu0 %v3819
      %3870 = vmatprep.subr.mxu0 0.0
      %3871 = vmatpush1.msra.mxu0 %v3820
      %3872 = vmatprep.subr.mxu0 0.0
      %3873 = vmatpush1.msra.mxu0 %v3821
      %3874 = vmatprep.subr.mxu0 0.0
      %3875 = vmatpush1.msra.mxu0 %v3822
      %3876 = vmatprep.subr.mxu0 0.0
      %3877 = vmatpush1.msra.mxu0 %v3823
      %3878 = vmatprep.subr.mxu0 0.0
      %3879 = vmatpush1.msra.mxu0 %v3824
      %3880 = vmatprep.subr.mxu0 0.0
      %3881 = vmatpush1.msra.mxu0 %v3825
      %3882 = vmatprep.subr.mxu0 0.0
      %3883 = vmatpush1.msra.mxu0 %v3826
      %3884 = vmatprep.subr.mxu0 0.0
      %3885 = vmatpush1.msra.mxu0 %v3827
      %3886 = vmatprep.subr.mxu0 0.0
      %3887 = vmatpush1.msra.mxu0 %v3828
      %3888 = vmatprep.subr.mxu0 0.0
      %3889 = vmatpush1.msra.mxu0 %v3829
      %3890 = vmatprep.subr.mxu0 0.0
      %3891 = vmatpush1.msra.mxu0 %v3830
      %3892 = vmatprep.subr.mxu0 0.0
      %3893 = vmatpush1.msra.mxu0 %v3831
      %3894 = vmatprep.subr.mxu0 0.0
      %3895 = vmatpush1.msra.mxu0 %v3832
      %3896 = vmatprep.subr.mxu0 0.0
      %3897 = vmatpush1.msra.mxu0 %v3833
      %3898 = vmatprep.subr.mxu0 0.0
      %3899 = vmatpush1.msra.mxu0 %v3834
      %3900 = vmatprep.subr.mxu0 0.0
      %3901 = vmatpush1.msra.mxu0 %v3835
      %3902 = vmatprep.subr.mxu0 0.0
      %3903 = vmatpush1.msra.mxu0 %v3836
      %3904 = vmatprep.subr.mxu0 0.0
      %3905 = vmatpush1.msra.mxu0 %v3837
      %3906 = vmatprep.subr.mxu0 0.0
      %3907 = vmatpush1.msra.mxu0 %v3838
      %3908 = vmatprep.mubr.f32.mxu0 %v3792
      %3909 = vmatmul.mubr.f32.gmra.mrb[0].mxu0 %v3791
      %v3910 = vpop.f32.mrb[0].mxu0
      %v3911 = vadd.f32 %v3843, %v3910
      %v3912 = vpop.f32.mrb[0].mxu0
      %3913 = vmatprep.mubr.f32.mxu0 %v3794
      %3914 = vmatmul.mubr.f32.gmra.mrb[0].mxu0 %v3793
      %v3915 = vpop.f32.mrb[0].mxu0
      %v3916 = vadd.f32 %v3843, %v3915
      %v3917 = vpop.f32.mrb[0].mxu0
      %3918 = vmatprep.mubr.f32.mxu0 %v3796
      %3919 = vmatmul.mubr.f32.gmra.mrb[0].mxu0 %v3795
      %v3920 = vpop.f32.mrb[0].mxu0
      %v3921 = vadd.f32 %v3843, %v3920
      %v3922 = vpop.f32.mrb[0].mxu0
      %3923 = vmatprep.mubr.f32.mxu0 %v3798
      %3924 = vmatmul.mubr.f32.gmra.mrb[0].mxu0 %v3797
      %v3925 = vpop.f32.mrb[0].mxu0
      %v3926 = vadd.f32 %v3843, %v3925
      %v3927 = vpop.f32.mrb[0].mxu0
      %3928 = vmatprep.mubr.f32.mxu0 %v3800
      %3929 = vmatmul.mubr.f32.gmra.mrb[0].mxu0 %v3799
      %v3930 = vpop.f32.mrb[0].mxu0
      %v3931 = vadd.f32 %v3843, %v3930
      %v3932 = vpop.f32.mrb[0].mxu0
      %3933 = vmatprep.mubr.f32.mxu0 %v3802
      %3934 = vmatmul.mubr.f32.gmra.mrb[0].mxu0 %v3801
      %v3935 = vpop.f32.mrb[0].mxu0
      %v3936 = vadd.f32 %v3843, %v3935
      %v3937 = vpop.f32.mrb[0].mxu0
      %3938 = vmatprep.mubr.f32.mxu0 %v3804
      %3939 = vmatmul.mubr.f32.gmra.mrb[0].mxu0 %v3803
      %v3940 = vpop.f32.mrb[0].mxu0
      %v3941 = vadd.f32 %v3843, %v3940
      %v3942 = vpop.f32.mrb[0].mxu0
      %3943 = vmatprep.mubr.f32.mxu0 %v3806
      %3944 = vmatmul.mubr.f32.gmra.mrb[0].mxu0 %v3805
      %v3945 = vpop.f32.mrb[0].mxu0
      %v3946 = vadd.f32 %v3843, %v3945
      %v3947 = vpop.f32.mrb[0].mxu0
      %3948 = vdwg.mxu0
      %v3949 = vmax.f32 %v3911, 0.0
      %v3950 = vmax.f32 %v3916, 0.0
      %v3951 = vmax.f32 %v3921, 0.0
      %v3952 = vmax.f32 %v3926, 0.0
      %v3953 = vmax.f32 %v3931, 0.0
      %v3954 = vmax.f32 %v3936, 0.0
      %v3955 = vmax.f32 %v3941, 0.0
      %v3956 = vmax.f32 %v3946, 0.0
      %3957 = vst.msk [vmem:[%s446] sm:$0xff] %vm994, %v3949
      %3958 = vst.msk [vmem:[%s446 + $0x8] sm:$0xff] %vm994, %v3950
      %3959 = vst.msk [vmem:[%s446 + $0x10] sm:$0xff] %vm994, %v3951
      %3960 = vst.msk [vmem:[%s446 + $0x18] sm:$0xff] %vm994, %v3952
      %3961 = vst.msk [vmem:[%s446 + $0x20] sm:$0xff] %vm994, %v3953
      %3962 = vst.msk [vmem:[%s446 + $0x28] sm:$0xff] %vm994, %v3954
      %3963 = vst.msk [vmem:[%s446 + $0x30] sm:$0xff] %vm994, %v3955
      %3964 = vst.msk [vmem:[%s446 + $0x38] sm:$0x7] %vm2961, %v3956
      %p3965 = scmp.lt.s32.totalorder %s24, 1
      %s3966 = scalar_select %p3965, %s24, 1
      %s3967 = smul.addr %s3966, 2
      %s3968 = smul.addr %s3967, 8
      %s3969 = scalar_lea.vmem %s11, %s3968
      %p3970 = scmp.lt.s32.totalorder %s24, 1
      %s3971 = scalar_select %p3970, %s24, 1
      %s3972 = smul.addr %s3971, 8
      %s3973 = smul.addr %s3972, 8
      %s3974 = scalar_lea.vmem %s12, %s3973
      // Predicated region
      $region65: #{deepsleepnet_feature_extractor.1} parent=63 // pred_check
        %p3975 = pneg %p283
      $region66: #{deepsleepnet_feature_extractor.1} parent=63 // pred_check_branch
        %3977 = sbr.rel (%p3975) target = $region68
      $region67: #{deepsleepnet_feature_extractor.1} parent=63 // pred_region
        _
      $region68: #{deepsleepnet_feature_extractor.1} parent=63 // pred_fallthru
        _
      // Predicated region
      $region69: #{deepsleepnet_feature_extractor.1} parent=63 // pred_check
        %p3978 = pneg %p309
      $region70: #{deepsleepnet_feature_extractor.1} parent=63 // pred_check_branch
        %3980 = sbr.rel (%p3978) target = $region72
      $region71: #{deepsleepnet_feature_extractor.1} parent=63 // pred_region
        _
      $region72: #{deepsleepnet_feature_extractor.1} parent=63 // pred_fallthru
        _
    $region64: #{deepsleepnet_feature_extractor.1} parent=5 // pred_fallthru
      _
    %p3981 = scmp.le.s32.totalorder 2, %s19
    // Predicated region
    $region73: #{deepsleepnet_feature_extractor.1} parent=5 // pred_check
      %p3982 = pneg %p3981
    $region74: #{deepsleepnet_feature_extractor.1} parent=5 // pred_check_branch
      %3984 = sbr.rel (%p3982) target = $region76
    $region75: #{deepsleepnet_feature_extractor.1} parent=5 // pred_region
      %s3985 = ssub.s32 %s19, 2
      // Predicated region
      $region77: #{deepsleepnet_feature_extractor.1} parent=75 // pred_check
        %p3986 = pneg %p289
      $region78: #{deepsleepnet_feature_extractor.1} parent=75 // pred_check_branch
        %3988 = sbr.rel (%p3986) target = $region80
      $region79: #{deepsleepnet_feature_extractor.1} parent=75 // pred_region
        %p3989 = scmp.lt.s32.totalorder %s25, 1
        %s3990 = scalar_select %p3989, %s25, 1
        %s3991 = smul.addr %s3990, 2
        %s3992 = smul.addr %s3991, 8
        %s3993 = scalar_lea.vmem %s11, %s3992
      $region80: #{deepsleepnet_feature_extractor.1} parent=75 // pred_fallthru
        _
      // Predicated region
      $region81: #{deepsleepnet_feature_extractor.1} parent=75 // pred_check
        %p3994 = pneg %p315
      $region82: #{deepsleepnet_feature_extractor.1} parent=75 // pred_check_branch
        %3996 = sbr.rel (%p3994) target = $region84
      $region83: #{deepsleepnet_feature_extractor.1} parent=75 // pred_region
        %p3997 = scmp.lt.s32.totalorder %s25, 1
        %s3998 = scalar_select %p3997, %s25, 1
        %s3999 = smul.addr %s3998, 8
        %s4000 = smul.addr %s3999, 8
        %s4001 = scalar_lea.vmem %s12, %s4000
      $region84: #{deepsleepnet_feature_extractor.1} parent=75 // pred_fallthru
        _
    $region76: #{deepsleepnet_feature_extractor.1} parent=5 // pred_fallthru
      _
  $region6: #{deepsleepnet_feature_extractor.1} parent=0 // loop_footer
    %s23 = sadd.s32 1, %s19
  $region7: #{deepsleepnet_feature_extractor.1} parent=0 // loop_footer_branch
    %18 = sbr.rel target = $region3
  $region8: #{deepsleepnet_feature_extractor.1} parent=0 // loop_exit
    _

</llo_original>
